<compile_context>
chip_gen: v7x
topology: tpu7x:2x2x1
jax: 0.10.0
libtpu: 0.0.40
codegen_flags: <defaults>
</compile_context>

<pallas_src>
import jax
import jax.numpy as jnp
from jax.experimental import pallas as pl
from jax.experimental.pallas import tpu as pltpu

B, C, H, W = 2, 4, 16, 16   # batch, channels, spatial (W must be a power of two)
HID = 32                    # hidden channels of the score network
EMB = 32                    # sinusoidal timestep-embedding dim
T_STEPS = 10                # scheduler.T (number of noise levels)
K = 3                       # conv kernel size
HW = H * W
PAD = 128                   # flat zero-pad on each end of a (rows, HW) map (>= W + 1)

assert W & (W - 1) == 0, "column masks below use `& (W-1)`; W must be a power of two"

# tap offsets (dy, dx) in the same (ky, kx) row-major order as the packed weights
_OFFSETS = tuple((ky - 1, kx - 1) for ky in range(K) for kx in range(K))


# ---------------------------------------------------------------------------
# Fused kernel: time-MLP + conv1 + time-bias + ReLU + conv2 for the WHOLE batch
# ---------------------------------------------------------------------------
def _ncsn_fused_kernel(temb_ref, wt1t_ref, bt1_ref, wt2t_ref, btb_ref,
                       w1p_ref, w2p_ref, b2_ref, x_ref, out_ref,
                       xpad_ref, h1pad_ref, stk1_ref, stk2_ref):
    # temb_ref : (EMB, B)       transposed sinusoidal timestep embedding
    # wt1t_ref : (HID, EMB)     time-MLP layer-1 weight (transposed)
    # bt1_ref  : (HID, 1)       time-MLP layer-1 bias (column)
    # wt2t_ref : (HID, HID)     time-MLP layer-2 weight (transposed)
    # btb_ref  : (HID, 1)       time-MLP layer-2 bias + conv1 bias (column)
    # w1p_ref  : (HID, 9*C)     conv1 weights, tap-stacked & lane-dense
    # w2p_ref  : (C, 9*HID)     conv2 weights, tap-stacked & lane-dense
    # b2_ref   : (C, 1)         conv2 bias (column)
    # x_ref    : (B*C, HW)      flattened NCHW input batch
    # out_ref  : (B*C, HW)      estimated score (flattened, NCHW row order)
    # xpad/h1pad : zero-padded flat feature maps (VMEM scratch)
    # stk1/stk2  : stacked shifted-window (im2col) scratch (VMEM, conv dtype)
    cdt = xpad_ref.dtype

    # ---- time-conditioning MLP, computed transposed: tbias[:, b] biases sample b ----
    h = jnp.dot(wt1t_ref[...], temb_ref[...], preferred_element_type=jnp.float32)
    h = jnp.maximum(h + bt1_ref[...], 0.0)                                     # (HID, B)
    tbias = jnp.dot(wt2t_ref[...], h, preferred_element_type=jnp.float32) + btb_ref[...]

    # ---- column-validity masks; row under/overflow lands in the flat zero pad ----
    col = jax.lax.broadcasted_iota(jnp.int32, (1, HW), 1) & (W - 1)
    keep = {-1: col >= 1, 1: col <= W - 2}

    # ---- zero ONLY the pad stripes (single invocation; centres overwritten below) ----
    xpad_ref[:, :PAD] = jnp.zeros((B * C, PAD), cdt)
    xpad_ref[:, PAD + HW:] = jnp.zeros((B * C, PAD), cdt)
    h1pad_ref[:, :PAD] = jnp.zeros((B * HID, PAD), cdt)
    h1pad_ref[:, PAD + HW:] = jnp.zeros((B * HID, PAD), cdt)

    xpad_ref[:, PAD:PAD + HW] = x_ref[...].astype(cdt)

    def stack_windows(src_ref, stk_ref, cin, b):
        # im2col for sample b: the 9 masked shifted (cin, HW) windows stack along
        # sublanes; sample b occupies lane block [b*HW, (b+1)*HW).
        for tap, (dy, dx) in enumerate(_OFFSETS):
            off = dy * W + dx
            s = src_ref[b * cin:(b + 1) * cin, PAD + off:PAD + off + HW]
            if dx != 0:
                s = jnp.where(keep[dx], s, jnp.zeros_like(s))
            stk_ref[tap * cin:(tap + 1) * cin, b * HW:(b + 1) * HW] = s

    # ---- conv1 (C -> HID): ONE (HID, 9C) x (9C, B*HW) GEMM for the whole batch ----
    for b in range(B):
        stack_windows(xpad_ref, stk1_ref, C, b)
    h1 = jnp.dot(w1p_ref[...], stk1_ref[...], preferred_element_type=jnp.float32)

    # per-sample time bias + ReLU epilogue in f32; h1 never leaves VMEM.
    for b in range(B):
        h1_b = jnp.maximum(h1[:, b * HW:(b + 1) * HW] + tbias[:, b:b + 1], 0.0)
        h1pad_ref[b * HID:(b + 1) * HID, PAD:PAD + HW] = h1_b.astype(cdt)

    # ---- conv2 (HID -> C): ONE (C, 9*HID) x (9*HID, B*HW) GEMM ----
    for b in range(B):
        stack_windows(h1pad_ref, stk2_ref, HID, b)
    y = jnp.dot(w2p_ref[...], stk2_ref[...], preferred_element_type=jnp.float32) + b2_ref[...]

    # lane-dense stores (last dim HW=256), NCHW row order.
    for b in range(B):
        out_ref[b * C:(b + 1) * C, :] = y[:, b * HW:(b + 1) * HW].astype(out_ref.dtype)


# ---------------------------------------------------------------------------
# Glue: time embedding, parameters, packing
# ---------------------------------------------------------------------------
def timestep_embedding(t):
    # t: int [B] in [1, T]  ->  (B, EMB) sinusoidal embedding.
    half = EMB // 2
    freqs = jnp.exp(-jnp.log(10000.0) * jnp.arange(half, dtype=jnp.float32) / half)
    ang = t.astype(jnp.float32)[:, None] * freqs[None, :]
    return jnp.concatenate([jnp.sin(ang), jnp.cos(ang)], axis=-1)


def init_params(key):
    ks = jax.random.split(key, 4)
    def nrm(k, shape, fan_in):
        return jax.random.normal(k, shape, jnp.float32) / jnp.sqrt(float(fan_in))
    return {
        "wt1": nrm(ks[0], (EMB, HID), EMB),
        "bt1": jnp.zeros((1, HID), jnp.float32),
        "wt2": nrm(ks[1], (HID, HID), HID),
        "bt2": jnp.zeros((1, HID), jnp.float32),
        "w1": nrm(ks[2], (K, K, C, HID), K * K * C),        # HWIO
        "b1": jnp.zeros((1, HID), jnp.float32),
        "w2": nrm(ks[3], (K, K, HID, C), K * K * HID),      # HWIO
        "b2": jnp.zeros((1, C), jnp.float32),
    }


def pack_params(params, conv_dtype=jnp.float32):
    """Bake kernel-ready (transposed / tap-stacked / lane-dense) weights ONCE, outside
    the jitted forward.  `conv_dtype=jnp.bfloat16` selects the v6e/v7x fast MXU path."""
    # packed[co, tap*Cin + ci] == w[ky, kx, ci, co]  (tap = ky*K + kx)
    w1p = jnp.transpose(params["w1"], (3, 0, 1, 2)).reshape(HID, K * K * C)
    w2p = jnp.transpose(params["w2"], (3, 0, 1, 2)).reshape(C, K * K * HID)
    return {
        "wt1t": params["wt1"].T,                           # (HID, EMB)
        "bt1": params["bt1"].T,                            # (HID, 1)
        "wt2t": params["wt2"].T,                           # (HID, HID)
        "btb": (params["bt2"] + params["b1"]).T,           # (HID, 1)  time bias + conv1 bias
        "w1p": w1p.astype(conv_dtype),                     # (HID, 9*C)
        "w2p": w2p.astype(conv_dtype),                     # (C, 9*HID)
        "b2": params["b2"].T,                              # (C, 1)
    }


# ---------------------------------------------------------------------------
# Forward (NCSN.forward equivalent): score(x_t, t)
# ---------------------------------------------------------------------------
@jax.jit
def ncsn_forward(x_nchw, t, packed):
    assert x_nchw.shape == (B, C, H, W)
    conv_dtype = packed["w1p"].dtype
    x_flat = x_nchw.reshape(B * C, HW)          # NCHW -> (B*C, H*W), no transpose
    temb_t = timestep_embedding(t).T            # (EMB, B); one tiny fused sin/cos op

    itemsize = jnp.dtype(conv_dtype).itemsize
    flops = (2 * B * HW * (K * K * C * HID + K * K * HID * C)
             + 2 * B * (EMB * HID + HID * HID))
    bytes_accessed = (2 * B * C * HW * 4
                      + (HID * K * K * C + C * K * K * HID) * itemsize
                      + (EMB * B + HID * EMB + HID * HID + 3 * HID + C) * 4)

    y_flat = pl.pallas_call(
        _ncsn_fused_kernel,
        out_shape=jax.ShapeDtypeStruct((B * C, HW), jnp.float32),
        in_specs=[pl.BlockSpec(memory_space=pltpu.MemorySpace.VMEM)] * 9,
        out_specs=pl.BlockSpec(memory_space=pltpu.MemorySpace.VMEM),
        scratch_shapes=[
            pltpu.VMEM((B * C, HW + 2 * PAD), conv_dtype),       # padded input maps
            pltpu.VMEM((B * HID, HW + 2 * PAD), conv_dtype),     # padded hidden maps (h1)
            pltpu.VMEM((K * K * C, B * HW), conv_dtype),         # conv1 im2col stack
            pltpu.VMEM((K * K * HID, B * HW), conv_dtype),       # conv2 im2col stack
        ],
        cost_estimate=pl.CostEstimate(flops=flops, transcendentals=0,
                                      bytes_accessed=bytes_accessed),
    )(temb_t, packed["wt1t"], packed["bt1"], packed["wt2t"], packed["btb"],
      packed["w1p"], packed["w2p"], packed["b2"], x_flat)

    return y_flat.reshape(B, C, H, W)            # already NCHW


# Pure-JAX reference (lax.conv at HIGHEST precision) for the numerical check.
def reference_forward(x_nchw, t, params):
    hp = jax.lax.Precision.HIGHEST
    x = jnp.transpose(x_nchw, (0, 2, 3, 1))                          # NHWC
    temb = timestep_embedding(t)
    h = jnp.maximum(jnp.dot(temb, params["wt1"], precision=hp) + params["bt1"][0], 0.0)
    tbias = jnp.dot(h, params["wt2"], precision=hp) + params["bt2"][0]
    dn = ("NHWC", "HWIO", "NHWC")
    h1 = jax.lax.conv_general_dilated(x, params["w1"], (1, 1), "SAME",
                                      dimension_numbers=dn, precision=hp)
    h1 = jnp.maximum(h1 + params["b1"][0] + tbias[:, None, None, :], 0.0)
    y = jax.lax.conv_general_dilated(h1, params["w2"], (1, 1), "SAME",
                                     dimension_numbers=dn, precision=hp)
    y = y + params["b2"][0]
    return jnp.transpose(y, (0, 3, 1, 2))


if __name__ == "__main__":
    key = jax.random.PRNGKey(0)
    kx, kt, kp = jax.random.split(key, 3)
    x = jax.random.normal(kx, (B, C, H, W), jnp.float32)        # noised sample x_t (NCHW)
    t = jax.random.randint(kt, (B,), 1, T_STEPS + 1)            # long timesteps in [1, T]
    params = init_params(kp)
    y_ref = reference_forward(x, t, params)

    # f32 MXU-operand path: tight check that validates tap order / column masks / bias
    # wiring (a single wrong tap would be ~0.1+; tolerance sits well above only the
    # transcendental-approximation differences between XLA and the kernel path).
    packed_f32 = pack_params(params, jnp.float32)
    y = jax.block_until_ready(ncsn_forward(x, t, packed_f32))
    assert y.shape == x.shape and y.dtype == x.dtype
    err = float(jnp.max(jnp.abs(y - y_ref)))
    assert err < 1e-3, f"f32 path mismatch vs reference: {err}"

    # bf16 MXU-operand path (v6e/v7x fast MXU), f32 accumulation and epilogue.
    packed_bf16 = pack_params(params, jnp.bfloat16)
    y_bf = jax.block_until_ready(ncsn_forward(x, t, packed_bf16))
    err_bf = float(jnp.max(jnp.abs(y_bf - y_ref)))
    assert err_bf < 5e-2, f"bf16 path mismatch vs reference: {err_bf}"

    print("KERNEL_OK")
</pallas_src>

<mosaic_0001>
module attributes {stable_mosaic.version = 11 : i64} {
  func.func @_ncsn_fused_kernel(%arg0: memref<32x2xf32, #tpu.memory_space<vmem>>, %arg1: memref<32x32xf32, #tpu.memory_space<vmem>>, %arg2: memref<32x1xf32, #tpu.memory_space<vmem>>, %arg3: memref<32x32xf32, #tpu.memory_space<vmem>>, %arg4: memref<32x1xf32, #tpu.memory_space<vmem>>, %arg5: memref<32x36xf32, #tpu.memory_space<vmem>>, %arg6: memref<4x288xf32, #tpu.memory_space<vmem>>, %arg7: memref<4x1xf32, #tpu.memory_space<vmem>>, %arg8: memref<8x256xf32, #tpu.memory_space<vmem>>, %arg9: memref<8x256xf32, #tpu.memory_space<vmem>>, %arg10: memref<8x512xf32, #tpu.memory_space<vmem>>, %arg11: memref<64x512xf32, #tpu.memory_space<vmem>>, %arg12: memref<36x512xf32, #tpu.memory_space<vmem>>, %arg13: memref<288x512xf32, #tpu.memory_space<vmem>>) attributes {dimension_semantics = [], scalar_prefetch = 0 : i64, scratch_operands = 4 : i64, tpu.core_type = #tpu.core_type<tc>} {
    %c0 = arith.constant 0 : index
    %c0_0 = arith.constant 0 : index
    %0 = vector.load %arg1[%c0, %c0_0] : memref<32x32xf32, #tpu.memory_space<vmem>>, vector<32x32xf32>
    %c0_1 = arith.constant 0 : index
    %c0_2 = arith.constant 0 : index
    %1 = vector.load %arg0[%c0_1, %c0_2] : memref<32x2xf32, #tpu.memory_space<vmem>>, vector<32x2xf32>
    %cst = arith.constant dense<0.000000e+00> : vector<32x2xf32>
    %2 = tpu.matmul %0, %1, %cst {dimension_numbers = #tpu.dot_dimension_numbers<[1], [0], [0], [1], [0, 0, 1, 1], [], []>} : vector<32x32xf32>, vector<32x2xf32>, vector<32x2xf32> -> vector<32x2xf32>
    %c0_3 = arith.constant 0 : index
    %c0_4 = arith.constant 0 : index
    %3 = vector.load %arg2[%c0_3, %c0_4] : memref<32x1xf32, #tpu.memory_space<vmem>>, vector<32x1xf32>
    %4 = vector.broadcast %3 : vector<32x1xf32> to vector<32x2xf32>
    %5 = arith.addf %2, %4 : vector<32x2xf32>
    %cst_5 = arith.constant 0.000000e+00 : f32
    %6 = vector.broadcast %cst_5 : f32 to vector<32x2xf32>
    %7 = arith.maximumf %5, %6 : vector<32x2xf32>
    %c0_6 = arith.constant 0 : index
    %c0_7 = arith.constant 0 : index
    %8 = vector.load %arg3[%c0_6, %c0_7] : memref<32x32xf32, #tpu.memory_space<vmem>>, vector<32x32xf32>
    %cst_8 = arith.constant dense<0.000000e+00> : vector<32x2xf32>
    %9 = tpu.matmul %8, %7, %cst_8 {dimension_numbers = #tpu.dot_dimension_numbers<[1], [0], [0], [1], [0, 0, 1, 1], [], []>} : vector<32x32xf32>, vector<32x2xf32>, vector<32x2xf32> -> vector<32x2xf32>
    %c0_9 = arith.constant 0 : index
    %c0_10 = arith.constant 0 : index
    %10 = vector.load %arg4[%c0_9, %c0_10] : memref<32x1xf32, #tpu.memory_space<vmem>>, vector<32x1xf32>
    %11 = vector.broadcast %10 : vector<32x1xf32> to vector<32x2xf32>
    %12 = arith.addf %9, %11 : vector<32x2xf32>
    %13 = tpu.iota {dimensions = array<i32: 1>} : vector<1x256xi32>
    %c15_i32 = arith.constant 15 : i32
    %14 = vector.broadcast %c15_i32 : i32 to vector<1x256xi32>
    %15 = arith.andi %13, %14 : vector<1x256xi32>
    %c1_i32 = arith.constant 1 : i32
    %16 = vector.broadcast %c1_i32 : i32 to vector<1x256xi32>
    %17 = arith.cmpi sge, %15, %16 : vector<1x256xi32>
    %c14_i32 = arith.constant 14 : i32
    %18 = vector.broadcast %c14_i32 : i32 to vector<1x256xi32>
    %19 = arith.cmpi sle, %15, %18 : vector<1x256xi32>
    %cst_11 = arith.constant 0.000000e+00 : f32
    %20 = vector.broadcast %cst_11 : f32 to vector<8x128xf32>
    %c0_12 = arith.constant 0 : index
    %c0_13 = arith.constant 0 : index
    %21 = vector.load %arg10[%c0_12, %c0_13] : memref<8x512xf32, #tpu.memory_space<vmem>>, vector<8x128xf32>
    tpu.vector_store %arg10[%c0_12, %c0_13], %20 {strides = array<i32>} : memref<8x512xf32, #tpu.memory_space<vmem>>, vector<8x128xf32>,
    %cst_14 = arith.constant 0.000000e+00 : f32
    %22 = vector.broadcast %cst_14 : f32 to vector<8x128xf32>
    %c0_15 = arith.constant 0 : index
    %c384 = arith.constant 384 : index
    %23 = vector.load %arg10[%c0_15, %c384] : memref<8x512xf32, #tpu.memory_space<vmem>>, vector<8x128xf32>
    tpu.vector_store %arg10[%c0_15, %c384], %22 {strides = array<i32>} : memref<8x512xf32, #tpu.memory_space<vmem>>, vector<8x128xf32>,
    %cst_16 = arith.constant 0.000000e+00 : f32
    %24 = vector.broadcast %cst_16 : f32 to vector<64x128xf32>
    %c0_17 = arith.constant 0 : index
    %c0_18 = arith.constant 0 : index
    %25 = vector.load %arg11[%c0_17, %c0_18] : memref<64x512xf32, #tpu.memory_space<vmem>>, vector<64x128xf32>
    tpu.vector_store %arg11[%c0_17, %c0_18], %24 {strides = array<i32>} : memref<64x512xf32, #tpu.memory_space<vmem>>, vector<64x128xf32>,
    %cst_19 = arith.constant 0.000000e+00 : f32
    %26 = vector.broadcast %cst_19 : f32 to vector<64x128xf32>
    %c0_20 = arith.constant 0 : index
    %c384_21 = arith.constant 384 : index
    %27 = vector.load %arg11[%c0_20, %c384_21] : memref<64x512xf32, #tpu.memory_space<vmem>>, vector<64x128xf32>
    tpu.vector_store %arg11[%c0_20, %c384_21], %26 {strides = array<i32>} : memref<64x512xf32, #tpu.memory_space<vmem>>, vector<64x128xf32>,
    %c0_22 = arith.constant 0 : index
    %c0_23 = arith.constant 0 : index
    %28 = vector.load %arg8[%c0_22, %c0_23] : memref<8x256xf32, #tpu.memory_space<vmem>>, vector<8x256xf32>
    %c0_24 = arith.constant 0 : index
    %c128 = arith.constant 128 : index
    %29 = vector.load %arg10[%c0_24, %c128] : memref<8x512xf32, #tpu.memory_space<vmem>>, vector<8x256xf32>
    tpu.vector_store %arg10[%c0_24, %c128], %28 {strides = array<i32>} : memref<8x512xf32, #tpu.memory_space<vmem>>, vector<8x256xf32>,
    %c0_25 = arith.constant 0 : index
    %c111 = arith.constant 111 : index
    %30 = vector.load %arg10[%c0_25, %c111] : memref<8x512xf32, #tpu.memory_space<vmem>>, vector<4x256xf32>
    %cst_26 = arith.constant 0.000000e+00 : f32
    %31 = vector.broadcast %cst_26 : f32 to vector<4x256xf32>
    %32 = vector.shape_cast %17 : vector<1x256xi1> to vector<1x256xi1>
    %33 = vector.broadcast %32 : vector<1x256xi1> to vector<4x256xi1>
    %34 = arith.select %33, %30, %31 : vector<4x256xi1>, vector<4x256xf32>
    %c0_27 = arith.constant 0 : index
    %c0_28 = arith.constant 0 : index
    %35 = vector.load %arg12[%c0_27, %c0_28] : memref<36x512xf32, #tpu.memory_space<vmem>>, vector<4x256xf32>
    tpu.vector_store %arg12[%c0_27, %c0_28], %34 {strides = array<i32>} : memref<36x512xf32, #tpu.memory_space<vmem>>, vector<4x256xf32>,
    %c0_29 = arith.constant 0 : index
    %c112 = arith.constant 112 : index
    %36 = vector.load %arg10[%c0_29, %c112] : memref<8x512xf32, #tpu.memory_space<vmem>>, vector<4x256xf32>
    %c4 = arith.constant 4 : index
    %c0_30 = arith.constant 0 : index
    %37 = vector.load %arg12[%c4, %c0_30] : memref<36x512xf32, #tpu.memory_space<vmem>>, vector<4x256xf32>
    tpu.vector_store %arg12[%c4, %c0_30], %36 {strides = array<i32>} : memref<36x512xf32, #tpu.memory_space<vmem>>, vector<4x256xf32>,
    %c0_31 = arith.constant 0 : index
    %c113 = arith.constant 113 : index
    %38 = vector.load %arg10[%c0_31, %c113] : memref<8x512xf32, #tpu.memory_space<vmem>>, vector<4x256xf32>
    %cst_32 = arith.constant 0.000000e+00 : f32
    %39 = vector.broadcast %cst_32 : f32 to vector<4x256xf32>
    %40 = vector.shape_cast %19 : vector<1x256xi1> to vector<1x256xi1>
    %41 = vector.broadcast %40 : vector<1x256xi1> to vector<4x256xi1>
    %42 = arith.select %41, %38, %39 : vector<4x256xi1>, vector<4x256xf32>
    %c8 = arith.constant 8 : index
    %c0_33 = arith.constant 0 : index
    %43 = vector.load %arg12[%c8, %c0_33] : memref<36x512xf32, #tpu.memory_space<vmem>>, vector<4x256xf32>
    tpu.vector_store %arg12[%c8, %c0_33], %42 {strides = array<i32>} : memref<36x512xf32, #tpu.memory_space<vmem>>, vector<4x256xf32>,
    %c0_34 = arith.constant 0 : index
    %c127 = arith.constant 127 : index
    %44 = vector.load %arg10[%c0_34, %c127] : memref<8x512xf32, #tpu.memory_space<vmem>>, vector<4x256xf32>
    %cst_35 = arith.constant 0.000000e+00 : f32
    %45 = vector.broadcast %cst_35 : f32 to vector<4x256xf32>
    %46 = vector.shape_cast %17 : vector<1x256xi1> to vector<1x256xi1>
    %47 = vector.broadcast %46 : vector<1x256xi1> to vector<4x256xi1>
    %48 = arith.select %47, %44, %45 : vector<4x256xi1>, vector<4x256xf32>
    %c12 = arith.constant 12 : index
    %c0_36 = arith.constant 0 : index
    %49 = vector.load %arg12[%c12, %c0_36] : memref<36x512xf32, #tpu.memory_space<vmem>>, vector<4x256xf32>
    tpu.vector_store %arg12[%c12, %c0_36], %48 {strides = array<i32>} : memref<36x512xf32, #tpu.memory_space<vmem>>, vector<4x256xf32>,
    %c0_37 = arith.constant 0 : index
    %c128_38 = arith.constant 128 : index
    %50 = vector.load %arg10[%c0_37, %c128_38] : memref<8x512xf32, #tpu.memory_space<vmem>>, vector<4x256xf32>
    %c16 = arith.constant 16 : index
    %c0_39 = arith.constant 0 : index
    %51 = vector.load %arg12[%c16, %c0_39] : memref<36x512xf32, #tpu.memory_space<vmem>>, vector<4x256xf32>
    tpu.vector_store %arg12[%c16, %c0_39], %50 {strides = array<i32>} : memref<36x512xf32, #tpu.memory_space<vmem>>, vector<4x256xf32>,
    %c0_40 = arith.constant 0 : index
    %c129 = arith.constant 129 : index
    %52 = vector.load %arg10[%c0_40, %c129] : memref<8x512xf32, #tpu.memory_space<vmem>>, vector<4x256xf32>
    %cst_41 = arith.constant 0.000000e+00 : f32
    %53 = vector.broadcast %cst_41 : f32 to vector<4x256xf32>
    %54 = vector.shape_cast %19 : vector<1x256xi1> to vector<1x256xi1>
    %55 = vector.broadcast %54 : vector<1x256xi1> to vector<4x256xi1>
    %56 = arith.select %55, %52, %53 : vector<4x256xi1>, vector<4x256xf32>
    %c20 = arith.constant 20 : index
    %c0_42 = arith.constant 0 : index
    %57 = vector.load %arg12[%c20, %c0_42] : memref<36x512xf32, #tpu.memory_space<vmem>>, vector<4x256xf32>
    tpu.vector_store %arg12[%c20, %c0_42], %56 {strides = array<i32>} : memref<36x512xf32, #tpu.memory_space<vmem>>, vector<4x256xf32>,
    %c0_43 = arith.constant 0 : index
    %c143 = arith.constant 143 : index
    %58 = vector.load %arg10[%c0_43, %c143] : memref<8x512xf32, #tpu.memory_space<vmem>>, vector<4x256xf32>
    %cst_44 = arith.constant 0.000000e+00 : f32
    %59 = vector.broadcast %cst_44 : f32 to vector<4x256xf32>
    %60 = vector.shape_cast %17 : vector<1x256xi1> to vector<1x256xi1>
    %61 = vector.broadcast %60 : vector<1x256xi1> to vector<4x256xi1>
    %62 = arith.select %61, %58, %59 : vector<4x256xi1>, vector<4x256xf32>
    %c24 = arith.constant 24 : index
    %c0_45 = arith.constant 0 : index
    %63 = vector.load %arg12[%c24, %c0_45] : memref<36x512xf32, #tpu.memory_space<vmem>>, vector<4x256xf32>
    tpu.vector_store %arg12[%c24, %c0_45], %62 {strides = array<i32>} : memref<36x512xf32, #tpu.memory_space<vmem>>, vector<4x256xf32>,
    %c0_46 = arith.constant 0 : index
    %c144 = arith.constant 144 : index
    %64 = vector.load %arg10[%c0_46, %c144] : memref<8x512xf32, #tpu.memory_space<vmem>>, vector<4x256xf32>
    %c28 = arith.constant 28 : index
    %c0_47 = arith.constant 0 : index
    %65 = vector.load %arg12[%c28, %c0_47] : memref<36x512xf32, #tpu.memory_space<vmem>>, vector<4x256xf32>
    tpu.vector_store %arg12[%c28, %c0_47], %64 {strides = array<i32>} : memref<36x512xf32, #tpu.memory_space<vmem>>, vector<4x256xf32>,
    %c0_48 = arith.constant 0 : index
    %c145 = arith.constant 145 : index
    %66 = vector.load %arg10[%c0_48, %c145] : memref<8x512xf32, #tpu.memory_space<vmem>>, vector<4x256xf32>
    %cst_49 = arith.constant 0.000000e+00 : f32
    %67 = vector.broadcast %cst_49 : f32 to vector<4x256xf32>
    %68 = vector.shape_cast %19 : vector<1x256xi1> to vector<1x256xi1>
    %69 = vector.broadcast %68 : vector<1x256xi1> to vector<4x256xi1>
    %70 = arith.select %69, %66, %67 : vector<4x256xi1>, vector<4x256xf32>
    %c32 = arith.constant 32 : index
    %c0_50 = arith.constant 0 : index
    %71 = vector.load %arg12[%c32, %c0_50] : memref<36x512xf32, #tpu.memory_space<vmem>>, vector<4x256xf32>
    tpu.vector_store %arg12[%c32, %c0_50], %70 {strides = array<i32>} : memref<36x512xf32, #tpu.memory_space<vmem>>, vector<4x256xf32>,
    %c4_51 = arith.constant 4 : index
    %c111_52 = arith.constant 111 : index
    %72 = vector.load %arg10[%c4_51, %c111_52] : memref<8x512xf32, #tpu.memory_space<vmem>>, vector<4x256xf32>
    %cst_53 = arith.constant 0.000000e+00 : f32
    %73 = vector.broadcast %cst_53 : f32 to vector<4x256xf32>
    %74 = vector.shape_cast %17 : vector<1x256xi1> to vector<1x256xi1>
    %75 = vector.broadcast %74 : vector<1x256xi1> to vector<4x256xi1>
    %76 = arith.select %75, %72, %73 : vector<4x256xi1>, vector<4x256xf32>
    %c0_54 = arith.constant 0 : index
    %c256 = arith.constant 256 : index
    %77 = vector.load %arg12[%c0_54, %c256] : memref<36x512xf32, #tpu.memory_space<vmem>>, vector<4x256xf32>
    tpu.vector_store %arg12[%c0_54, %c256], %76 {strides = array<i32>} : memref<36x512xf32, #tpu.memory_space<vmem>>, vector<4x256xf32>,
    %c4_55 = arith.constant 4 : index
    %c112_56 = arith.constant 112 : index
    %78 = vector.load %arg10[%c4_55, %c112_56] : memref<8x512xf32, #tpu.memory_space<vmem>>, vector<4x256xf32>
    %c4_57 = arith.constant 4 : index
    %c256_58 = arith.constant 256 : index
    %79 = vector.load %arg12[%c4_57, %c256_58] : memref<36x512xf32, #tpu.memory_space<vmem>>, vector<4x256xf32>
    tpu.vector_store %arg12[%c4_57, %c256_58], %78 {strides = array<i32>} : memref<36x512xf32, #tpu.memory_space<vmem>>, vector<4x256xf32>,
    %c4_59 = arith.constant 4 : index
    %c113_60 = arith.constant 113 : index
    %80 = vector.load %arg10[%c4_59, %c113_60] : memref<8x512xf32, #tpu.memory_space<vmem>>, vector<4x256xf32>
    %cst_61 = arith.constant 0.000000e+00 : f32
    %81 = vector.broadcast %cst_61 : f32 to vector<4x256xf32>
    %82 = vector.shape_cast %19 : vector<1x256xi1> to vector<1x256xi1>
    %83 = vector.broadcast %82 : vector<1x256xi1> to vector<4x256xi1>
    %84 = arith.select %83, %80, %81 : vector<4x256xi1>, vector<4x256xf32>
    %c8_62 = arith.constant 8 : index
    %c256_63 = arith.constant 256 : index
    %85 = vector.load %arg12[%c8_62, %c256_63] : memref<36x512xf32, #tpu.memory_space<vmem>>, vector<4x256xf32>
    tpu.vector_store %arg12[%c8_62, %c256_63], %84 {strides = array<i32>} : memref<36x512xf32, #tpu.memory_space<vmem>>, vector<4x256xf32>,
    %c4_64 = arith.constant 4 : index
    %c127_65 = arith.constant 127 : index
    %86 = vector.load %arg10[%c4_64, %c127_65] : memref<8x512xf32, #tpu.memory_space<vmem>>, vector<4x256xf32>
    %cst_66 = arith.constant 0.000000e+00 : f32
    %87 = vector.broadcast %cst_66 : f32 to vector<4x256xf32>
    %88 = vector.shape_cast %17 : vector<1x256xi1> to vector<1x256xi1>
    %89 = vector.broadcast %88 : vector<1x256xi1> to vector<4x256xi1>
    %90 = arith.select %89, %86, %87 : vector<4x256xi1>, vector<4x256xf32>
    %c12_67 = arith.constant 12 : index
    %c256_68 = arith.constant 256 : index
    %91 = vector.load %arg12[%c12_67, %c256_68] : memref<36x512xf32, #tpu.memory_space<vmem>>, vector<4x256xf32>
    tpu.vector_store %arg12[%c12_67, %c256_68], %90 {strides = array<i32>} : memref<36x512xf32, #tpu.memory_space<vmem>>, vector<4x256xf32>,
    %c4_69 = arith.constant 4 : index
    %c128_70 = arith.constant 128 : index
    %92 = vector.load %arg10[%c4_69, %c128_70] : memref<8x512xf32, #tpu.memory_space<vmem>>, vector<4x256xf32>
    %c16_71 = arith.constant 16 : index
    %c256_72 = arith.constant 256 : index
    %93 = vector.load %arg12[%c16_71, %c256_72] : memref<36x512xf32, #tpu.memory_space<vmem>>, vector<4x256xf32>
    tpu.vector_store %arg12[%c16_71, %c256_72], %92 {strides = array<i32>} : memref<36x512xf32, #tpu.memory_space<vmem>>, vector<4x256xf32>,
    %c4_73 = arith.constant 4 : index
    %c129_74 = arith.constant 129 : index
    %94 = vector.load %arg10[%c4_73, %c129_74] : memref<8x512xf32, #tpu.memory_space<vmem>>, vector<4x256xf32>
    %cst_75 = arith.constant 0.000000e+00 : f32
    %95 = vector.broadcast %cst_75 : f32 to vector<4x256xf32>
    %96 = vector.shape_cast %19 : vector<1x256xi1> to vector<1x256xi1>
    %97 = vector.broadcast %96 : vector<1x256xi1> to vector<4x256xi1>
    %98 = arith.select %97, %94, %95 : vector<4x256xi1>, vector<4x256xf32>
    %c20_76 = arith.constant 20 : index
    %c256_77 = arith.constant 256 : index
    %99 = vector.load %arg12[%c20_76, %c256_77] : memref<36x512xf32, #tpu.memory_space<vmem>>, vector<4x256xf32>
    tpu.vector_store %arg12[%c20_76, %c256_77], %98 {strides = array<i32>} : memref<36x512xf32, #tpu.memory_space<vmem>>, vector<4x256xf32>,
    %c4_78 = arith.constant 4 : index
    %c143_79 = arith.constant 143 : index
    %100 = vector.load %arg10[%c4_78, %c143_79] : memref<8x512xf32, #tpu.memory_space<vmem>>, vector<4x256xf32>
    %cst_80 = arith.constant 0.000000e+00 : f32
    %101 = vector.broadcast %cst_80 : f32 to vector<4x256xf32>
    %102 = vector.shape_cast %17 : vector<1x256xi1> to vector<1x256xi1>
    %103 = vector.broadcast %102 : vector<1x256xi1> to vector<4x256xi1>
    %104 = arith.select %103, %100, %101 : vector<4x256xi1>, vector<4x256xf32>
    %c24_81 = arith.constant 24 : index
    %c256_82 = arith.constant 256 : index
    %105 = vector.load %arg12[%c24_81, %c256_82] : memref<36x512xf32, #tpu.memory_space<vmem>>, vector<4x256xf32>
    tpu.vector_store %arg12[%c24_81, %c256_82], %104 {strides = array<i32>} : memref<36x512xf32, #tpu.memory_space<vmem>>, vector<4x256xf32>,
    %c4_83 = arith.constant 4 : index
    %c144_84 = arith.constant 144 : index
    %106 = vector.load %arg10[%c4_83, %c144_84] : memref<8x512xf32, #tpu.memory_space<vmem>>, vector<4x256xf32>
    %c28_85 = arith.constant 28 : index
    %c256_86 = arith.constant 256 : index
    %107 = vector.load %arg12[%c28_85, %c256_86] : memref<36x512xf32, #tpu.memory_space<vmem>>, vector<4x256xf32>
    tpu.vector_store %arg12[%c28_85, %c256_86], %106 {strides = array<i32>} : memref<36x512xf32, #tpu.memory_space<vmem>>, vector<4x256xf32>,
    %c4_87 = arith.constant 4 : index
    %c145_88 = arith.constant 145 : index
    %108 = vector.load %arg10[%c4_87, %c145_88] : memref<8x512xf32, #tpu.memory_space<vmem>>, vector<4x256xf32>
    %cst_89 = arith.constant 0.000000e+00 : f32
    %109 = vector.broadcast %cst_89 : f32 to vector<4x256xf32>
    %110 = vector.shape_cast %19 : vector<1x256xi1> to vector<1x256xi1>
    %111 = vector.broadcast %110 : vector<1x256xi1> to vector<4x256xi1>
    %112 = arith.select %111, %108, %109 : vector<4x256xi1>, vector<4x256xf32>
    %c32_90 = arith.constant 32 : index
    %c256_91 = arith.constant 256 : index
    %113 = vector.load %arg12[%c32_90, %c256_91] : memref<36x512xf32, #tpu.memory_space<vmem>>, vector<4x256xf32>
    tpu.vector_store %arg12[%c32_90, %c256_91], %112 {strides = array<i32>} : memref<36x512xf32, #tpu.memory_space<vmem>>, vector<4x256xf32>,
    %c0_92 = arith.constant 0 : index
    %c0_93 = arith.constant 0 : index
    %114 = vector.load %arg5[%c0_92, %c0_93] : memref<32x36xf32, #tpu.memory_space<vmem>>, vector<32x36xf32>
    %c0_94 = arith.constant 0 : index
    %c0_95 = arith.constant 0 : index
    %115 = vector.load %arg12[%c0_94, %c0_95] : memref<36x512xf32, #tpu.memory_space<vmem>>, vector<36x512xf32>
    %cst_96 = arith.constant dense<0.000000e+00> : vector<32x512xf32>
    %116 = tpu.matmul %114, %115, %cst_96 {dimension_numbers = #tpu.dot_dimension_numbers<[1], [0], [0], [1], [0, 0, 1, 1], [], []>} : vector<32x36xf32>, vector<36x512xf32>, vector<32x512xf32> -> vector<32x512xf32>
    %117 = vector.extract_strided_slice %116 {offsets = [0, 0], sizes = [32, 256], strides = [1, 1]} : vector<32x512xf32> to vector<32x256xf32>
    %118 = vector.extract_strided_slice %12 {offsets = [0, 0], sizes = [32, 1], strides = [1, 1]} : vector<32x2xf32> to vector<32x1xf32>
    %119 = vector.broadcast %118 : vector<32x1xf32> to vector<32x256xf32>
    %120 = arith.addf %117, %119 : vector<32x256xf32>
    %cst_97 = arith.constant 0.000000e+00 : f32
    %121 = vector.broadcast %cst_97 : f32 to vector<32x256xf32>
    %122 = arith.maximumf %120, %121 : vector<32x256xf32>
    %c0_98 = arith.constant 0 : index
    %c128_99 = arith.constant 128 : index
    %123 = vector.load %arg11[%c0_98, %c128_99] : memref<64x512xf32, #tpu.memory_space<vmem>>, vector<32x256xf32>
    tpu.vector_store %arg11[%c0_98, %c128_99], %122 {strides = array<i32>} : memref<64x512xf32, #tpu.memory_space<vmem>>, vector<32x256xf32>,
    %124 = vector.extract_strided_slice %116 {offsets = [0, 256], sizes = [32, 256], strides = [1, 1]} : vector<32x512xf32> to vector<32x256xf32>
    %125 = vector.extract_strided_slice %12 {offsets = [0, 1], sizes = [32, 1], strides = [1, 1]} : vector<32x2xf32> to vector<32x1xf32>
    %126 = vector.broadcast %125 : vector<32x1xf32> to vector<32x256xf32>
    %127 = arith.addf %124, %126 : vector<32x256xf32>
    %cst_100 = arith.constant 0.000000e+00 : f32
    %128 = vector.broadcast %cst_100 : f32 to vector<32x256xf32>
    %129 = arith.maximumf %127, %128 : vector<32x256xf32>
    %c32_101 = arith.constant 32 : index
    %c128_102 = arith.constant 128 : index
    %130 = vector.load %arg11[%c32_101, %c128_102] : memref<64x512xf32, #tpu.memory_space<vmem>>, vector<32x256xf32>
    tpu.vector_store %arg11[%c32_101, %c128_102], %129 {strides = array<i32>} : memref<64x512xf32, #tpu.memory_space<vmem>>, vector<32x256xf32>,
    %c0_103 = arith.constant 0 : index
    %c111_104 = arith.constant 111 : index
    %131 = vector.load %arg11[%c0_103, %c111_104] : memref<64x512xf32, #tpu.memory_space<vmem>>, vector<32x256xf32>
    %cst_105 = arith.constant 0.000000e+00 : f32
    %132 = vector.broadcast %cst_105 : f32 to vector<32x256xf32>
    %133 = vector.shape_cast %17 : vector<1x256xi1> to vector<1x256xi1>
    %134 = vector.broadcast %133 : vector<1x256xi1> to vector<32x256xi1>
    %135 = arith.select %134, %131, %132 : vector<32x256xi1>, vector<32x256xf32>
    %c0_106 = arith.constant 0 : index
    %c0_107 = arith.constant 0 : index
    %136 = vector.load %arg13[%c0_106, %c0_107] : memref<288x512xf32, #tpu.memory_space<vmem>>, vector<32x256xf32>
    tpu.vector_store %arg13[%c0_106, %c0_107], %135 {strides = array<i32>} : memref<288x512xf32, #tpu.memory_space<vmem>>, vector<32x256xf32>,
    %c0_108 = arith.constant 0 : index
    %c112_109 = arith.constant 112 : index
    %137 = vector.load %arg11[%c0_108, %c112_109] : memref<64x512xf32, #tpu.memory_space<vmem>>, vector<32x256xf32>
    %c32_110 = arith.constant 32 : index
    %c0_111 = arith.constant 0 : index
    %138 = vector.load %arg13[%c32_110, %c0_111] : memref<288x512xf32, #tpu.memory_space<vmem>>, vector<32x256xf32>
    tpu.vector_store %arg13[%c32_110, %c0_111], %137 {strides = array<i32>} : memref<288x512xf32, #tpu.memory_space<vmem>>, vector<32x256xf32>,
    %c0_112 = arith.constant 0 : index
    %c113_113 = arith.constant 113 : index
    %139 = vector.load %arg11[%c0_112, %c113_113] : memref<64x512xf32, #tpu.memory_space<vmem>>, vector<32x256xf32>
    %cst_114 = arith.constant 0.000000e+00 : f32
    %140 = vector.broadcast %cst_114 : f32 to vector<32x256xf32>
    %141 = vector.shape_cast %19 : vector<1x256xi1> to vector<1x256xi1>
    %142 = vector.broadcast %141 : vector<1x256xi1> to vector<32x256xi1>
    %143 = arith.select %142, %139, %140 : vector<32x256xi1>, vector<32x256xf32>
    %c64 = arith.constant 64 : index
    %c0_115 = arith.constant 0 : index
    %144 = vector.load %arg13[%c64, %c0_115] : memref<288x512xf32, #tpu.memory_space<vmem>>, vector<32x256xf32>
    tpu.vector_store %arg13[%c64, %c0_115], %143 {strides = array<i32>} : memref<288x512xf32, #tpu.memory_space<vmem>>, vector<32x256xf32>,
    %c0_116 = arith.constant 0 : index
    %c127_117 = arith.constant 127 : index
    %145 = vector.load %arg11[%c0_116, %c127_117] : memref<64x512xf32, #tpu.memory_space<vmem>>, vector<32x256xf32>
    %cst_118 = arith.constant 0.000000e+00 : f32
    %146 = vector.broadcast %cst_118 : f32 to vector<32x256xf32>
    %147 = vector.shape_cast %17 : vector<1x256xi1> to vector<1x256xi1>
    %148 = vector.broadcast %147 : vector<1x256xi1> to vector<32x256xi1>
    %149 = arith.select %148, %145, %146 : vector<32x256xi1>, vector<32x256xf32>
    %c96 = arith.constant 96 : index
    %c0_119 = arith.constant 0 : index
    %150 = vector.load %arg13[%c96, %c0_119] : memref<288x512xf32, #tpu.memory_space<vmem>>, vector<32x256xf32>
    tpu.vector_store %arg13[%c96, %c0_119], %149 {strides = array<i32>} : memref<288x512xf32, #tpu.memory_space<vmem>>, vector<32x256xf32>,
    %c0_120 = arith.constant 0 : index
    %c128_121 = arith.constant 128 : index
    %151 = vector.load %arg11[%c0_120, %c128_121] : memref<64x512xf32, #tpu.memory_space<vmem>>, vector<32x256xf32>
    %c128_122 = arith.constant 128 : index
    %c0_123 = arith.constant 0 : index
    %152 = vector.load %arg13[%c128_122, %c0_123] : memref<288x512xf32, #tpu.memory_space<vmem>>, vector<32x256xf32>
    tpu.vector_store %arg13[%c128_122, %c0_123], %151 {strides = array<i32>} : memref<288x512xf32, #tpu.memory_space<vmem>>, vector<32x256xf32>,
    %c0_124 = arith.constant 0 : index
    %c129_125 = arith.constant 129 : index
    %153 = vector.load %arg11[%c0_124, %c129_125] : memref<64x512xf32, #tpu.memory_space<vmem>>, vector<32x256xf32>
    %cst_126 = arith.constant 0.000000e+00 : f32
    %154 = vector.broadcast %cst_126 : f32 to vector<32x256xf32>
    %155 = vector.shape_cast %19 : vector<1x256xi1> to vector<1x256xi1>
    %156 = vector.broadcast %155 : vector<1x256xi1> to vector<32x256xi1>
    %157 = arith.select %156, %153, %154 : vector<32x256xi1>, vector<32x256xf32>
    %c160 = arith.constant 160 : index
    %c0_127 = arith.constant 0 : index
    %158 = vector.load %arg13[%c160, %c0_127] : memref<288x512xf32, #tpu.memory_space<vmem>>, vector<32x256xf32>
    tpu.vector_store %arg13[%c160, %c0_127], %157 {strides = array<i32>} : memref<288x512xf32, #tpu.memory_space<vmem>>, vector<32x256xf32>,
    %c0_128 = arith.constant 0 : index
    %c143_129 = arith.constant 143 : index
    %159 = vector.load %arg11[%c0_128, %c143_129] : memref<64x512xf32, #tpu.memory_space<vmem>>, vector<32x256xf32>
    %cst_130 = arith.constant 0.000000e+00 : f32
    %160 = vector.broadcast %cst_130 : f32 to vector<32x256xf32>
    %161 = vector.shape_cast %17 : vector<1x256xi1> to vector<1x256xi1>
    %162 = vector.broadcast %161 : vector<1x256xi1> to vector<32x256xi1>
    %163 = arith.select %162, %159, %160 : vector<32x256xi1>, vector<32x256xf32>
    %c192 = arith.constant 192 : index
    %c0_131 = arith.constant 0 : index
    %164 = vector.load %arg13[%c192, %c0_131] : memref<288x512xf32, #tpu.memory_space<vmem>>, vector<32x256xf32>
    tpu.vector_store %arg13[%c192, %c0_131], %163 {strides = array<i32>} : memref<288x512xf32, #tpu.memory_space<vmem>>, vector<32x256xf32>,
    %c0_132 = arith.constant 0 : index
    %c144_133 = arith.constant 144 : index
    %165 = vector.load %arg11[%c0_132, %c144_133] : memref<64x512xf32, #tpu.memory_space<vmem>>, vector<32x256xf32>
    %c224 = arith.constant 224 : index
    %c0_134 = arith.constant 0 : index
    %166 = vector.load %arg13[%c224, %c0_134] : memref<288x512xf32, #tpu.memory_space<vmem>>, vector<32x256xf32>
    tpu.vector_store %arg13[%c224, %c0_134], %165 {strides = array<i32>} : memref<288x512xf32, #tpu.memory_space<vmem>>, vector<32x256xf32>,
    %c0_135 = arith.constant 0 : index
    %c145_136 = arith.constant 145 : index
    %167 = vector.load %arg11[%c0_135, %c145_136] : memref<64x512xf32, #tpu.memory_space<vmem>>, vector<32x256xf32>
    %cst_137 = arith.constant 0.000000e+00 : f32
    %168 = vector.broadcast %cst_137 : f32 to vector<32x256xf32>
    %169 = vector.shape_cast %19 : vector<1x256xi1> to vector<1x256xi1>
    %170 = vector.broadcast %169 : vector<1x256xi1> to vector<32x256xi1>
    %171 = arith.select %170, %167, %168 : vector<32x256xi1>, vector<32x256xf32>
    %c256_138 = arith.constant 256 : index
    %c0_139 = arith.constant 0 : index
    %172 = vector.load %arg13[%c256_138, %c0_139] : memref<288x512xf32, #tpu.memory_space<vmem>>, vector<32x256xf32>
    tpu.vector_store %arg13[%c256_138, %c0_139], %171 {strides = array<i32>} : memref<288x512xf32, #tpu.memory_space<vmem>>, vector<32x256xf32>,
    %c32_140 = arith.constant 32 : index
    %c111_141 = arith.constant 111 : index
    %173 = vector.load %arg11[%c32_140, %c111_141] : memref<64x512xf32, #tpu.memory_space<vmem>>, vector<32x256xf32>
    %cst_142 = arith.constant 0.000000e+00 : f32
    %174 = vector.broadcast %cst_142 : f32 to vector<32x256xf32>
    %175 = vector.shape_cast %17 : vector<1x256xi1> to vector<1x256xi1>
    %176 = vector.broadcast %175 : vector<1x256xi1> to vector<32x256xi1>
    %177 = arith.select %176, %173, %174 : vector<32x256xi1>, vector<32x256xf32>
    %c0_143 = arith.constant 0 : index
    %c256_144 = arith.constant 256 : index
    %178 = vector.load %arg13[%c0_143, %c256_144] : memref<288x512xf32, #tpu.memory_space<vmem>>, vector<32x256xf32>
    tpu.vector_store %arg13[%c0_143, %c256_144], %177 {strides = array<i32>} : memref<288x512xf32, #tpu.memory_space<vmem>>, vector<32x256xf32>,
    %c32_145 = arith.constant 32 : index
    %c112_146 = arith.constant 112 : index
    %179 = vector.load %arg11[%c32_145, %c112_146] : memref<64x512xf32, #tpu.memory_space<vmem>>, vector<32x256xf32>
    %c32_147 = arith.constant 32 : index
    %c256_148 = arith.constant 256 : index
    %180 = vector.load %arg13[%c32_147, %c256_148] : memref<288x512xf32, #tpu.memory_space<vmem>>, vector<32x256xf32>
    tpu.vector_store %arg13[%c32_147, %c256_148], %179 {strides = array<i32>} : memref<288x512xf32, #tpu.memory_space<vmem>>, vector<32x256xf32>,
    %c32_149 = arith.constant 32 : index
    %c113_150 = arith.constant 113 : index
    %181 = vector.load %arg11[%c32_149, %c113_150] : memref<64x512xf32, #tpu.memory_space<vmem>>, vector<32x256xf32>
    %cst_151 = arith.constant 0.000000e+00 : f32
    %182 = vector.broadcast %cst_151 : f32 to vector<32x256xf32>
    %183 = vector.shape_cast %19 : vector<1x256xi1> to vector<1x256xi1>
    %184 = vector.broadcast %183 : vector<1x256xi1> to vector<32x256xi1>
    %185 = arith.select %184, %181, %182 : vector<32x256xi1>, vector<32x256xf32>
    %c64_152 = arith.constant 64 : index
    %c256_153 = arith.constant 256 : index
    %186 = vector.load %arg13[%c64_152, %c256_153] : memref<288x512xf32, #tpu.memory_space<vmem>>, vector<32x256xf32>
    tpu.vector_store %arg13[%c64_152, %c256_153], %185 {strides = array<i32>} : memref<288x512xf32, #tpu.memory_space<vmem>>, vector<32x256xf32>,
    %c32_154 = arith.constant 32 : index
    %c127_155 = arith.constant 127 : index
    %187 = vector.load %arg11[%c32_154, %c127_155] : memref<64x512xf32, #tpu.memory_space<vmem>>, vector<32x256xf32>
    %cst_156 = arith.constant 0.000000e+00 : f32
    %188 = vector.broadcast %cst_156 : f32 to vector<32x256xf32>
    %189 = vector.shape_cast %17 : vector<1x256xi1> to vector<1x256xi1>
    %190 = vector.broadcast %189 : vector<1x256xi1> to vector<32x256xi1>
    %191 = arith.select %190, %187, %188 : vector<32x256xi1>, vector<32x256xf32>
    %c96_157 = arith.constant 96 : index
    %c256_158 = arith.constant 256 : index
    %192 = vector.load %arg13[%c96_157, %c256_158] : memref<288x512xf32, #tpu.memory_space<vmem>>, vector<32x256xf32>
    tpu.vector_store %arg13[%c96_157, %c256_158], %191 {strides = array<i32>} : memref<288x512xf32, #tpu.memory_space<vmem>>, vector<32x256xf32>,
    %c32_159 = arith.constant 32 : index
    %c128_160 = arith.constant 128 : index
    %193 = vector.load %arg11[%c32_159, %c128_160] : memref<64x512xf32, #tpu.memory_space<vmem>>, vector<32x256xf32>
    %c128_161 = arith.constant 128 : index
    %c256_162 = arith.constant 256 : index
    %194 = vector.load %arg13[%c128_161, %c256_162] : memref<288x512xf32, #tpu.memory_space<vmem>>, vector<32x256xf32>
    tpu.vector_store %arg13[%c128_161, %c256_162], %193 {strides = array<i32>} : memref<288x512xf32, #tpu.memory_space<vmem>>, vector<32x256xf32>,
    %c32_163 = arith.constant 32 : index
    %c129_164 = arith.constant 129 : index
    %195 = vector.load %arg11[%c32_163, %c129_164] : memref<64x512xf32, #tpu.memory_space<vmem>>, vector<32x256xf32>
    %cst_165 = arith.constant 0.000000e+00 : f32
    %196 = vector.broadcast %cst_165 : f32 to vector<32x256xf32>
    %197 = vector.shape_cast %19 : vector<1x256xi1> to vector<1x256xi1>
    %198 = vector.broadcast %197 : vector<1x256xi1> to vector<32x256xi1>
    %199 = arith.select %198, %195, %196 : vector<32x256xi1>, vector<32x256xf32>
    %c160_166 = arith.constant 160 : index
    %c256_167 = arith.constant 256 : index
    %200 = vector.load %arg13[%c160_166, %c256_167] : memref<288x512xf32, #tpu.memory_space<vmem>>, vector<32x256xf32>
    tpu.vector_store %arg13[%c160_166, %c256_167], %199 {strides = array<i32>} : memref<288x512xf32, #tpu.memory_space<vmem>>, vector<32x256xf32>,
    %c32_168 = arith.constant 32 : index
    %c143_169 = arith.constant 143 : index
    %201 = vector.load %arg11[%c32_168, %c143_169] : memref<64x512xf32, #tpu.memory_space<vmem>>, vector<32x256xf32>
    %cst_170 = arith.constant 0.000000e+00 : f32
    %202 = vector.broadcast %cst_170 : f32 to vector<32x256xf32>
    %203 = vector.shape_cast %17 : vector<1x256xi1> to vector<1x256xi1>
    %204 = vector.broadcast %203 : vector<1x256xi1> to vector<32x256xi1>
    %205 = arith.select %204, %201, %202 : vector<32x256xi1>, vector<32x256xf32>
    %c192_171 = arith.constant 192 : index
    %c256_172 = arith.constant 256 : index
    %206 = vector.load %arg13[%c192_171, %c256_172] : memref<288x512xf32, #tpu.memory_space<vmem>>, vector<32x256xf32>
    tpu.vector_store %arg13[%c192_171, %c256_172], %205 {strides = array<i32>} : memref<288x512xf32, #tpu.memory_space<vmem>>, vector<32x256xf32>,
    %c32_173 = arith.constant 32 : index
    %c144_174 = arith.constant 144 : index
    %207 = vector.load %arg11[%c32_173, %c144_174] : memref<64x512xf32, #tpu.memory_space<vmem>>, vector<32x256xf32>
    %c224_175 = arith.constant 224 : index
    %c256_176 = arith.constant 256 : index
    %208 = vector.load %arg13[%c224_175, %c256_176] : memref<288x512xf32, #tpu.memory_space<vmem>>, vector<32x256xf32>
    tpu.vector_store %arg13[%c224_175, %c256_176], %207 {strides = array<i32>} : memref<288x512xf32, #tpu.memory_space<vmem>>, vector<32x256xf32>,
    %c32_177 = arith.constant 32 : index
    %c145_178 = arith.constant 145 : index
    %209 = vector.load %arg11[%c32_177, %c145_178] : memref<64x512xf32, #tpu.memory_space<vmem>>, vector<32x256xf32>
    %cst_179 = arith.constant 0.000000e+00 : f32
    %210 = vector.broadcast %cst_179 : f32 to vector<32x256xf32>
    %211 = vector.shape_cast %19 : vector<1x256xi1> to vector<1x256xi1>
    %212 = vector.broadcast %211 : vector<1x256xi1> to vector<32x256xi1>
    %213 = arith.select %212, %209, %210 : vector<32x256xi1>, vector<32x256xf32>
    %c256_180 = arith.constant 256 : index
    %c256_181 = arith.constant 256 : index
    %214 = vector.load %arg13[%c256_180, %c256_181] : memref<288x512xf32, #tpu.memory_space<vmem>>, vector<32x256xf32>
    tpu.vector_store %arg13[%c256_180, %c256_181], %213 {strides = array<i32>} : memref<288x512xf32, #tpu.memory_space<vmem>>, vector<32x256xf32>,
    %c0_182 = arith.constant 0 : index
    %c0_183 = arith.constant 0 : index
    %215 = vector.load %arg6[%c0_182, %c0_183] : memref<4x288xf32, #tpu.memory_space<vmem>>, vector<4x288xf32>
    %c0_184 = arith.constant 0 : index
    %c0_185 = arith.constant 0 : index
    %216 = vector.load %arg13[%c0_184, %c0_185] : memref<288x512xf32, #tpu.memory_space<vmem>>, vector<288x512xf32>
    %cst_186 = arith.constant dense<0.000000e+00> : vector<4x512xf32>
    %217 = tpu.matmul %215, %216, %cst_186 {dimension_numbers = #tpu.dot_dimension_numbers<[1], [0], [0], [1], [0, 0, 1, 1], [], []>} : vector<4x288xf32>, vector<288x512xf32>, vector<4x512xf32> -> vector<4x512xf32>
    %c0_187 = arith.constant 0 : index
    %c0_188 = arith.constant 0 : index
    %218 = vector.load %arg7[%c0_187, %c0_188] : memref<4x1xf32, #tpu.memory_space<vmem>>, vector<4x1xf32>
    %219 = vector.broadcast %218 : vector<4x1xf32> to vector<4x512xf32>
    %220 = arith.addf %217, %219 : vector<4x512xf32>
    %221 = vector.extract_strided_slice %220 {offsets = [0, 0], sizes = [4, 256], strides = [1, 1]} : vector<4x512xf32> to vector<4x256xf32>
    %c0_189 = arith.constant 0 : index
    %c0_190 = arith.constant 0 : index
    %222 = vector.load %arg9[%c0_189, %c0_190] : memref<8x256xf32, #tpu.memory_space<vmem>>, vector<4x256xf32>
    tpu.vector_store %arg9[%c0_189, %c0_190], %221 {strides = array<i32>} : memref<8x256xf32, #tpu.memory_space<vmem>>, vector<4x256xf32>,
    %223 = vector.extract_strided_slice %220 {offsets = [0, 256], sizes = [4, 256], strides = [1, 1]} : vector<4x512xf32> to vector<4x256xf32>
    %c4_191 = arith.constant 4 : index
    %c0_192 = arith.constant 0 : index
    %224 = vector.load %arg9[%c4_191, %c0_192] : memref<8x256xf32, #tpu.memory_space<vmem>>, vector<4x256xf32>
    tpu.vector_store %arg9[%c4_191, %c0_192], %223 {strides = array<i32>} : memref<8x256xf32, #tpu.memory_space<vmem>>, vector<4x256xf32>,
    return
  }
}

</mosaic_0001>

<llo_original>
// kernel: ncsn_forward.1
$region0: #{ncsn_forward.1}
  #allocation0 [shape = 'u32[]', space=smem, size = 0x4, offset = 0x4, fixed_abs, tag = 'smem constant byte address 0x4 - core index']
  #allocation1 [shape = 'u32[144,128]{1,0:T(1,128)}', space=vmem, size = 0x12000, scoped, tag = 'internal scratch']
  #allocation2 [shape = 'f32[8,512]{1,0:T(8,128)}', space=vmem, size = 0x4000, scoped, tag = 'scratch operand']
  #allocation3 [shape = 'f32[64,512]{1,0:T(8,128)}', space=vmem, size = 0x20000, scoped, tag = 'scratch operand']
  #allocation4 [shape = 'f32[36,512]{1,0:T(8,128)}', space=vmem, size = 0x14000, scoped, tag = 'scratch operand']
  #allocation5 [shape = 'f32[288,512]{1,0:T(8,128)}', space=vmem, size = 0x90000, scoped, tag = 'scratch operand']
  %s0 = inlined_call_operand.vmem [shape: f32[32,2], index: 0, kind: input, shape index: {}]
  %s1 = inlined_call_operand.vmem [shape: f32[32,32], index: 1, kind: input, shape index: {}]
  %s2 = inlined_call_operand.vmem [shape: f32[32,1], index: 2, kind: input, shape index: {}]
  %s3 = inlined_call_operand.vmem [shape: f32[32,32], index: 3, kind: input, shape index: {}]
  %s4 = inlined_call_operand.vmem [shape: f32[32,1], index: 4, kind: input, shape index: {}]
  %s5 = inlined_call_operand.vmem [shape: f32[32,36], index: 5, kind: input, shape index: {}]
  %s6 = inlined_call_operand.vmem [shape: f32[4,288], index: 6, kind: input, shape index: {}]
  %s7 = inlined_call_operand.vmem [shape: f32[4,1], index: 7, kind: input, shape index: {}]
  %s8 = inlined_call_operand.vmem [shape: f32[8,256], index: 8, kind: input, shape index: {}]
  %s9 = inlined_call_operand.vmem [shape: f32[8,256], index: 9, kind: output, shape index: {}]
  %s10 = sld [smem:[#allocation0]]
  $region46: #{ncsn_forward.1} parent=0
    _
  %s12 = ssub.s32 1, %s10
  %s13 = scalar_select 0, %s12, %s10
  // Predicated region
  $region2: #{ncsn_forward.1} parent=0 // pred_check
    _
  $region3: #{ncsn_forward.1} parent=0 // pred_check_branch
    %15 = sbr.rel (0) target = $region5
  $region4: #{ncsn_forward.1} parent=0 // pred_region
    _
  $region5: #{ncsn_forward.1} parent=0 // pred_fallthru
    _
  // Predicated region
  $region6: #{ncsn_forward.1} parent=0 // pred_check
    _
  $region7: #{ncsn_forward.1} parent=0 // pred_check_branch
    %17 = sbr.rel (0) target = $region9
  $region8: #{ncsn_forward.1} parent=0 // pred_region
    _
  $region9: #{ncsn_forward.1} parent=0 // pred_fallthru
    _
  // Predicated region
  $region10: #{ncsn_forward.1} parent=0 // pred_check
    _
  $region11: #{ncsn_forward.1} parent=0 // pred_check_branch
    %19 = sbr.rel (0) target = $region13
  $region12: #{ncsn_forward.1} parent=0 // pred_region
    _
  $region13: #{ncsn_forward.1} parent=0 // pred_fallthru
    _
  // Predicated region
  $region14: #{ncsn_forward.1} parent=0 // pred_check
    _
  $region15: #{ncsn_forward.1} parent=0 // pred_check_branch
    %21 = sbr.rel (0) target = $region17
  $region16: #{ncsn_forward.1} parent=0 // pred_region
    _
  $region17: #{ncsn_forward.1} parent=0 // pred_fallthru
    _
  // Predicated region
  $region18: #{ncsn_forward.1} parent=0 // pred_check
    _
  $region19: #{ncsn_forward.1} parent=0 // pred_check_branch
    %23 = sbr.rel (0) target = $region21
  $region20: #{ncsn_forward.1} parent=0 // pred_region
    _
  $region21: #{ncsn_forward.1} parent=0 // pred_fallthru
    _
  // Predicated region
  $region22: #{ncsn_forward.1} parent=0 // pred_check
    _
  $region23: #{ncsn_forward.1} parent=0 // pred_check_branch
    %25 = sbr.rel (0) target = $region25
  $region24: #{ncsn_forward.1} parent=0 // pred_region
    _
  $region25: #{ncsn_forward.1} parent=0 // pred_fallthru
    _
  // Predicated region
  $region26: #{ncsn_forward.1} parent=0 // pred_check
    _
  $region27: #{ncsn_forward.1} parent=0 // pred_check_branch
    %27 = sbr.rel (0) target = $region29
  $region28: #{ncsn_forward.1} parent=0 // pred_region
    _
  $region29: #{ncsn_forward.1} parent=0 // pred_fallthru
    _
  // Predicated region
  $region30: #{ncsn_forward.1} parent=0 // pred_check
    _
  $region31: #{ncsn_forward.1} parent=0 // pred_check_branch
    %29 = sbr.rel (0) target = $region33
  $region32: #{ncsn_forward.1} parent=0 // pred_region
    _
  $region33: #{ncsn_forward.1} parent=0 // pred_fallthru
    _
  // Predicated region
  $region34: #{ncsn_forward.1} parent=0 // pred_check
    _
  $region35: #{ncsn_forward.1} parent=0 // pred_check_branch
    %31 = sbr.rel (0) target = $region37
  $region36: #{ncsn_forward.1} parent=0 // pred_region
    _
  $region37: #{ncsn_forward.1} parent=0 // pred_fallthru
    _
  %v32 = vld [vmem:[%s1] sm:$0xff]
  %v33 = vld [vmem:[%s1 + $0x8] sm:$0xff]
  %v34 = vld [vmem:[%s1 + $0x10] sm:$0xff]
  %v35 = vld [vmem:[%s1 + $0x18] sm:$0xff]
  %v36 = vld [vmem:[%s0] sm:$0xff]
  %v37 = vld [vmem:[%s0 + $0x8] sm:$0xff]
  %v38 = vld [vmem:[%s0 + $0x10] sm:$0xff]
  %v39 = vld [vmem:[%s0 + $0x18] sm:$0xff]
  %v40 = vld [vmem:[%s2] sm:$0xff]
  %v41 = vld [vmem:[%s2 + $0x8] sm:$0xff]
  %v42 = vld [vmem:[%s2 + $0x10] sm:$0xff]
  %v43 = vld [vmem:[%s2 + $0x18] sm:$0xff]
  %45 = vset.pattern.permute.xlu0 0
  %46 = vperm.xlu0 %45, %v40
  %v47 = vpop.permute.xlu0 %46
  %50 = vset.pattern.permute.xlu0 0
  %51 = vperm.xlu0 %50, %v41
  %v52 = vpop.permute.xlu0 %51
  %55 = vset.pattern.permute.xlu0 0
  %56 = vperm.xlu0 %55, %v42
  %v57 = vpop.permute.xlu0 %56
  %60 = vset.pattern.permute.xlu0 0
  %61 = vperm.xlu0 %60, %v43
  %v62 = vpop.permute.xlu0 %61
  %vm64 = vcmask 261120
  %v66 = vsel %vm64, %v32, 0
  %v69 = vsel %vm64, %v33, 0
  %v72 = vsel %vm64, %v34, 0
  %v75 = vsel %vm64, %v35, 0
  %77 = vmatprep.subr.mxu0 0.0
  %78 = vmatpush1.msra.mxu0 %v36
  %79 = vmatprep.subr.mxu0 0.0
  %80 = vmatpush1.msra.mxu0 %v37
  %81 = vmatprep.subr.mxu0 0.0
  %82 = vmatpush1.msra.mxu0 %v38
  %83 = vmatprep.subr.mxu0 0.0
  %84 = vmatpush1.msra.mxu0 %v39
  %85 = vmatprep.subr.mxu0 0.0
  %86 = vmatpush1.msra.mxu0 0.0
  %87 = vmatprep.subr.mxu0 0.0
  %88 = vmatpush1.msra.mxu0 0.0
  %89 = vmatprep.subr.mxu0 0.0
  %90 = vmatpush1.msra.mxu0 0.0
  %91 = vmatprep.subr.mxu0 0.0
  %92 = vmatpush1.msra.mxu0 0.0
  %93 = vmatprep.subr.mxu0 0.0
  %94 = vmatpush1.msra.mxu0 0.0
  %95 = vmatprep.subr.mxu0 0.0
  %96 = vmatpush1.msra.mxu0 0.0
  %97 = vmatprep.subr.mxu0 0.0
  %98 = vmatpush1.msra.mxu0 0.0
  %99 = vmatprep.subr.mxu0 0.0
  %100 = vmatpush1.msra.mxu0 0.0
  %101 = vmatprep.subr.mxu0 0.0
  %102 = vmatpush1.msra.mxu0 0.0
  %103 = vmatprep.subr.mxu0 0.0
  %104 = vmatpush1.msra.mxu0 0.0
  %105 = vmatprep.subr.mxu0 0.0
  %106 = vmatpush1.msra.mxu0 0.0
  %107 = vmatprep.subr.mxu0 0.0
  %108 = vmatpush1.msra.mxu0 0.0
  %109 = vmatprep.subr.mxu0 0.0
  %110 = vmatpush1.msra.mxu0 0.0
  %111 = vmatprep.subr.mxu0 0.0
  %112 = vmatpush1.msra.mxu0 0.0
  %113 = vmatprep.subr.mxu0 0.0
  %114 = vmatpush1.msra.mxu0 0.0
  %115 = vmatprep.subr.mxu0 0.0
  %116 = vmatpush1.msra.mxu0 0.0
  %117 = vmatprep.subr.mxu0 0.0
  %118 = vmatpush1.msra.mxu0 0.0
  %119 = vmatprep.subr.mxu0 0.0
  %120 = vmatpush1.msra.mxu0 0.0
  %121 = vmatprep.subr.mxu0 0.0
  %122 = vmatpush1.msra.mxu0 0.0
  %123 = vmatprep.subr.mxu0 0.0
  %124 = vmatpush1.msra.mxu0 0.0
  %125 = vmatprep.subr.mxu0 0.0
  %126 = vmatpush1.msra.mxu0 0.0
  %127 = vmatprep.subr.mxu0 0.0
  %128 = vmatpush1.msra.mxu0 0.0
  %129 = vmatprep.subr.mxu0 0.0
  %130 = vmatpush1.msra.mxu0 0.0
  %131 = vmatprep.subr.mxu0 0.0
  %132 = vmatpush1.msra.mxu0 0.0
  %133 = vmatprep.subr.mxu0 0.0
  %134 = vmatpush1.msra.mxu0 0.0
  %135 = vmatprep.subr.mxu0 0.0
  %136 = vmatpush1.msra.mxu0 0.0
  %137 = vmatprep.subr.mxu0 0.0
  %138 = vmatpush1.msra.mxu0 0.0
  %139 = vmatprep.subr.mxu0 0.0
  %140 = vmatpush1.msra.mxu0 0.0
  %141 = vmatprep.mubr.f32.mxu0 0.0
  %142 = vmatmul.mubr.f32.gmra.mrb[0].mxu0 %v66
  %v143 = vpop.f32.mrb[0].mxu0
  %v144 = vadd.f32 %v47, %v143
  %v145 = vpop.f32.mrb[0].mxu0
  %146 = vmatprep.mubr.f32.mxu0 0.0
  %147 = vmatmul.mubr.f32.gmra.mrb[0].mxu0 %v69
  %v148 = vpop.f32.mrb[0].mxu0
  %v149 = vadd.f32 %v52, %v148
  %v150 = vpop.f32.mrb[0].mxu0
  %151 = vmatprep.mubr.f32.mxu0 0.0
  %152 = vmatmul.mubr.f32.gmra.mrb[0].mxu0 %v72
  %v153 = vpop.f32.mrb[0].mxu0
  %v154 = vadd.f32 %v57, %v153
  %v155 = vpop.f32.mrb[0].mxu0
  %156 = vmatprep.mubr.f32.mxu0 0.0
  %157 = vmatmul.mubr.f32.gmra.mrb[0].mxu0 %v75
  %v158 = vpop.f32.mrb[0].mxu0
  %v159 = vadd.f32 %v62, %v158
  %v160 = vpop.f32.mrb[0].mxu0
  %161 = vdwg.mxu0
  %v162 = vmax.f32 %v144, 0.0
  %v163 = vmax.f32 %v149, 0.0
  %v164 = vmax.f32 %v154, 0.0
  %v165 = vmax.f32 %v159, 0.0
  %v166 = vld [vmem:[%s3] sm:$0xff]
  %v167 = vld [vmem:[%s3 + $0x8] sm:$0xff]
  %v168 = vld [vmem:[%s3 + $0x10] sm:$0xff]
  %v169 = vld [vmem:[%s3 + $0x18] sm:$0xff]
  %v170 = vld [vmem:[%s4] sm:$0xff]
  %v171 = vld [vmem:[%s4 + $0x8] sm:$0xff]
  %v172 = vld [vmem:[%s4 + $0x10] sm:$0xff]
  %v173 = vld [vmem:[%s4 + $0x18] sm:$0xff]
  %175 = vset.pattern.permute.xlu0 0
  %176 = vperm.xlu0 %175, %v170
  %v177 = vpop.permute.xlu0 %176
  %180 = vset.pattern.permute.xlu0 0
  %181 = vperm.xlu0 %180, %v171
  %v182 = vpop.permute.xlu0 %181
  %185 = vset.pattern.permute.xlu0 0
  %186 = vperm.xlu0 %185, %v172
  %v187 = vpop.permute.xlu0 %186
  %190 = vset.pattern.permute.xlu0 0
  %191 = vperm.xlu0 %190, %v173
  %v192 = vpop.permute.xlu0 %191
  %v195 = vsel %vm64, %v166, 0
  %v198 = vsel %vm64, %v167, 0
  %v201 = vsel %vm64, %v168, 0
  %v204 = vsel %vm64, %v169, 0
  %206 = vmatprep.subr.mxu0 0.0
  %207 = vmatpush1.msra.mxu0 %v162
  %208 = vmatprep.subr.mxu0 0.0
  %209 = vmatpush1.msra.mxu0 %v163
  %210 = vmatprep.subr.mxu0 0.0
  %211 = vmatpush1.msra.mxu0 %v164
  %212 = vmatprep.subr.mxu0 0.0
  %213 = vmatpush1.msra.mxu0 %v165
  %214 = vmatprep.subr.mxu0 0.0
  %215 = vmatpush1.msra.mxu0 0.0
  %216 = vmatprep.subr.mxu0 0.0
  %217 = vmatpush1.msra.mxu0 0.0
  %218 = vmatprep.subr.mxu0 0.0
  %219 = vmatpush1.msra.mxu0 0.0
  %220 = vmatprep.subr.mxu0 0.0
  %221 = vmatpush1.msra.mxu0 0.0
  %222 = vmatprep.subr.mxu0 0.0
  %223 = vmatpush1.msra.mxu0 0.0
  %224 = vmatprep.subr.mxu0 0.0
  %225 = vmatpush1.msra.mxu0 0.0
  %226 = vmatprep.subr.mxu0 0.0
  %227 = vmatpush1.msra.mxu0 0.0
  %228 = vmatprep.subr.mxu0 0.0
  %229 = vmatpush1.msra.mxu0 0.0
  %230 = vmatprep.subr.mxu0 0.0
  %231 = vmatpush1.msra.mxu0 0.0
  %232 = vmatprep.subr.mxu0 0.0
  %233 = vmatpush1.msra.mxu0 0.0
  %234 = vmatprep.subr.mxu0 0.0
  %235 = vmatpush1.msra.mxu0 0.0
  %236 = vmatprep.subr.mxu0 0.0
  %237 = vmatpush1.msra.mxu0 0.0
  %238 = vmatprep.subr.mxu0 0.0
  %239 = vmatpush1.msra.mxu0 0.0
  %240 = vmatprep.subr.mxu0 0.0
  %241 = vmatpush1.msra.mxu0 0.0
  %242 = vmatprep.subr.mxu0 0.0
  %243 = vmatpush1.msra.mxu0 0.0
  %244 = vmatprep.subr.mxu0 0.0
  %245 = vmatpush1.msra.mxu0 0.0
  %246 = vmatprep.subr.mxu0 0.0
  %247 = vmatpush1.msra.mxu0 0.0
  %248 = vmatprep.subr.mxu0 0.0
  %249 = vmatpush1.msra.mxu0 0.0
  %250 = vmatprep.subr.mxu0 0.0
  %251 = vmatpush1.msra.mxu0 0.0
  %252 = vmatprep.subr.mxu0 0.0
  %253 = vmatpush1.msra.mxu0 0.0
  %254 = vmatprep.subr.mxu0 0.0
  %255 = vmatpush1.msra.mxu0 0.0
  %256 = vmatprep.subr.mxu0 0.0
  %257 = vmatpush1.msra.mxu0 0.0
  %258 = vmatprep.subr.mxu0 0.0
  %259 = vmatpush1.msra.mxu0 0.0
  %260 = vmatprep.subr.mxu0 0.0
  %261 = vmatpush1.msra.mxu0 0.0
  %262 = vmatprep.subr.mxu0 0.0
  %263 = vmatpush1.msra.mxu0 0.0
  %264 = vmatprep.subr.mxu0 0.0
  %265 = vmatpush1.msra.mxu0 0.0
  %266 = vmatprep.subr.mxu0 0.0
  %267 = vmatpush1.msra.mxu0 0.0
  %268 = vmatprep.subr.mxu0 0.0
  %269 = vmatpush1.msra.mxu0 0.0
  %270 = vmatprep.mubr.f32.mxu0 0.0
  %271 = vmatmul.mubr.f32.gmra.mrb[0].mxu0 %v195
  %v272 = vpop.f32.mrb[0].mxu0
  %v273 = vadd.f32 %v177, %v272
  %v274 = vpop.f32.mrb[0].mxu0
  %275 = vmatprep.mubr.f32.mxu0 0.0
  %276 = vmatmul.mubr.f32.gmra.mrb[0].mxu0 %v198
  %v277 = vpop.f32.mrb[0].mxu0
  %v278 = vadd.f32 %v182, %v277
  %v279 = vpop.f32.mrb[0].mxu0
  %280 = vmatprep.mubr.f32.mxu0 0.0
  %281 = vmatmul.mubr.f32.gmra.mrb[0].mxu0 %v201
  %v282 = vpop.f32.mrb[0].mxu0
  %v283 = vadd.f32 %v187, %v282
  %v284 = vpop.f32.mrb[0].mxu0
  %285 = vmatprep.mubr.f32.mxu0 0.0
  %286 = vmatmul.mubr.f32.gmra.mrb[0].mxu0 %v204
  %v287 = vpop.f32.mrb[0].mxu0
  %v288 = vadd.f32 %v192, %v287
  %v289 = vpop.f32.mrb[0].mxu0
  %290 = vdwg.mxu0
  %v291 = vlaneseq
  %v292 = vand.u32 %v291, 127
  %v293 = vadd.s32 %v292, 128
  %v294 = vand.u32 %v292, 15
  %v295 = vand.u32 %v293, 15
  %vm296 = vcmp.ge.s32.totalorder %v294, 1
  %vm297 = vcmp.ge.s32.totalorder %v295, 1
  %vm298 = vcmp.le.s32.totalorder %v294, 14
  %vm299 = vcmp.le.s32.totalorder %v295, 14
  %300 = vst [vmem:[#allocation2] sm:$0xff] 0.0
  %301 = vst [vmem:[#allocation2 + $0x18] sm:$0xff] 0.0
  %302 = vst [vmem:[#allocation3] sm:$0xff] 0.0
  %303 = vst [vmem:[#allocation3 + $0x20] sm:$0xff] 0.0
  %304 = vst [vmem:[#allocation3 + $0x40] sm:$0xff] 0.0
  %305 = vst [vmem:[#allocation3 + $0x60] sm:$0xff] 0.0
  %306 = vst [vmem:[#allocation3 + $0x80] sm:$0xff] 0.0
  %307 = vst [vmem:[#allocation3 + $0xa0] sm:$0xff] 0.0
  %308 = vst [vmem:[#allocation3 + $0xc0] sm:$0xff] 0.0
  %309 = vst [vmem:[#allocation3 + $0xe0] sm:$0xff] 0.0
  %310 = vst [vmem:[#allocation3 + $0x18] sm:$0xff] 0.0
  %311 = vst [vmem:[#allocation3 + $0x38] sm:$0xff] 0.0
  %312 = vst [vmem:[#allocation3 + $0x58] sm:$0xff] 0.0
  %313 = vst [vmem:[#allocation3 + $0x78] sm:$0xff] 0.0
  %314 = vst [vmem:[#allocation3 + $0x98] sm:$0xff] 0.0
  %315 = vst [vmem:[#allocation3 + $0xb8] sm:$0xff] 0.0
  %316 = vst [vmem:[#allocation3 + $0xd8] sm:$0xff] 0.0
  %317 = vst [vmem:[#allocation3 + $0xf8] sm:$0xff] 0.0
  %v318 = vld [vmem:[%s8] sm:$0xff]
  %v319 = vld [vmem:[%s8 + $0x8] sm:$0xff]
  %320 = vst [vmem:[#allocation2 + $0x8] sm:$0xff] %v318
  %321 = vst [vmem:[#allocation2 + $0x10] sm:$0xff] %v319
  %v322 = vld [vmem:[#allocation2] sm:$0xf]
  %v323 = vld [vmem:[#allocation2 + $0x8] sm:$0xf]
  %v324 = vld [vmem:[#allocation2 + $0x10] sm:$0xf]
  %v325 = vsel %vm296, 1, 0
  %v326 = vsel %vm297, 1, 0
  %vm327 = vcmp.eq.s32.totalorder %v325, 1
  %vm328 = vcmp.eq.s32.totalorder %v326, 1
  %332 = vrot.lane.b32.xlu0 %v322, 17
  %v333 = vpop.permute.xlu0 %332
  %334 = vrot.lane.b32.xlu0 %v323, 17
  %v335 = vpop.permute.xlu0 %334
  %336 = vrot.lane.b32.xlu0 %v324, 17
  %v337 = vpop.permute.xlu0 %336
  %vm338 = vcmask 138240
  %v339 = vsel %vm338, %v333, %v335
  %v340 = vsel %vm338, %v335, %v337
  %v343 = vsel %vm327, %v339, 0.0
  %v344 = vsel %vm328, %v340, 0.0
  %345 = vst [vmem:[#allocation4] sm:$0xf] %v343
  %346 = vst [vmem:[#allocation4 + $0x8] sm:$0xf] %v344
  %v347 = vld [vmem:[#allocation2] sm:$0xf]
  %v348 = vld [vmem:[#allocation2 + $0x8] sm:$0xf]
  %v349 = vld [vmem:[#allocation2 + $0x10] sm:$0xf]
  %v353 = vrot.slane %v347, 4
  %v354 = vrot.slane %v348, 4
  %v355 = vrot.slane %v349, 4
  %356 = vrot.lane.b32.xlu0 %v353, 16
  %v357 = vpop.permute.xlu0 %356
  %358 = vrot.lane.b32.xlu0 %v354, 16
  %v359 = vpop.permute.xlu0 %358
  %360 = vrot.lane.b32.xlu0 %v355, 16
  %v361 = vpop.permute.xlu0 %360
  %vm362 = vcmask 130048
  %v363 = vsel %vm362, %v357, %v359
  %v364 = vsel %vm362, %v359, %v361
  %367 = vst [vmem:[#allocation4] sm:$0xf0] %v363
  %368 = vst [vmem:[#allocation4 + $0x8] sm:$0xf0] %v364
  %v369 = vld [vmem:[#allocation2] sm:$0xf]
  %v370 = vld [vmem:[#allocation2 + $0x8] sm:$0xf]
  %v371 = vld [vmem:[#allocation2 + $0x10] sm:$0xf]
  %v372 = vsel %vm298, 1, 0
  %v373 = vsel %vm299, 1, 0
  %vm374 = vcmp.eq.s32.totalorder %v372, 1
  %vm375 = vcmp.eq.s32.totalorder %v373, 1
  %379 = vrot.lane.b32.xlu0 %v369, 15
  %v380 = vpop.permute.xlu0 %379
  %381 = vrot.lane.b32.xlu0 %v370, 15
  %v382 = vpop.permute.xlu0 %381
  %383 = vrot.lane.b32.xlu0 %v371, 15
  %v384 = vpop.permute.xlu0 %383
  %vm385 = vcmask 121856
  %v386 = vsel %vm385, %v380, %v382
  %v387 = vsel %vm385, %v382, %v384
  %v390 = vsel %vm374, %v386, 0.0
  %v391 = vsel %vm375, %v387, 0.0
  %392 = vst [vmem:[#allocation4 + $0x20] sm:$0xf] %v390
  %393 = vst [vmem:[#allocation4 + $0x28] sm:$0xf] %v391
  %v394 = vld [vmem:[#allocation2] sm:$0xf]
  %v395 = vld [vmem:[#allocation2 + $0x8] sm:$0xf]
  %v396 = vld [vmem:[#allocation2 + $0x10] sm:$0xf]
  %400 = vrot.lane.b32.xlu0 %v394, 1
  %v401 = vpop.permute.xlu0 %400
  %402 = vrot.lane.b32.xlu0 %v395, 1
  %v403 = vpop.permute.xlu0 %402
  %404 = vrot.lane.b32.xlu0 %v396, 1
  %v405 = vpop.permute.xlu0 %404
  %vm406 = vcmask 7168
  %v407 = vsel %vm406, %v401, %v403
  %v408 = vsel %vm406, %v403, %v405
  %v411 = vsel %vm327, %v407, 0.0
  %v412 = vsel %vm328, %v408, 0.0
  %v415 = vrot.slane %v411, 4
  %v416 = vrot.slane %v412, 4
  %419 = vst [vmem:[#allocation4 + $0x20] sm:$0xf0] %v415
  %420 = vst [vmem:[#allocation4 + $0x28] sm:$0xf0] %v416
  %v421 = vld [vmem:[#allocation2 + $0x8] sm:$0xf]
  %v422 = vld [vmem:[#allocation2 + $0x10] sm:$0xf]
  %423 = vst [vmem:[#allocation4 + $0x40] sm:$0xf] %v421
  %424 = vst [vmem:[#allocation4 + $0x48] sm:$0xf] %v422
  %v425 = vld [vmem:[#allocation2 + $0x8] sm:$0xf]
  %v426 = vld [vmem:[#allocation2 + $0x10] sm:$0xf]
  %v427 = vld [vmem:[#allocation2 + $0x18] sm:$0xf]
  %431 = vrot.lane.b32.xlu0 %v425, 127
  %v432 = vpop.permute.xlu0 %431
  %433 = vrot.lane.b32.xlu0 %v426, 127
  %v434 = vpop.permute.xlu0 %433
  %435 = vrot.lane.b32.xlu0 %v427, 127
  %v436 = vpop.permute.xlu0 %435
  %vm437 = vcmask 1039360
  %v438 = vsel %vm437, %v432, %v434
  %v439 = vsel %vm437, %v434, %v436
  %v442 = vsel %vm374, %v438, 0.0
  %v443 = vsel %vm375, %v439, 0.0
  %v446 = vrot.slane %v442, 4
  %v447 = vrot.slane %v443, 4
  %450 = vst [vmem:[#allocation4 + $0x40] sm:$0xf0] %v446
  %451 = vst [vmem:[#allocation4 + $0x48] sm:$0xf0] %v447
  %v452 = vld [vmem:[#allocation2 + $0x8] sm:$0xf]
  %v453 = vld [vmem:[#allocation2 + $0x10] sm:$0xf]
  %v454 = vld [vmem:[#allocation2 + $0x18] sm:$0xf]
  %458 = vrot.lane.b32.xlu0 %v452, 113
  %v459 = vpop.permute.xlu0 %458
  %460 = vrot.lane.b32.xlu0 %v453, 113
  %v461 = vpop.permute.xlu0 %460
  %462 = vrot.lane.b32.xlu0 %v454, 113
  %v463 = vpop.permute.xlu0 %462
  %vm464 = vcmask 924672
  %v465 = vsel %vm464, %v459, %v461
  %v466 = vsel %vm464, %v461, %v463
  %v469 = vsel %vm327, %v465, 0.0
  %v470 = vsel %vm328, %v466, 0.0
  %471 = vst [vmem:[#allocation4 + $0x60] sm:$0xf] %v469
  %472 = vst [vmem:[#allocation4 + $0x68] sm:$0xf] %v470
  %v473 = vld [vmem:[#allocation2 + $0x8] sm:$0xf]
  %v474 = vld [vmem:[#allocation2 + $0x10] sm:$0xf]
  %v475 = vld [vmem:[#allocation2 + $0x18] sm:$0xf]
  %v479 = vrot.slane %v473, 4
  %v480 = vrot.slane %v474, 4
  %v481 = vrot.slane %v475, 4
  %482 = vrot.lane.b32.xlu0 %v479, 112
  %v483 = vpop.permute.xlu0 %482
  %484 = vrot.lane.b32.xlu0 %v480, 112
  %v485 = vpop.permute.xlu0 %484
  %486 = vrot.lane.b32.xlu0 %v481, 112
  %v487 = vpop.permute.xlu0 %486
  %vm488 = vcmask 916480
  %v489 = vsel %vm488, %v483, %v485
  %v490 = vsel %vm488, %v485, %v487
  %493 = vst [vmem:[#allocation4 + $0x60] sm:$0xf0] %v489
  %494 = vst [vmem:[#allocation4 + $0x68] sm:$0xf0] %v490
  %v495 = vld [vmem:[#allocation2 + $0x8] sm:$0xf]
  %v496 = vld [vmem:[#allocation2 + $0x10] sm:$0xf]
  %v497 = vld [vmem:[#allocation2 + $0x18] sm:$0xf]
  %501 = vrot.lane.b32.xlu0 %v495, 111
  %v502 = vpop.permute.xlu0 %501
  %503 = vrot.lane.b32.xlu0 %v496, 111
  %v504 = vpop.permute.xlu0 %503
  %505 = vrot.lane.b32.xlu0 %v497, 111
  %v506 = vpop.permute.xlu0 %505
  %vm507 = vcmask 908288
  %v508 = vsel %vm507, %v502, %v504
  %v509 = vsel %vm507, %v504, %v506
  %v512 = vsel %vm374, %v508, 0.0
  %v513 = vsel %vm375, %v509, 0.0
  %514 = vst [vmem:[#allocation4 + $0x80] sm:$0xf] %v512
  %515 = vst [vmem:[#allocation4 + $0x88] sm:$0xf] %v513
  %v516 = vld [vmem:[#allocation2] sm:$0xf0]
  %v517 = vld [vmem:[#allocation2 + $0x8] sm:$0xf0]
  %v518 = vld [vmem:[#allocation2 + $0x10] sm:$0xf0]
  %v522 = vrot.slane %v516, 4
  %v523 = vrot.slane %v517, 4
  %v524 = vrot.slane %v518, 4
  %525 = vrot.lane.b32.xlu0 %v522, 17
  %v526 = vpop.permute.xlu0 %525
  %527 = vrot.lane.b32.xlu0 %v523, 17
  %v528 = vpop.permute.xlu0 %527
  %529 = vrot.lane.b32.xlu0 %v524, 17
  %v530 = vpop.permute.xlu0 %529
  %v531 = vsel %vm338, %v526, %v528
  %v532 = vsel %vm338, %v528, %v530
  %v535 = vsel %vm327, %v531, 0.0
  %v536 = vsel %vm328, %v532, 0.0
  %537 = vst [vmem:[#allocation4 + $0x10] sm:$0xf] %v535
  %538 = vst [vmem:[#allocation4 + $0x18] sm:$0xf] %v536
  %v539 = vld [vmem:[#allocation2] sm:$0xf0]
  %v540 = vld [vmem:[#allocation2 + $0x8] sm:$0xf0]
  %v541 = vld [vmem:[#allocation2 + $0x10] sm:$0xf0]
  %545 = vrot.lane.b32.xlu0 %v539, 16
  %v546 = vpop.permute.xlu0 %545
  %547 = vrot.lane.b32.xlu0 %v540, 16
  %v548 = vpop.permute.xlu0 %547
  %549 = vrot.lane.b32.xlu0 %v541, 16
  %v550 = vpop.permute.xlu0 %549
  %v551 = vsel %vm362, %v546, %v548
  %v552 = vsel %vm362, %v548, %v550
  %555 = vst [vmem:[#allocation4 + $0x10] sm:$0xf0] %v551
  %556 = vst [vmem:[#allocation4 + $0x18] sm:$0xf0] %v552
  %v557 = vld [vmem:[#allocation2] sm:$0xf0]
  %v558 = vld [vmem:[#allocation2 + $0x8] sm:$0xf0]
  %v559 = vld [vmem:[#allocation2 + $0x10] sm:$0xf0]
  %v563 = vrot.slane %v557, 4
  %v564 = vrot.slane %v558, 4
  %v565 = vrot.slane %v559, 4
  %566 = vrot.lane.b32.xlu0 %v563, 15
  %v567 = vpop.permute.xlu0 %566
  %568 = vrot.lane.b32.xlu0 %v564, 15
  %v569 = vpop.permute.xlu0 %568
  %570 = vrot.lane.b32.xlu0 %v565, 15
  %v571 = vpop.permute.xlu0 %570
  %v572 = vsel %vm385, %v567, %v569
  %v573 = vsel %vm385, %v569, %v571
  %v576 = vsel %vm374, %v572, 0.0
  %v577 = vsel %vm375, %v573, 0.0
  %578 = vst [vmem:[#allocation4 + $0x30] sm:$0xf] %v576
  %579 = vst [vmem:[#allocation4 + $0x38] sm:$0xf] %v577
  %v580 = vld [vmem:[#allocation2] sm:$0xf0]
  %v581 = vld [vmem:[#allocation2 + $0x8] sm:$0xf0]
  %v582 = vld [vmem:[#allocation2 + $0x10] sm:$0xf0]
  %v586 = vrot.slane %v580, 4
  %v587 = vrot.slane %v581, 4
  %v588 = vrot.slane %v582, 4
  %589 = vrot.lane.b32.xlu0 %v586, 1
  %v590 = vpop.permute.xlu0 %589
  %591 = vrot.lane.b32.xlu0 %v587, 1
  %v592 = vpop.permute.xlu0 %591
  %593 = vrot.lane.b32.xlu0 %v588, 1
  %v594 = vpop.permute.xlu0 %593
  %v595 = vsel %vm406, %v590, %v592
  %v596 = vsel %vm406, %v592, %v594
  %v599 = vsel %vm327, %v595, 0.0
  %v600 = vsel %vm328, %v596, 0.0
  %v603 = vrot.slane %v599, 4
  %v604 = vrot.slane %v600, 4
  %607 = vst [vmem:[#allocation4 + $0x30] sm:$0xf0] %v603
  %608 = vst [vmem:[#allocation4 + $0x38] sm:$0xf0] %v604
  %v609 = vld [vmem:[#allocation2 + $0x8] sm:$0xf0]
  %v610 = vld [vmem:[#allocation2 + $0x10] sm:$0xf0]
  %v613 = vrot.slane %v609, 4
  %v614 = vrot.slane %v610, 4
  %617 = vst [vmem:[#allocation4 + $0x50] sm:$0xf] %v613
  %618 = vst [vmem:[#allocation4 + $0x58] sm:$0xf] %v614
  %v619 = vld [vmem:[#allocation2 + $0x8] sm:$0xf0]
  %v620 = vld [vmem:[#allocation2 + $0x10] sm:$0xf0]
  %v621 = vld [vmem:[#allocation2 + $0x18] sm:$0xf0]
  %v625 = vrot.slane %v619, 4
  %v626 = vrot.slane %v620, 4
  %v627 = vrot.slane %v621, 4
  %628 = vrot.lane.b32.xlu0 %v625, 127
  %v629 = vpop.permute.xlu0 %628
  %630 = vrot.lane.b32.xlu0 %v626, 127
  %v631 = vpop.permute.xlu0 %630
  %632 = vrot.lane.b32.xlu0 %v627, 127
  %v633 = vpop.permute.xlu0 %632
  %v634 = vsel %vm437, %v629, %v631
  %v635 = vsel %vm437, %v631, %v633
  %v638 = vsel %vm374, %v634, 0.0
  %v639 = vsel %vm375, %v635, 0.0
  %v642 = vrot.slane %v638, 4
  %v643 = vrot.slane %v639, 4
  %646 = vst [vmem:[#allocation4 + $0x50] sm:$0xf0] %v642
  %647 = vst [vmem:[#allocation4 + $0x58] sm:$0xf0] %v643
  %v648 = vld [vmem:[#allocation2 + $0x8] sm:$0xf0]
  %v649 = vld [vmem:[#allocation2 + $0x10] sm:$0xf0]
  %v650 = vld [vmem:[#allocation2 + $0x18] sm:$0xf0]
  %v654 = vrot.slane %v648, 4
  %v655 = vrot.slane %v649, 4
  %v656 = vrot.slane %v650, 4
  %657 = vrot.lane.b32.xlu0 %v654, 113
  %v658 = vpop.permute.xlu0 %657
  %659 = vrot.lane.b32.xlu0 %v655, 113
  %v660 = vpop.permute.xlu0 %659
  %661 = vrot.lane.b32.xlu0 %v656, 113
  %v662 = vpop.permute.xlu0 %661
  %v663 = vsel %vm464, %v658, %v660
  %v664 = vsel %vm464, %v660, %v662
  %v667 = vsel %vm327, %v663, 0.0
  %v668 = vsel %vm328, %v664, 0.0
  %669 = vst [vmem:[#allocation4 + $0x70] sm:$0xf] %v667
  %670 = vst [vmem:[#allocation4 + $0x78] sm:$0xf] %v668
  %v671 = vld [vmem:[#allocation2 + $0x8] sm:$0xf0]
  %v672 = vld [vmem:[#allocation2 + $0x10] sm:$0xf0]
  %v673 = vld [vmem:[#allocation2 + $0x18] sm:$0xf0]
  %677 = vrot.lane.b32.xlu0 %v671, 112
  %v678 = vpop.permute.xlu0 %677
  %679 = vrot.lane.b32.xlu0 %v672, 112
  %v680 = vpop.permute.xlu0 %679
  %681 = vrot.lane.b32.xlu0 %v673, 112
  %v682 = vpop.permute.xlu0 %681
  %v683 = vsel %vm488, %v678, %v680
  %v684 = vsel %vm488, %v680, %v682
  %687 = vst [vmem:[#allocation4 + $0x70] sm:$0xf0] %v683
  %688 = vst [vmem:[#allocation4 + $0x78] sm:$0xf0] %v684
  %v689 = vld [vmem:[#allocation2 + $0x8] sm:$0xf0]
  %v690 = vld [vmem:[#allocation2 + $0x10] sm:$0xf0]
  %v691 = vld [vmem:[#allocation2 + $0x18] sm:$0xf0]
  %v695 = vrot.slane %v689, 4
  %v696 = vrot.slane %v690, 4
  %v697 = vrot.slane %v691, 4
  %698 = vrot.lane.b32.xlu0 %v695, 111
  %v699 = vpop.permute.xlu0 %698
  %700 = vrot.lane.b32.xlu0 %v696, 111
  %v701 = vpop.permute.xlu0 %700
  %702 = vrot.lane.b32.xlu0 %v697, 111
  %v703 = vpop.permute.xlu0 %702
  %v704 = vsel %vm507, %v699, %v701
  %v705 = vsel %vm507, %v701, %v703
  %v708 = vsel %vm374, %v704, 0.0
  %v709 = vsel %vm375, %v705, 0.0
  %710 = vst [vmem:[#allocation4 + $0x90] sm:$0xf] %v708
  %711 = vst [vmem:[#allocation4 + $0x98] sm:$0xf] %v709
  %v712 = vld [vmem:[%s5] sm:$0xff]
  %v713 = vld [vmem:[%s5 + $0x8] sm:$0xff]
  %v714 = vld [vmem:[%s5 + $0x10] sm:$0xff]
  %v715 = vld [vmem:[%s5 + $0x18] sm:$0xff]
  %v716 = vld [vmem:[#allocation4] sm:$0xff]
  %v717 = vld [vmem:[#allocation4 + $0x8] sm:$0xff]
  %v718 = vld [vmem:[#allocation4 + $0x10] sm:$0xff]
  %v719 = vld [vmem:[#allocation4 + $0x18] sm:$0xff]
  %v720 = vld [vmem:[#allocation4 + $0x20] sm:$0xff]
  %v721 = vld [vmem:[#allocation4 + $0x28] sm:$0xff]
  %v722 = vld [vmem:[#allocation4 + $0x30] sm:$0xff]
  %v723 = vld [vmem:[#allocation4 + $0x38] sm:$0xff]
  %v724 = vld [vmem:[#allocation4 + $0x40] sm:$0xff]
  %v725 = vld [vmem:[#allocation4 + $0x48] sm:$0xff]
  %v726 = vld [vmem:[#allocation4 + $0x50] sm:$0xff]
  %v727 = vld [vmem:[#allocation4 + $0x58] sm:$0xff]
  %v728 = vld [vmem:[#allocation4 + $0x60] sm:$0xff]
  %v729 = vld [vmem:[#allocation4 + $0x68] sm:$0xff]
  %v730 = vld [vmem:[#allocation4 + $0x70] sm:$0xff]
  %v731 = vld [vmem:[#allocation4 + $0x78] sm:$0xff]
  %v732 = vld [vmem:[#allocation4 + $0x80] sm:$0xf]
  %v733 = vld [vmem:[#allocation4 + $0x88] sm:$0xf]
  %v734 = vld [vmem:[#allocation4 + $0x90] sm:$0xf]
  %v735 = vld [vmem:[#allocation4 + $0x98] sm:$0xf]
  %vm736 = vcmask 293888
  %v738 = vsel %vm736, %v712, 0
  %v741 = vsel %vm736, %v713, 0
  %v744 = vsel %vm736, %v714, 0
  %v747 = vsel %vm736, %v715, 0
  %vm749 = vcmask 1043456
  %v751 = vsel %vm749, %v732, 0
  %v754 = vsel %vm749, %v733, 0
  %v757 = vsel %vm749, %v734, 0
  %v760 = vsel %vm749, %v735, 0
  %762 = vmatprep.subr.mxu0 %v717
  %763 = vmatpush1.msra.mxu0 %v716
  %764 = vmatprep.subr.mxu0 %v721
  %765 = vmatpush1.msra.mxu0 %v720
  %766 = vmatprep.subr.mxu0 %v725
  %767 = vmatpush1.msra.mxu0 %v724
  %768 = vmatprep.subr.mxu0 %v729
  %769 = vmatpush1.msra.mxu0 %v728
  %770 = vmatprep.subr.mxu0 %v754
  %771 = vmatpush1.msra.mxu0 %v751
  %772 = vmatprep.subr.mxu0 0.0
  %773 = vmatpush1.msra.mxu0 0.0
  %774 = vmatprep.subr.mxu0 0.0
  %775 = vmatpush1.msra.mxu0 0.0
  %776 = vmatprep.subr.mxu0 0.0
  %777 = vmatpush1.msra.mxu0 0.0
  %778 = vmatprep.subr.mxu0 0.0
  %779 = vmatpush1.msra.mxu0 0.0
  %780 = vmatprep.subr.mxu0 0.0
  %781 = vmatpush1.msra.mxu0 0.0
  %782 = vmatprep.subr.mxu0 0.0
  %783 = vmatpush1.msra.mxu0 0.0
  %784 = vmatprep.subr.mxu0 0.0
  %785 = vmatpush1.msra.mxu0 0.0
  %786 = vmatprep.subr.mxu0 0.0
  %787 = vmatpush1.msra.mxu0 0.0
  %788 = vmatprep.subr.mxu0 0.0
  %789 = vmatpush1.msra.mxu0 0.0
  %790 = vmatprep.subr.mxu0 0.0
  %791 = vmatpush1.msra.mxu0 0.0
  %792 = vmatprep.subr.mxu0 0.0
  %793 = vmatpush1.msra.mxu0 0.0
  %794 = vmatprep.subr.mxu0 0.0
  %795 = vmatpush1.msra.mxu0 0.0
  %796 = vmatprep.subr.mxu0 0.0
  %797 = vmatpush1.msra.mxu0 0.0
  %798 = vmatprep.subr.mxu0 0.0
  %799 = vmatpush1.msra.mxu0 0.0
  %800 = vmatprep.subr.mxu0 0.0
  %801 = vmatpush1.msra.mxu0 0.0
  %802 = vmatprep.subr.mxu0 0.0
  %803 = vmatpush1.msra.mxu0 0.0
  %804 = vmatprep.subr.mxu0 0.0
  %805 = vmatpush1.msra.mxu0 0.0
  %806 = vmatprep.subr.mxu0 0.0
  %807 = vmatpush1.msra.mxu0 0.0
  %808 = vmatprep.subr.mxu0 0.0
  %809 = vmatpush1.msra.mxu0 0.0
  %810 = vmatprep.subr.mxu0 0.0
  %811 = vmatpush1.msra.mxu0 0.0
  %812 = vmatprep.subr.mxu0 0.0
  %813 = vmatpush1.msra.mxu0 0.0
  %814 = vmatprep.subr.mxu0 0.0
  %815 = vmatpush1.msra.mxu0 0.0
  %816 = vmatprep.subr.mxu0 0.0
  %817 = vmatpush1.msra.mxu0 0.0
  %818 = vmatprep.subr.mxu0 0.0
  %819 = vmatpush1.msra.mxu0 0.0
  %820 = vmatprep.subr.mxu0 0.0
  %821 = vmatpush1.msra.mxu0 0.0
  %822 = vmatprep.subr.mxu0 0.0
  %823 = vmatpush1.msra.mxu0 0.0
  %824 = vmatprep.subr.mxu0 0.0
  %825 = vmatpush1.msra.mxu0 0.0
  %826 = vmatprep.mubr.f32.mxu0 0.0
  %827 = vmatmul.mubr.f32.gmra.mrb[0].mxu0 %v738
  %v828 = vpop.f32.mrb[0].mxu0
  %v829 = vadd.f32 0.0, %v828
  %v830 = vpop.f32.mrb[0].mxu0
  %v831 = vadd.f32 0.0, %v830
  %832 = vmatprep.mubr.f32.mxu0 0.0
  %833 = vmatmul.mubr.f32.gmra.mrb[0].mxu0 %v741
  %v834 = vpop.f32.mrb[0].mxu0
  %v835 = vadd.f32 0.0, %v834
  %v836 = vpop.f32.mrb[0].mxu0
  %v837 = vadd.f32 0.0, %v836
  %838 = vmatprep.mubr.f32.mxu0 0.0
  %839 = vmatmul.mubr.f32.gmra.mrb[0].mxu0 %v744
  %v840 = vpop.f32.mrb[0].mxu0
  %v841 = vadd.f32 0.0, %v840
  %v842 = vpop.f32.mrb[0].mxu0
  %v843 = vadd.f32 0.0, %v842
  %844 = vmatprep.mubr.f32.mxu0 0.0
  %845 = vmatmul.mubr.f32.gmra.mrb[0].mxu0 %v747
  %v846 = vpop.f32.mrb[0].mxu0
  %v847 = vadd.f32 0.0, %v846
  %v848 = vpop.f32.mrb[0].mxu0
  %v849 = vadd.f32 0.0, %v848
  %850 = vdwg.mxu0
  %851 = vmatprep.subr.mxu0 %v719
  %852 = vmatpush1.msra.mxu0 %v718
  %853 = vmatprep.subr.mxu0 %v723
  %854 = vmatpush1.msra.mxu0 %v722
  %855 = vmatprep.subr.mxu0 %v727
  %856 = vmatpush1.msra.mxu0 %v726
  %857 = vmatprep.subr.mxu0 %v731
  %858 = vmatpush1.msra.mxu0 %v730
  %859 = vmatprep.subr.mxu0 %v760
  %860 = vmatpush1.msra.mxu0 %v757
  %861 = vmatprep.subr.mxu0 0.0
  %862 = vmatpush1.msra.mxu0 0.0
  %863 = vmatprep.subr.mxu0 0.0
  %864 = vmatpush1.msra.mxu0 0.0
  %865 = vmatprep.subr.mxu0 0.0
  %866 = vmatpush1.msra.mxu0 0.0
  %867 = vmatprep.subr.mxu0 0.0
  %868 = vmatpush1.msra.mxu0 0.0
  %869 = vmatprep.subr.mxu0 0.0
  %870 = vmatpush1.msra.mxu0 0.0
  %871 = vmatprep.subr.mxu0 0.0
  %872 = vmatpush1.msra.mxu0 0.0
  %873 = vmatprep.subr.mxu0 0.0
  %874 = vmatpush1.msra.mxu0 0.0
  %875 = vmatprep.subr.mxu0 0.0
  %876 = vmatpush1.msra.mxu0 0.0
  %877 = vmatprep.subr.mxu0 0.0
  %878 = vmatpush1.msra.mxu0 0.0
  %879 = vmatprep.subr.mxu0 0.0
  %880 = vmatpush1.msra.mxu0 0.0
  %881 = vmatprep.subr.mxu0 0.0
  %882 = vmatpush1.msra.mxu0 0.0
  %883 = vmatprep.subr.mxu0 0.0
  %884 = vmatpush1.msra.mxu0 0.0
  %885 = vmatprep.subr.mxu0 0.0
  %886 = vmatpush1.msra.mxu0 0.0
  %887 = vmatprep.subr.mxu0 0.0
  %888 = vmatpush1.msra.mxu0 0.0
  %889 = vmatprep.subr.mxu0 0.0
  %890 = vmatpush1.msra.mxu0 0.0
  %891 = vmatprep.subr.mxu0 0.0
  %892 = vmatpush1.msra.mxu0 0.0
  %893 = vmatprep.subr.mxu0 0.0
  %894 = vmatpush1.msra.mxu0 0.0
  %895 = vmatprep.subr.mxu0 0.0
  %896 = vmatpush1.msra.mxu0 0.0
  %897 = vmatprep.subr.mxu0 0.0
  %898 = vmatpush1.msra.mxu0 0.0
  %899 = vmatprep.subr.mxu0 0.0
  %900 = vmatpush1.msra.mxu0 0.0
  %901 = vmatprep.subr.mxu0 0.0
  %902 = vmatpush1.msra.mxu0 0.0
  %903 = vmatprep.subr.mxu0 0.0
  %904 = vmatpush1.msra.mxu0 0.0
  %905 = vmatprep.subr.mxu0 0.0
  %906 = vmatpush1.msra.mxu0 0.0
  %907 = vmatprep.subr.mxu0 0.0
  %908 = vmatpush1.msra.mxu0 0.0
  %909 = vmatprep.subr.mxu0 0.0
  %910 = vmatpush1.msra.mxu0 0.0
  %911 = vmatprep.subr.mxu0 0.0
  %912 = vmatpush1.msra.mxu0 0.0
  %913 = vmatprep.subr.mxu0 0.0
  %914 = vmatpush1.msra.mxu0 0.0
  %915 = vmatprep.mubr.f32.mxu0 0.0
  %916 = vmatmul.mubr.f32.gmra.mrb[0].mxu0 %v738
  %v917 = vpop.f32.mrb[0].mxu0
  %v918 = vadd.f32 0.0, %v917
  %v919 = vpop.f32.mrb[0].mxu0
  %v920 = vadd.f32 0.0, %v919
  %921 = vmatprep.mubr.f32.mxu0 0.0
  %922 = vmatmul.mubr.f32.gmra.mrb[0].mxu0 %v741
  %v923 = vpop.f32.mrb[0].mxu0
  %v924 = vadd.f32 0.0, %v923
  %v925 = vpop.f32.mrb[0].mxu0
  %v926 = vadd.f32 0.0, %v925
  %927 = vmatprep.mubr.f32.mxu0 0.0
  %928 = vmatmul.mubr.f32.gmra.mrb[0].mxu0 %v744
  %v929 = vpop.f32.mrb[0].mxu0
  %v930 = vadd.f32 0.0, %v929
  %v931 = vpop.f32.mrb[0].mxu0
  %v932 = vadd.f32 0.0, %v931
  %933 = vmatprep.mubr.f32.mxu0 0.0
  %934 = vmatmul.mubr.f32.gmra.mrb[0].mxu0 %v747
  %v935 = vpop.f32.mrb[0].mxu0
  %v936 = vadd.f32 0.0, %v935
  %v937 = vpop.f32.mrb[0].mxu0
  %v938 = vadd.f32 0.0, %v937
  %939 = vdwg.mxu0
  %941 = vset.pattern.permute.xlu0 0
  %942 = vperm.xlu0 %941, %v273
  %v943 = vpop.permute.xlu0 %942
  %946 = vset.pattern.permute.xlu0 0
  %947 = vperm.xlu0 %946, %v278
  %v948 = vpop.permute.xlu0 %947
  %951 = vset.pattern.permute.xlu0 0
  %952 = vperm.xlu0 %951, %v283
  %v953 = vpop.permute.xlu0 %952
  %956 = vset.pattern.permute.xlu0 0
  %957 = vperm.xlu0 %956, %v288
  %v958 = vpop.permute.xlu0 %957
  %v960 = vadd.f32 %v829, %v943
  %v961 = vadd.f32 %v831, %v943
  %v962 = vadd.f32 %v835, %v948
  %v963 = vadd.f32 %v837, %v948
  %v964 = vadd.f32 %v841, %v953
  %v965 = vadd.f32 %v843, %v953
  %v966 = vadd.f32 %v847, %v958
  %v967 = vadd.f32 %v849, %v958
  %v968 = vmax.f32 %v960, 0.0
  %v969 = vmax.f32 %v961, 0.0
  %v970 = vmax.f32 %v962, 0.0
  %v971 = vmax.f32 %v963, 0.0
  %v972 = vmax.f32 %v964, 0.0
  %v973 = vmax.f32 %v965, 0.0
  %v974 = vmax.f32 %v966, 0.0
  %v975 = vmax.f32 %v967, 0.0
  %976 = vst [vmem:[#allocation3 + $0x8] sm:$0xff] %v968
  %977 = vst [vmem:[#allocation3 + $0x10] sm:$0xff] %v969
  %978 = vst [vmem:[#allocation3 + $0x28] sm:$0xff] %v970
  %979 = vst [vmem:[#allocation3 + $0x30] sm:$0xff] %v971
  %980 = vst [vmem:[#allocation3 + $0x48] sm:$0xff] %v972
  %981 = vst [vmem:[#allocation3 + $0x50] sm:$0xff] %v973
  %982 = vst [vmem:[#allocation3 + $0x68] sm:$0xff] %v974
  %983 = vst [vmem:[#allocation3 + $0x70] sm:$0xff] %v975
  %984 = vset.pattern.permute.xlu0 1
  %985 = vperm.xlu0 %984, %v273
  %v986 = vpop.permute.xlu0 %985
  %988 = vset.pattern.permute.xlu0 1
  %989 = vperm.xlu0 %988, %v278
  %v990 = vpop.permute.xlu0 %989
  %992 = vset.pattern.permute.xlu0 1
  %993 = vperm.xlu0 %992, %v283
  %v994 = vpop.permute.xlu0 %993
  %996 = vset.pattern.permute.xlu0 1
  %997 = vperm.xlu0 %996, %v288
  %v998 = vpop.permute.xlu0 %997
  %v1000 = vadd.f32 %v918, %v986
  %v1001 = vadd.f32 %v920, %v986
  %v1002 = vadd.f32 %v924, %v990
  %v1003 = vadd.f32 %v926, %v990
  %v1004 = vadd.f32 %v930, %v994
  %v1005 = vadd.f32 %v932, %v994
  %v1006 = vadd.f32 %v936, %v998
  %v1007 = vadd.f32 %v938, %v998
  %v1008 = vmax.f32 %v1000, 0.0
  %v1009 = vmax.f32 %v1001, 0.0
  %v1010 = vmax.f32 %v1002, 0.0
  %v1011 = vmax.f32 %v1003, 0.0
  %v1012 = vmax.f32 %v1004, 0.0
  %v1013 = vmax.f32 %v1005, 0.0
  %v1014 = vmax.f32 %v1006, 0.0
  %v1015 = vmax.f32 %v1007, 0.0
  %1016 = vst [vmem:[#allocation3 + $0x88] sm:$0xff] %v1008
  %1017 = vst [vmem:[#allocation3 + $0x90] sm:$0xff] %v1009
  %1018 = vst [vmem:[#allocation3 + $0xa8] sm:$0xff] %v1010
  %1019 = vst [vmem:[#allocation3 + $0xb0] sm:$0xff] %v1011
  %1020 = vst [vmem:[#allocation3 + $0xc8] sm:$0xff] %v1012
  %1021 = vst [vmem:[#allocation3 + $0xd0] sm:$0xff] %v1013
  %1022 = vst [vmem:[#allocation3 + $0xe8] sm:$0xff] %v1014
  %1023 = vst [vmem:[#allocation3 + $0xf0] sm:$0xff] %v1015
  %v1024 = vld [vmem:[#allocation3] sm:$0xff]
  %v1025 = vld [vmem:[#allocation3 + $0x8] sm:$0xff]
  %v1026 = vld [vmem:[#allocation3 + $0x10] sm:$0xff]
  %v1027 = vld [vmem:[#allocation3 + $0x20] sm:$0xff]
  %v1028 = vld [vmem:[#allocation3 + $0x28] sm:$0xff]
  %v1029 = vld [vmem:[#allocation3 + $0x30] sm:$0xff]
  %v1030 = vld [vmem:[#allocation3 + $0x40] sm:$0xff]
  %v1031 = vld [vmem:[#allocation3 + $0x48] sm:$0xff]
  %v1032 = vld [vmem:[#allocation3 + $0x50] sm:$0xff]
  %v1033 = vld [vmem:[#allocation3 + $0x60] sm:$0xff]
  %v1034 = vld [vmem:[#allocation3 + $0x68] sm:$0xff]
  %v1035 = vld [vmem:[#allocation3 + $0x70] sm:$0xff]
  %1048 = vrot.lane.b32.xlu0 %v1024, 17
  %v1049 = vpop.permute.xlu0 %1048
  %1050 = vrot.lane.b32.xlu0 %v1025, 17
  %v1051 = vpop.permute.xlu0 %1050
  %1052 = vrot.lane.b32.xlu0 %v1026, 17
  %v1053 = vpop.permute.xlu0 %1052
  %1054 = vrot.lane.b32.xlu0 %v1027, 17
  %v1055 = vpop.permute.xlu0 %1054
  %1056 = vrot.lane.b32.xlu0 %v1028, 17
  %v1057 = vpop.permute.xlu0 %1056
  %1058 = vrot.lane.b32.xlu0 %v1029, 17
  %v1059 = vpop.permute.xlu0 %1058
  %1060 = vrot.lane.b32.xlu0 %v1030, 17
  %v1061 = vpop.permute.xlu0 %1060
  %1062 = vrot.lane.b32.xlu0 %v1031, 17
  %v1063 = vpop.permute.xlu0 %1062
  %1064 = vrot.lane.b32.xlu0 %v1032, 17
  %v1065 = vpop.permute.xlu0 %1064
  %1066 = vrot.lane.b32.xlu0 %v1033, 17
  %v1067 = vpop.permute.xlu0 %1066
  %1068 = vrot.lane.b32.xlu0 %v1034, 17
  %v1069 = vpop.permute.xlu0 %1068
  %1070 = vrot.lane.b32.xlu0 %v1035, 17
  %v1071 = vpop.permute.xlu0 %1070
  %v1072 = vsel %vm338, %v1049, %v1051
  %v1073 = vsel %vm338, %v1051, %v1053
  %v1074 = vsel %vm338, %v1055, %v1057
  %v1075 = vsel %vm338, %v1057, %v1059
  %v1076 = vsel %vm338, %v1061, %v1063
  %v1077 = vsel %vm338, %v1063, %v1065
  %v1078 = vsel %vm338, %v1067, %v1069
  %v1079 = vsel %vm338, %v1069, %v1071
  %v1088 = vsel %vm327, %v1072, 0.0
  %v1089 = vsel %vm328, %v1073, 0.0
  %v1090 = vsel %vm327, %v1074, 0.0
  %v1091 = vsel %vm328, %v1075, 0.0
  %v1092 = vsel %vm327, %v1076, 0.0
  %v1093 = vsel %vm328, %v1077, 0.0
  %v1094 = vsel %vm327, %v1078, 0.0
  %v1095 = vsel %vm328, %v1079, 0.0
  %1096 = vst [vmem:[#allocation5] sm:$0xff] %v1088
  %1097 = vst [vmem:[#allocation5 + $0x8] sm:$0xff] %v1089
  %1098 = vst [vmem:[#allocation5 + $0x20] sm:$0xff] %v1090
  %1099 = vst [vmem:[#allocation5 + $0x28] sm:$0xff] %v1091
  %1100 = vst [vmem:[#allocation5 + $0x40] sm:$0xff] %v1092
  %1101 = vst [vmem:[#allocation5 + $0x48] sm:$0xff] %v1093
  %1102 = vst [vmem:[#allocation5 + $0x60] sm:$0xff] %v1094
  %1103 = vst [vmem:[#allocation5 + $0x68] sm:$0xff] %v1095
  %v1104 = vld [vmem:[#allocation3] sm:$0xff]
  %v1105 = vld [vmem:[#allocation3 + $0x8] sm:$0xff]
  %v1106 = vld [vmem:[#allocation3 + $0x10] sm:$0xff]
  %v1107 = vld [vmem:[#allocation3 + $0x20] sm:$0xff]
  %v1108 = vld [vmem:[#allocation3 + $0x28] sm:$0xff]
  %v1109 = vld [vmem:[#allocation3 + $0x30] sm:$0xff]
  %v1110 = vld [vmem:[#allocation3 + $0x40] sm:$0xff]
  %v1111 = vld [vmem:[#allocation3 + $0x48] sm:$0xff]
  %v1112 = vld [vmem:[#allocation3 + $0x50] sm:$0xff]
  %v1113 = vld [vmem:[#allocation3 + $0x60] sm:$0xff]
  %v1114 = vld [vmem:[#allocation3 + $0x68] sm:$0xff]
  %v1115 = vld [vmem:[#allocation3 + $0x70] sm:$0xff]
  %1128 = vrot.lane.b32.xlu0 %v1104, 16
  %v1129 = vpop.permute.xlu0 %1128
  %1130 = vrot.lane.b32.xlu0 %v1105, 16
  %v1131 = vpop.permute.xlu0 %1130
  %1132 = vrot.lane.b32.xlu0 %v1106, 16
  %v1133 = vpop.permute.xlu0 %1132
  %1134 = vrot.lane.b32.xlu0 %v1107, 16
  %v1135 = vpop.permute.xlu0 %1134
  %1136 = vrot.lane.b32.xlu0 %v1108, 16
  %v1137 = vpop.permute.xlu0 %1136
  %1138 = vrot.lane.b32.xlu0 %v1109, 16
  %v1139 = vpop.permute.xlu0 %1138
  %1140 = vrot.lane.b32.xlu0 %v1110, 16
  %v1141 = vpop.permute.xlu0 %1140
  %1142 = vrot.lane.b32.xlu0 %v1111, 16
  %v1143 = vpop.permute.xlu0 %1142
  %1144 = vrot.lane.b32.xlu0 %v1112, 16
  %v1145 = vpop.permute.xlu0 %1144
  %1146 = vrot.lane.b32.xlu0 %v1113, 16
  %v1147 = vpop.permute.xlu0 %1146
  %1148 = vrot.lane.b32.xlu0 %v1114, 16
  %v1149 = vpop.permute.xlu0 %1148
  %1150 = vrot.lane.b32.xlu0 %v1115, 16
  %v1151 = vpop.permute.xlu0 %1150
  %v1152 = vsel %vm362, %v1129, %v1131
  %v1153 = vsel %vm362, %v1131, %v1133
  %v1154 = vsel %vm362, %v1135, %v1137
  %v1155 = vsel %vm362, %v1137, %v1139
  %v1156 = vsel %vm362, %v1141, %v1143
  %v1157 = vsel %vm362, %v1143, %v1145
  %v1158 = vsel %vm362, %v1147, %v1149
  %v1159 = vsel %vm362, %v1149, %v1151
  %1168 = vst [vmem:[#allocation5 + $0x80] sm:$0xff] %v1152
  %1169 = vst [vmem:[#allocation5 + $0x88] sm:$0xff] %v1153
  %1170 = vst [vmem:[#allocation5 + $0xa0] sm:$0xff] %v1154
  %1171 = vst [vmem:[#allocation5 + $0xa8] sm:$0xff] %v1155
  %1172 = vst [vmem:[#allocation5 + $0xc0] sm:$0xff] %v1156
  %1173 = vst [vmem:[#allocation5 + $0xc8] sm:$0xff] %v1157
  %1174 = vst [vmem:[#allocation5 + $0xe0] sm:$0xff] %v1158
  %1175 = vst [vmem:[#allocation5 + $0xe8] sm:$0xff] %v1159
  %v1176 = vld [vmem:[#allocation3] sm:$0xff]
  %v1177 = vld [vmem:[#allocation3 + $0x8] sm:$0xff]
  %v1178 = vld [vmem:[#allocation3 + $0x10] sm:$0xff]
  %v1179 = vld [vmem:[#allocation3 + $0x20] sm:$0xff]
  %v1180 = vld [vmem:[#allocation3 + $0x28] sm:$0xff]
  %v1181 = vld [vmem:[#allocation3 + $0x30] sm:$0xff]
  %v1182 = vld [vmem:[#allocation3 + $0x40] sm:$0xff]
  %v1183 = vld [vmem:[#allocation3 + $0x48] sm:$0xff]
  %v1184 = vld [vmem:[#allocation3 + $0x50] sm:$0xff]
  %v1185 = vld [vmem:[#allocation3 + $0x60] sm:$0xff]
  %v1186 = vld [vmem:[#allocation3 + $0x68] sm:$0xff]
  %v1187 = vld [vmem:[#allocation3 + $0x70] sm:$0xff]
  %1200 = vrot.lane.b32.xlu0 %v1176, 15
  %v1201 = vpop.permute.xlu0 %1200
  %1202 = vrot.lane.b32.xlu0 %v1177, 15
  %v1203 = vpop.permute.xlu0 %1202
  %1204 = vrot.lane.b32.xlu0 %v1178, 15
  %v1205 = vpop.permute.xlu0 %1204
  %1206 = vrot.lane.b32.xlu0 %v1179, 15
  %v1207 = vpop.permute.xlu0 %1206
  %1208 = vrot.lane.b32.xlu0 %v1180, 15
  %v1209 = vpop.permute.xlu0 %1208
  %1210 = vrot.lane.b32.xlu0 %v1181, 15
  %v1211 = vpop.permute.xlu0 %1210
  %1212 = vrot.lane.b32.xlu0 %v1182, 15
  %v1213 = vpop.permute.xlu0 %1212
  %1214 = vrot.lane.b32.xlu0 %v1183, 15
  %v1215 = vpop.permute.xlu0 %1214
  %1216 = vrot.lane.b32.xlu0 %v1184, 15
  %v1217 = vpop.permute.xlu0 %1216
  %1218 = vrot.lane.b32.xlu0 %v1185, 15
  %v1219 = vpop.permute.xlu0 %1218
  %1220 = vrot.lane.b32.xlu0 %v1186, 15
  %v1221 = vpop.permute.xlu0 %1220
  %1222 = vrot.lane.b32.xlu0 %v1187, 15
  %v1223 = vpop.permute.xlu0 %1222
  %v1224 = vsel %vm385, %v1201, %v1203
  %v1225 = vsel %vm385, %v1203, %v1205
  %v1226 = vsel %vm385, %v1207, %v1209
  %v1227 = vsel %vm385, %v1209, %v1211
  %v1228 = vsel %vm385, %v1213, %v1215
  %v1229 = vsel %vm385, %v1215, %v1217
  %v1230 = vsel %vm385, %v1219, %v1221
  %v1231 = vsel %vm385, %v1221, %v1223
  %v1240 = vsel %vm374, %v1224, 0.0
  %v1241 = vsel %vm375, %v1225, 0.0
  %v1242 = vsel %vm374, %v1226, 0.0
  %v1243 = vsel %vm375, %v1227, 0.0
  %v1244 = vsel %vm374, %v1228, 0.0
  %v1245 = vsel %vm375, %v1229, 0.0
  %v1246 = vsel %vm374, %v1230, 0.0
  %v1247 = vsel %vm375, %v1231, 0.0
  %1248 = vst [vmem:[#allocation5 + $0x100] sm:$0xff] %v1240
  %1249 = vst [vmem:[#allocation5 + $0x108] sm:$0xff] %v1241
  %1250 = vst [vmem:[#allocation5 + $0x120] sm:$0xff] %v1242
  %1251 = vst [vmem:[#allocation5 + $0x128] sm:$0xff] %v1243
  %1252 = vst [vmem:[#allocation5 + $0x140] sm:$0xff] %v1244
  %1253 = vst [vmem:[#allocation5 + $0x148] sm:$0xff] %v1245
  %1254 = vst [vmem:[#allocation5 + $0x160] sm:$0xff] %v1246
  %1255 = vst [vmem:[#allocation5 + $0x168] sm:$0xff] %v1247
  %v1256 = vld [vmem:[#allocation3] sm:$0xff]
  %v1257 = vld [vmem:[#allocation3 + $0x8] sm:$0xff]
  %v1258 = vld [vmem:[#allocation3 + $0x10] sm:$0xff]
  %v1259 = vld [vmem:[#allocation3 + $0x20] sm:$0xff]
  %v1260 = vld [vmem:[#allocation3 + $0x28] sm:$0xff]
  %v1261 = vld [vmem:[#allocation3 + $0x30] sm:$0xff]
  %v1262 = vld [vmem:[#allocation3 + $0x40] sm:$0xff]
  %v1263 = vld [vmem:[#allocation3 + $0x48] sm:$0xff]
  %v1264 = vld [vmem:[#allocation3 + $0x50] sm:$0xff]
  %v1265 = vld [vmem:[#allocation3 + $0x60] sm:$0xff]
  %v1266 = vld [vmem:[#allocation3 + $0x68] sm:$0xff]
  %v1267 = vld [vmem:[#allocation3 + $0x70] sm:$0xff]
  %1280 = vrot.lane.b32.xlu0 %v1256, 1
  %v1281 = vpop.permute.xlu0 %1280
  %1282 = vrot.lane.b32.xlu0 %v1257, 1
  %v1283 = vpop.permute.xlu0 %1282
  %1284 = vrot.lane.b32.xlu0 %v1258, 1
  %v1285 = vpop.permute.xlu0 %1284
  %1286 = vrot.lane.b32.xlu0 %v1259, 1
  %v1287 = vpop.permute.xlu0 %1286
  %1288 = vrot.lane.b32.xlu0 %v1260, 1
  %v1289 = vpop.permute.xlu0 %1288
  %1290 = vrot.lane.b32.xlu0 %v1261, 1
  %v1291 = vpop.permute.xlu0 %1290
  %1292 = vrot.lane.b32.xlu0 %v1262, 1
  %v1293 = vpop.permute.xlu0 %1292
  %1294 = vrot.lane.b32.xlu0 %v1263, 1
  %v1295 = vpop.permute.xlu0 %1294
  %1296 = vrot.lane.b32.xlu0 %v1264, 1
  %v1297 = vpop.permute.xlu0 %1296
  %1298 = vrot.lane.b32.xlu0 %v1265, 1
  %v1299 = vpop.permute.xlu0 %1298
  %1300 = vrot.lane.b32.xlu0 %v1266, 1
  %v1301 = vpop.permute.xlu0 %1300
  %1302 = vrot.lane.b32.xlu0 %v1267, 1
  %v1303 = vpop.permute.xlu0 %1302
  %v1304 = vsel %vm406, %v1281, %v1283
  %v1305 = vsel %vm406, %v1283, %v1285
  %v1306 = vsel %vm406, %v1287, %v1289
  %v1307 = vsel %vm406, %v1289, %v1291
  %v1308 = vsel %vm406, %v1293, %v1295
  %v1309 = vsel %vm406, %v1295, %v1297
  %v1310 = vsel %vm406, %v1299, %v1301
  %v1311 = vsel %vm406, %v1301, %v1303
  %v1320 = vsel %vm327, %v1304, 0.0
  %v1321 = vsel %vm328, %v1305, 0.0
  %v1322 = vsel %vm327, %v1306, 0.0
  %v1323 = vsel %vm328, %v1307, 0.0
  %v1324 = vsel %vm327, %v1308, 0.0
  %v1325 = vsel %vm328, %v1309, 0.0
  %v1326 = vsel %vm327, %v1310, 0.0
  %v1327 = vsel %vm328, %v1311, 0.0
  %1328 = vst [vmem:[#allocation5 + $0x180] sm:$0xff] %v1320
  %1329 = vst [vmem:[#allocation5 + $0x188] sm:$0xff] %v1321
  %1330 = vst [vmem:[#allocation5 + $0x1a0] sm:$0xff] %v1322
  %1331 = vst [vmem:[#allocation5 + $0x1a8] sm:$0xff] %v1323
  %1332 = vst [vmem:[#allocation5 + $0x1c0] sm:$0xff] %v1324
  %1333 = vst [vmem:[#allocation5 + $0x1c8] sm:$0xff] %v1325
  %1334 = vst [vmem:[#allocation5 + $0x1e0] sm:$0xff] %v1326
  %1335 = vst [vmem:[#allocation5 + $0x1e8] sm:$0xff] %v1327
  %v1336 = vld [vmem:[#allocation3 + $0x8] sm:$0xff]
  %v1337 = vld [vmem:[#allocation3 + $0x10] sm:$0xff]
  %v1338 = vld [vmem:[#allocation3 + $0x28] sm:$0xff]
  %v1339 = vld [vmem:[#allocation3 + $0x30] sm:$0xff]
  %v1340 = vld [vmem:[#allocation3 + $0x48] sm:$0xff]
  %v1341 = vld [vmem:[#allocation3 + $0x50] sm:$0xff]
  %v1342 = vld [vmem:[#allocation3 + $0x68] sm:$0xff]
  %v1343 = vld [vmem:[#allocation3 + $0x70] sm:$0xff]
  %1344 = vst [vmem:[#allocation5 + $0x200] sm:$0xff] %v1336
  %1345 = vst [vmem:[#allocation5 + $0x208] sm:$0xff] %v1337
  %1346 = vst [vmem:[#allocation5 + $0x220] sm:$0xff] %v1338
  %1347 = vst [vmem:[#allocation5 + $0x228] sm:$0xff] %v1339
  %1348 = vst [vmem:[#allocation5 + $0x240] sm:$0xff] %v1340
  %1349 = vst [vmem:[#allocation5 + $0x248] sm:$0xff] %v1341
  %1350 = vst [vmem:[#allocation5 + $0x260] sm:$0xff] %v1342
  %1351 = vst [vmem:[#allocation5 + $0x268] sm:$0xff] %v1343
  %v1352 = vld [vmem:[#allocation3 + $0x8] sm:$0xff]
  %v1353 = vld [vmem:[#allocation3 + $0x10] sm:$0xff]
  %v1354 = vld [vmem:[#allocation3 + $0x18] sm:$0xff]
  %v1355 = vld [vmem:[#allocation3 + $0x28] sm:$0xff]
  %v1356 = vld [vmem:[#allocation3 + $0x30] sm:$0xff]
  %v1357 = vld [vmem:[#allocation3 + $0x38] sm:$0xff]
  %v1358 = vld [vmem:[#allocation3 + $0x48] sm:$0xff]
  %v1359 = vld [vmem:[#allocation3 + $0x50] sm:$0xff]
  %v1360 = vld [vmem:[#allocation3 + $0x58] sm:$0xff]
  %v1361 = vld [vmem:[#allocation3 + $0x68] sm:$0xff]
  %v1362 = vld [vmem:[#allocation3 + $0x70] sm:$0xff]
  %v1363 = vld [vmem:[#allocation3 + $0x78] sm:$0xff]
  %1376 = vrot.lane.b32.xlu0 %v1352, 127
  %v1377 = vpop.permute.xlu0 %1376
  %1378 = vrot.lane.b32.xlu0 %v1353, 127
  %v1379 = vpop.permute.xlu0 %1378
  %1380 = vrot.lane.b32.xlu0 %v1354, 127
  %v1381 = vpop.permute.xlu0 %1380
  %1382 = vrot.lane.b32.xlu0 %v1355, 127
  %v1383 = vpop.permute.xlu0 %1382
  %1384 = vrot.lane.b32.xlu0 %v1356, 127
  %v1385 = vpop.permute.xlu0 %1384
  %1386 = vrot.lane.b32.xlu0 %v1357, 127
  %v1387 = vpop.permute.xlu0 %1386
  %1388 = vrot.lane.b32.xlu0 %v1358, 127
  %v1389 = vpop.permute.xlu0 %1388
  %1390 = vrot.lane.b32.xlu0 %v1359, 127
  %v1391 = vpop.permute.xlu0 %1390
  %1392 = vrot.lane.b32.xlu0 %v1360, 127
  %v1393 = vpop.permute.xlu0 %1392
  %1394 = vrot.lane.b32.xlu0 %v1361, 127
  %v1395 = vpop.permute.xlu0 %1394
  %1396 = vrot.lane.b32.xlu0 %v1362, 127
  %v1397 = vpop.permute.xlu0 %1396
  %1398 = vrot.lane.b32.xlu0 %v1363, 127
  %v1399 = vpop.permute.xlu0 %1398
  %v1400 = vsel %vm437, %v1377, %v1379
  %v1401 = vsel %vm437, %v1379, %v1381
  %v1402 = vsel %vm437, %v1383, %v1385
  %v1403 = vsel %vm437, %v1385, %v1387
  %v1404 = vsel %vm437, %v1389, %v1391
  %v1405 = vsel %vm437, %v1391, %v1393
  %v1406 = vsel %vm437, %v1395, %v1397
  %v1407 = vsel %vm437, %v1397, %v1399
  %v1416 = vsel %vm374, %v1400, 0.0
  %v1417 = vsel %vm375, %v1401, 0.0
  %v1418 = vsel %vm374, %v1402, 0.0
  %v1419 = vsel %vm375, %v1403, 0.0
  %v1420 = vsel %vm374, %v1404, 0.0
  %v1421 = vsel %vm375, %v1405, 0.0
  %v1422 = vsel %vm374, %v1406, 0.0
  %v1423 = vsel %vm375, %v1407, 0.0
  %1424 = vst [vmem:[#allocation5 + $0x280] sm:$0xff] %v1416
  %1425 = vst [vmem:[#allocation5 + $0x288] sm:$0xff] %v1417
  %1426 = vst [vmem:[#allocation5 + $0x2a0] sm:$0xff] %v1418
  %1427 = vst [vmem:[#allocation5 + $0x2a8] sm:$0xff] %v1419
  %1428 = vst [vmem:[#allocation5 + $0x2c0] sm:$0xff] %v1420
  %1429 = vst [vmem:[#allocation5 + $0x2c8] sm:$0xff] %v1421
  %1430 = vst [vmem:[#allocation5 + $0x2e0] sm:$0xff] %v1422
  %1431 = vst [vmem:[#allocation5 + $0x2e8] sm:$0xff] %v1423
  %v1432 = vld [vmem:[#allocation3 + $0x8] sm:$0xff]
  %v1433 = vld [vmem:[#allocation3 + $0x10] sm:$0xff]
  %v1434 = vld [vmem:[#allocation3 + $0x18] sm:$0xff]
  %v1435 = vld [vmem:[#allocation3 + $0x28] sm:$0xff]
  %v1436 = vld [vmem:[#allocation3 + $0x30] sm:$0xff]
  %v1437 = vld [vmem:[#allocation3 + $0x38] sm:$0xff]
  %v1438 = vld [vmem:[#allocation3 + $0x48] sm:$0xff]
  %v1439 = vld [vmem:[#allocation3 + $0x50] sm:$0xff]
  %v1440 = vld [vmem:[#allocation3 + $0x58] sm:$0xff]
  %v1441 = vld [vmem:[#allocation3 + $0x68] sm:$0xff]
  %v1442 = vld [vmem:[#allocation3 + $0x70] sm:$0xff]
  %v1443 = vld [vmem:[#allocation3 + $0x78] sm:$0xff]
  %1456 = vrot.lane.b32.xlu0 %v1432, 113
  %v1457 = vpop.permute.xlu0 %1456
  %1458 = vrot.lane.b32.xlu0 %v1433, 113
  %v1459 = vpop.permute.xlu0 %1458
  %1460 = vrot.lane.b32.xlu0 %v1434, 113
  %v1461 = vpop.permute.xlu0 %1460
  %1462 = vrot.lane.b32.xlu0 %v1435, 113
  %v1463 = vpop.permute.xlu0 %1462
  %1464 = vrot.lane.b32.xlu0 %v1436, 113
  %v1465 = vpop.permute.xlu0 %1464
  %1466 = vrot.lane.b32.xlu0 %v1437, 113
  %v1467 = vpop.permute.xlu0 %1466
  %1468 = vrot.lane.b32.xlu0 %v1438, 113
  %v1469 = vpop.permute.xlu0 %1468
  %1470 = vrot.lane.b32.xlu0 %v1439, 113
  %v1471 = vpop.permute.xlu0 %1470
  %1472 = vrot.lane.b32.xlu0 %v1440, 113
  %v1473 = vpop.permute.xlu0 %1472
  %1474 = vrot.lane.b32.xlu0 %v1441, 113
  %v1475 = vpop.permute.xlu0 %1474
  %1476 = vrot.lane.b32.xlu0 %v1442, 113
  %v1477 = vpop.permute.xlu0 %1476
  %1478 = vrot.lane.b32.xlu0 %v1443, 113
  %v1479 = vpop.permute.xlu0 %1478
  %v1480 = vsel %vm464, %v1457, %v1459
  %v1481 = vsel %vm464, %v1459, %v1461
  %v1482 = vsel %vm464, %v1463, %v1465
  %v1483 = vsel %vm464, %v1465, %v1467
  %v1484 = vsel %vm464, %v1469, %v1471
  %v1485 = vsel %vm464, %v1471, %v1473
  %v1486 = vsel %vm464, %v1475, %v1477
  %v1487 = vsel %vm464, %v1477, %v1479
  %v1496 = vsel %vm327, %v1480, 0.0
  %v1497 = vsel %vm328, %v1481, 0.0
  %v1498 = vsel %vm327, %v1482, 0.0
  %v1499 = vsel %vm328, %v1483, 0.0
  %v1500 = vsel %vm327, %v1484, 0.0
  %v1501 = vsel %vm328, %v1485, 0.0
  %v1502 = vsel %vm327, %v1486, 0.0
  %v1503 = vsel %vm328, %v1487, 0.0
  %1504 = vst [vmem:[#allocation5 + $0x300] sm:$0xff] %v1496
  %1505 = vst [vmem:[#allocation5 + $0x308] sm:$0xff] %v1497
  %1506 = vst [vmem:[#allocation5 + $0x320] sm:$0xff] %v1498
  %1507 = vst [vmem:[#allocation5 + $0x328] sm:$0xff] %v1499
  %1508 = vst [vmem:[#allocation5 + $0x340] sm:$0xff] %v1500
  %1509 = vst [vmem:[#allocation5 + $0x348] sm:$0xff] %v1501
  %1510 = vst [vmem:[#allocation5 + $0x360] sm:$0xff] %v1502
  %1511 = vst [vmem:[#allocation5 + $0x368] sm:$0xff] %v1503
  %v1512 = vld [vmem:[#allocation3 + $0x8] sm:$0xff]
  %v1513 = vld [vmem:[#allocation3 + $0x10] sm:$0xff]
  %v1514 = vld [vmem:[#allocation3 + $0x18] sm:$0xff]
  %v1515 = vld [vmem:[#allocation3 + $0x28] sm:$0xff]
  %v1516 = vld [vmem:[#allocation3 + $0x30] sm:$0xff]
  %v1517 = vld [vmem:[#allocation3 + $0x38] sm:$0xff]
  %v1518 = vld [vmem:[#allocation3 + $0x48] sm:$0xff]
  %v1519 = vld [vmem:[#allocation3 + $0x50] sm:$0xff]
  %v1520 = vld [vmem:[#allocation3 + $0x58] sm:$0xff]
  %v1521 = vld [vmem:[#allocation3 + $0x68] sm:$0xff]
  %v1522 = vld [vmem:[#allocation3 + $0x70] sm:$0xff]
  %v1523 = vld [vmem:[#allocation3 + $0x78] sm:$0xff]
  %1536 = vrot.lane.b32.xlu0 %v1512, 112
  %v1537 = vpop.permute.xlu0 %1536
  %1538 = vrot.lane.b32.xlu0 %v1513, 112
  %v1539 = vpop.permute.xlu0 %1538
  %1540 = vrot.lane.b32.xlu0 %v1514, 112
  %v1541 = vpop.permute.xlu0 %1540
  %1542 = vrot.lane.b32.xlu0 %v1515, 112
  %v1543 = vpop.permute.xlu0 %1542
  %1544 = vrot.lane.b32.xlu0 %v1516, 112
  %v1545 = vpop.permute.xlu0 %1544
  %1546 = vrot.lane.b32.xlu0 %v1517, 112
  %v1547 = vpop.permute.xlu0 %1546
  %1548 = vrot.lane.b32.xlu0 %v1518, 112
  %v1549 = vpop.permute.xlu0 %1548
  %1550 = vrot.lane.b32.xlu0 %v1519, 112
  %v1551 = vpop.permute.xlu0 %1550
  %1552 = vrot.lane.b32.xlu0 %v1520, 112
  %v1553 = vpop.permute.xlu0 %1552
  %1554 = vrot.lane.b32.xlu0 %v1521, 112
  %v1555 = vpop.permute.xlu0 %1554
  %1556 = vrot.lane.b32.xlu0 %v1522, 112
  %v1557 = vpop.permute.xlu0 %1556
  %1558 = vrot.lane.b32.xlu0 %v1523, 112
  %v1559 = vpop.permute.xlu0 %1558
  %v1560 = vsel %vm488, %v1537, %v1539
  %v1561 = vsel %vm488, %v1539, %v1541
  %v1562 = vsel %vm488, %v1543, %v1545
  %v1563 = vsel %vm488, %v1545, %v1547
  %v1564 = vsel %vm488, %v1549, %v1551
  %v1565 = vsel %vm488, %v1551, %v1553
  %v1566 = vsel %vm488, %v1555, %v1557
  %v1567 = vsel %vm488, %v1557, %v1559
  %1576 = vst [vmem:[#allocation5 + $0x380] sm:$0xff] %v1560
  %1577 = vst [vmem:[#allocation5 + $0x388] sm:$0xff] %v1561
  %1578 = vst [vmem:[#allocation5 + $0x3a0] sm:$0xff] %v1562
  %1579 = vst [vmem:[#allocation5 + $0x3a8] sm:$0xff] %v1563
  %1580 = vst [vmem:[#allocation5 + $0x3c0] sm:$0xff] %v1564
  %1581 = vst [vmem:[#allocation5 + $0x3c8] sm:$0xff] %v1565
  %1582 = vst [vmem:[#allocation5 + $0x3e0] sm:$0xff] %v1566
  %1583 = vst [vmem:[#allocation5 + $0x3e8] sm:$0xff] %v1567
  %v1584 = vld [vmem:[#allocation3 + $0x8] sm:$0xff]
  %v1585 = vld [vmem:[#allocation3 + $0x10] sm:$0xff]
  %v1586 = vld [vmem:[#allocation3 + $0x18] sm:$0xff]
  %v1587 = vld [vmem:[#allocation3 + $0x28] sm:$0xff]
  %v1588 = vld [vmem:[#allocation3 + $0x30] sm:$0xff]
  %v1589 = vld [vmem:[#allocation3 + $0x38] sm:$0xff]
  %v1590 = vld [vmem:[#allocation3 + $0x48] sm:$0xff]
  %v1591 = vld [vmem:[#allocation3 + $0x50] sm:$0xff]
  %v1592 = vld [vmem:[#allocation3 + $0x58] sm:$0xff]
  %v1593 = vld [vmem:[#allocation3 + $0x68] sm:$0xff]
  %v1594 = vld [vmem:[#allocation3 + $0x70] sm:$0xff]
  %v1595 = vld [vmem:[#allocation3 + $0x78] sm:$0xff]
  %1608 = vrot.lane.b32.xlu0 %v1584, 111
  %v1609 = vpop.permute.xlu0 %1608
  %1610 = vrot.lane.b32.xlu0 %v1585, 111
  %v1611 = vpop.permute.xlu0 %1610
  %1612 = vrot.lane.b32.xlu0 %v1586, 111
  %v1613 = vpop.permute.xlu0 %1612
  %1614 = vrot.lane.b32.xlu0 %v1587, 111
  %v1615 = vpop.permute.xlu0 %1614
  %1616 = vrot.lane.b32.xlu0 %v1588, 111
  %v1617 = vpop.permute.xlu0 %1616
  %1618 = vrot.lane.b32.xlu0 %v1589, 111
  %v1619 = vpop.permute.xlu0 %1618
  %1620 = vrot.lane.b32.xlu0 %v1590, 111
  %v1621 = vpop.permute.xlu0 %1620
  %1622 = vrot.lane.b32.xlu0 %v1591, 111
  %v1623 = vpop.permute.xlu0 %1622
  %1624 = vrot.lane.b32.xlu0 %v1592, 111
  %v1625 = vpop.permute.xlu0 %1624
  %1626 = vrot.lane.b32.xlu0 %v1593, 111
  %v1627 = vpop.permute.xlu0 %1626
  %1628 = vrot.lane.b32.xlu0 %v1594, 111
  %v1629 = vpop.permute.xlu0 %1628
  %1630 = vrot.lane.b32.xlu0 %v1595, 111
  %v1631 = vpop.permute.xlu0 %1630
  %v1632 = vsel %vm507, %v1609, %v1611
  %v1633 = vsel %vm507, %v1611, %v1613
  %v1634 = vsel %vm507, %v1615, %v1617
  %v1635 = vsel %vm507, %v1617, %v1619
  %v1636 = vsel %vm507, %v1621, %v1623
  %v1637 = vsel %vm507, %v1623, %v1625
  %v1638 = vsel %vm507, %v1627, %v1629
  %v1639 = vsel %vm507, %v1629, %v1631
  %v1648 = vsel %vm374, %v1632, 0.0
  %v1649 = vsel %vm375, %v1633, 0.0
  %v1650 = vsel %vm374, %v1634, 0.0
  %v1651 = vsel %vm375, %v1635, 0.0
  %v1652 = vsel %vm374, %v1636, 0.0
  %v1653 = vsel %vm375, %v1637, 0.0
  %v1654 = vsel %vm374, %v1638, 0.0
  %v1655 = vsel %vm375, %v1639, 0.0
  %1656 = vst [vmem:[#allocation5 + $0x400] sm:$0xff] %v1648
  %1657 = vst [vmem:[#allocation5 + $0x408] sm:$0xff] %v1649
  %1658 = vst [vmem:[#allocation5 + $0x420] sm:$0xff] %v1650
  %1659 = vst [vmem:[#allocation5 + $0x428] sm:$0xff] %v1651
  %1660 = vst [vmem:[#allocation5 + $0x440] sm:$0xff] %v1652
  %1661 = vst [vmem:[#allocation5 + $0x448] sm:$0xff] %v1653
  %1662 = vst [vmem:[#allocation5 + $0x460] sm:$0xff] %v1654
  %1663 = vst [vmem:[#allocation5 + $0x468] sm:$0xff] %v1655
  %v1664 = vld [vmem:[#allocation3 + $0x80] sm:$0xff]
  %v1665 = vld [vmem:[#allocation3 + $0x88] sm:$0xff]
  %v1666 = vld [vmem:[#allocation3 + $0x90] sm:$0xff]
  %v1667 = vld [vmem:[#allocation3 + $0xa0] sm:$0xff]
  %v1668 = vld [vmem:[#allocation3 + $0xa8] sm:$0xff]
  %v1669 = vld [vmem:[#allocation3 + $0xb0] sm:$0xff]
  %v1670 = vld [vmem:[#allocation3 + $0xc0] sm:$0xff]
  %v1671 = vld [vmem:[#allocation3 + $0xc8] sm:$0xff]
  %v1672 = vld [vmem:[#allocation3 + $0xd0] sm:$0xff]
  %v1673 = vld [vmem:[#allocation3 + $0xe0] sm:$0xff]
  %v1674 = vld [vmem:[#allocation3 + $0xe8] sm:$0xff]
  %v1675 = vld [vmem:[#allocation3 + $0xf0] sm:$0xff]
  %1688 = vrot.lane.b32.xlu0 %v1664, 17
  %v1689 = vpop.permute.xlu0 %1688
  %1690 = vrot.lane.b32.xlu0 %v1665, 17
  %v1691 = vpop.permute.xlu0 %1690
  %1692 = vrot.lane.b32.xlu0 %v1666, 17
  %v1693 = vpop.permute.xlu0 %1692
  %1694 = vrot.lane.b32.xlu0 %v1667, 17
  %v1695 = vpop.permute.xlu0 %1694
  %1696 = vrot.lane.b32.xlu0 %v1668, 17
  %v1697 = vpop.permute.xlu0 %1696
  %1698 = vrot.lane.b32.xlu0 %v1669, 17
  %v1699 = vpop.permute.xlu0 %1698
  %1700 = vrot.lane.b32.xlu0 %v1670, 17
  %v1701 = vpop.permute.xlu0 %1700
  %1702 = vrot.lane.b32.xlu0 %v1671, 17
  %v1703 = vpop.permute.xlu0 %1702
  %1704 = vrot.lane.b32.xlu0 %v1672, 17
  %v1705 = vpop.permute.xlu0 %1704
  %1706 = vrot.lane.b32.xlu0 %v1673, 17
  %v1707 = vpop.permute.xlu0 %1706
  %1708 = vrot.lane.b32.xlu0 %v1674, 17
  %v1709 = vpop.permute.xlu0 %1708
  %1710 = vrot.lane.b32.xlu0 %v1675, 17
  %v1711 = vpop.permute.xlu0 %1710
  %v1712 = vsel %vm338, %v1689, %v1691
  %v1713 = vsel %vm338, %v1691, %v1693
  %v1714 = vsel %vm338, %v1695, %v1697
  %v1715 = vsel %vm338, %v1697, %v1699
  %v1716 = vsel %vm338, %v1701, %v1703
  %v1717 = vsel %vm338, %v1703, %v1705
  %v1718 = vsel %vm338, %v1707, %v1709
  %v1719 = vsel %vm338, %v1709, %v1711
  %v1728 = vsel %vm327, %v1712, 0.0
  %v1729 = vsel %vm328, %v1713, 0.0
  %v1730 = vsel %vm327, %v1714, 0.0
  %v1731 = vsel %vm328, %v1715, 0.0
  %v1732 = vsel %vm327, %v1716, 0.0
  %v1733 = vsel %vm328, %v1717, 0.0
  %v1734 = vsel %vm327, %v1718, 0.0
  %v1735 = vsel %vm328, %v1719, 0.0
  %1736 = vst [vmem:[#allocation5 + $0x10] sm:$0xff] %v1728
  %1737 = vst [vmem:[#allocation5 + $0x18] sm:$0xff] %v1729
  %1738 = vst [vmem:[#allocation5 + $0x30] sm:$0xff] %v1730
  %1739 = vst [vmem:[#allocation5 + $0x38] sm:$0xff] %v1731
  %1740 = vst [vmem:[#allocation5 + $0x50] sm:$0xff] %v1732
  %1741 = vst [vmem:[#allocation5 + $0x58] sm:$0xff] %v1733
  %1742 = vst [vmem:[#allocation5 + $0x70] sm:$0xff] %v1734
  %1743 = vst [vmem:[#allocation5 + $0x78] sm:$0xff] %v1735
  %v1744 = vld [vmem:[#allocation3 + $0x80] sm:$0xff]
  %v1745 = vld [vmem:[#allocation3 + $0x88] sm:$0xff]
  %v1746 = vld [vmem:[#allocation3 + $0x90] sm:$0xff]
  %v1747 = vld [vmem:[#allocation3 + $0xa0] sm:$0xff]
  %v1748 = vld [vmem:[#allocation3 + $0xa8] sm:$0xff]
  %v1749 = vld [vmem:[#allocation3 + $0xb0] sm:$0xff]
  %v1750 = vld [vmem:[#allocation3 + $0xc0] sm:$0xff]
  %v1751 = vld [vmem:[#allocation3 + $0xc8] sm:$0xff]
  %v1752 = vld [vmem:[#allocation3 + $0xd0] sm:$0xff]
  %v1753 = vld [vmem:[#allocation3 + $0xe0] sm:$0xff]
  %v1754 = vld [vmem:[#allocation3 + $0xe8] sm:$0xff]
  %v1755 = vld [vmem:[#allocation3 + $0xf0] sm:$0xff]
  %1768 = vrot.lane.b32.xlu0 %v1744, 16
  %v1769 = vpop.permute.xlu0 %1768
  %1770 = vrot.lane.b32.xlu0 %v1745, 16
  %v1771 = vpop.permute.xlu0 %1770
  %1772 = vrot.lane.b32.xlu0 %v1746, 16
  %v1773 = vpop.permute.xlu0 %1772
  %1774 = vrot.lane.b32.xlu0 %v1747, 16
  %v1775 = vpop.permute.xlu0 %1774
  %1776 = vrot.lane.b32.xlu0 %v1748, 16
  %v1777 = vpop.permute.xlu0 %1776
  %1778 = vrot.lane.b32.xlu0 %v1749, 16
  %v1779 = vpop.permute.xlu0 %1778
  %1780 = vrot.lane.b32.xlu0 %v1750, 16
  %v1781 = vpop.permute.xlu0 %1780
  %1782 = vrot.lane.b32.xlu0 %v1751, 16
  %v1783 = vpop.permute.xlu0 %1782
  %1784 = vrot.lane.b32.xlu0 %v1752, 16
  %v1785 = vpop.permute.xlu0 %1784
  %1786 = vrot.lane.b32.xlu0 %v1753, 16
  %v1787 = vpop.permute.xlu0 %1786
  %1788 = vrot.lane.b32.xlu0 %v1754, 16
  %v1789 = vpop.permute.xlu0 %1788
  %1790 = vrot.lane.b32.xlu0 %v1755, 16
  %v1791 = vpop.permute.xlu0 %1790
  %v1792 = vsel %vm362, %v1769, %v1771
  %v1793 = vsel %vm362, %v1771, %v1773
  %v1794 = vsel %vm362, %v1775, %v1777
  %v1795 = vsel %vm362, %v1777, %v1779
  %v1796 = vsel %vm362, %v1781, %v1783
  %v1797 = vsel %vm362, %v1783, %v1785
  %v1798 = vsel %vm362, %v1787, %v1789
  %v1799 = vsel %vm362, %v1789, %v1791
  %1808 = vst [vmem:[#allocation5 + $0x90] sm:$0xff] %v1792
  %1809 = vst [vmem:[#allocation5 + $0x98] sm:$0xff] %v1793
  %1810 = vst [vmem:[#allocation5 + $0xb0] sm:$0xff] %v1794
  %1811 = vst [vmem:[#allocation5 + $0xb8] sm:$0xff] %v1795
  %1812 = vst [vmem:[#allocation5 + $0xd0] sm:$0xff] %v1796
  %1813 = vst [vmem:[#allocation5 + $0xd8] sm:$0xff] %v1797
  %1814 = vst [vmem:[#allocation5 + $0xf0] sm:$0xff] %v1798
  %1815 = vst [vmem:[#allocation5 + $0xf8] sm:$0xff] %v1799
  %v1816 = vld [vmem:[#allocation3 + $0x80] sm:$0xff]
  %v1817 = vld [vmem:[#allocation3 + $0x88] sm:$0xff]
  %v1818 = vld [vmem:[#allocation3 + $0x90] sm:$0xff]
  %v1819 = vld [vmem:[#allocation3 + $0xa0] sm:$0xff]
  %v1820 = vld [vmem:[#allocation3 + $0xa8] sm:$0xff]
  %v1821 = vld [vmem:[#allocation3 + $0xb0] sm:$0xff]
  %v1822 = vld [vmem:[#allocation3 + $0xc0] sm:$0xff]
  %v1823 = vld [vmem:[#allocation3 + $0xc8] sm:$0xff]
  %v1824 = vld [vmem:[#allocation3 + $0xd0] sm:$0xff]
  %v1825 = vld [vmem:[#allocation3 + $0xe0] sm:$0xff]
  %v1826 = vld [vmem:[#allocation3 + $0xe8] sm:$0xff]
  %v1827 = vld [vmem:[#allocation3 + $0xf0] sm:$0xff]
  %1840 = vrot.lane.b32.xlu0 %v1816, 15
  %v1841 = vpop.permute.xlu0 %1840
  %1842 = vrot.lane.b32.xlu0 %v1817, 15
  %v1843 = vpop.permute.xlu0 %1842
  %1844 = vrot.lane.b32.xlu0 %v1818, 15
  %v1845 = vpop.permute.xlu0 %1844
  %1846 = vrot.lane.b32.xlu0 %v1819, 15
  %v1847 = vpop.permute.xlu0 %1846
  %1848 = vrot.lane.b32.xlu0 %v1820, 15
  %v1849 = vpop.permute.xlu0 %1848
  %1850 = vrot.lane.b32.xlu0 %v1821, 15
  %v1851 = vpop.permute.xlu0 %1850
  %1852 = vrot.lane.b32.xlu0 %v1822, 15
  %v1853 = vpop.permute.xlu0 %1852
  %1854 = vrot.lane.b32.xlu0 %v1823, 15
  %v1855 = vpop.permute.xlu0 %1854
  %1856 = vrot.lane.b32.xlu0 %v1824, 15
  %v1857 = vpop.permute.xlu0 %1856
  %1858 = vrot.lane.b32.xlu0 %v1825, 15
  %v1859 = vpop.permute.xlu0 %1858
  %1860 = vrot.lane.b32.xlu0 %v1826, 15
  %v1861 = vpop.permute.xlu0 %1860
  %1862 = vrot.lane.b32.xlu0 %v1827, 15
  %v1863 = vpop.permute.xlu0 %1862
  %v1864 = vsel %vm385, %v1841, %v1843
  %v1865 = vsel %vm385, %v1843, %v1845
  %v1866 = vsel %vm385, %v1847, %v1849
  %v1867 = vsel %vm385, %v1849, %v1851
  %v1868 = vsel %vm385, %v1853, %v1855
  %v1869 = vsel %vm385, %v1855, %v1857
  %v1870 = vsel %vm385, %v1859, %v1861
  %v1871 = vsel %vm385, %v1861, %v1863
  %v1880 = vsel %vm374, %v1864, 0.0
  %v1881 = vsel %vm375, %v1865, 0.0
  %v1882 = vsel %vm374, %v1866, 0.0
  %v1883 = vsel %vm375, %v1867, 0.0
  %v1884 = vsel %vm374, %v1868, 0.0
  %v1885 = vsel %vm375, %v1869, 0.0
  %v1886 = vsel %vm374, %v1870, 0.0
  %v1887 = vsel %vm375, %v1871, 0.0
  %1888 = vst [vmem:[#allocation5 + $0x110] sm:$0xff] %v1880
  %1889 = vst [vmem:[#allocation5 + $0x118] sm:$0xff] %v1881
  %1890 = vst [vmem:[#allocation5 + $0x130] sm:$0xff] %v1882
  %1891 = vst [vmem:[#allocation5 + $0x138] sm:$0xff] %v1883
  %1892 = vst [vmem:[#allocation5 + $0x150] sm:$0xff] %v1884
  %1893 = vst [vmem:[#allocation5 + $0x158] sm:$0xff] %v1885
  %1894 = vst [vmem:[#allocation5 + $0x170] sm:$0xff] %v1886
  %1895 = vst [vmem:[#allocation5 + $0x178] sm:$0xff] %v1887
  %v1896 = vld [vmem:[#allocation3 + $0x80] sm:$0xff]
  %v1897 = vld [vmem:[#allocation3 + $0x88] sm:$0xff]
  %v1898 = vld [vmem:[#allocation3 + $0x90] sm:$0xff]
  %v1899 = vld [vmem:[#allocation3 + $0xa0] sm:$0xff]
  %v1900 = vld [vmem:[#allocation3 + $0xa8] sm:$0xff]
  %v1901 = vld [vmem:[#allocation3 + $0xb0] sm:$0xff]
  %v1902 = vld [vmem:[#allocation3 + $0xc0] sm:$0xff]
  %v1903 = vld [vmem:[#allocation3 + $0xc8] sm:$0xff]
  %v1904 = vld [vmem:[#allocation3 + $0xd0] sm:$0xff]
  %v1905 = vld [vmem:[#allocation3 + $0xe0] sm:$0xff]
  %v1906 = vld [vmem:[#allocation3 + $0xe8] sm:$0xff]
  %v1907 = vld [vmem:[#allocation3 + $0xf0] sm:$0xff]
  %1920 = vrot.lane.b32.xlu0 %v1896, 1
  %v1921 = vpop.permute.xlu0 %1920
  %1922 = vrot.lane.b32.xlu0 %v1897, 1
  %v1923 = vpop.permute.xlu0 %1922
  %1924 = vrot.lane.b32.xlu0 %v1898, 1
  %v1925 = vpop.permute.xlu0 %1924
  %1926 = vrot.lane.b32.xlu0 %v1899, 1
  %v1927 = vpop.permute.xlu0 %1926
  %1928 = vrot.lane.b32.xlu0 %v1900, 1
  %v1929 = vpop.permute.xlu0 %1928
  %1930 = vrot.lane.b32.xlu0 %v1901, 1
  %v1931 = vpop.permute.xlu0 %1930
  %1932 = vrot.lane.b32.xlu0 %v1902, 1
  %v1933 = vpop.permute.xlu0 %1932
  %1934 = vrot.lane.b32.xlu0 %v1903, 1
  %v1935 = vpop.permute.xlu0 %1934
  %1936 = vrot.lane.b32.xlu0 %v1904, 1
  %v1937 = vpop.permute.xlu0 %1936
  %1938 = vrot.lane.b32.xlu0 %v1905, 1
  %v1939 = vpop.permute.xlu0 %1938
  %1940 = vrot.lane.b32.xlu0 %v1906, 1
  %v1941 = vpop.permute.xlu0 %1940
  %1942 = vrot.lane.b32.xlu0 %v1907, 1
  %v1943 = vpop.permute.xlu0 %1942
  %v1944 = vsel %vm406, %v1921, %v1923
  %v1945 = vsel %vm406, %v1923, %v1925
  %v1946 = vsel %vm406, %v1927, %v1929
  %v1947 = vsel %vm406, %v1929, %v1931
  %v1948 = vsel %vm406, %v1933, %v1935
  %v1949 = vsel %vm406, %v1935, %v1937
  %v1950 = vsel %vm406, %v1939, %v1941
  %v1951 = vsel %vm406, %v1941, %v1943
  %v1960 = vsel %vm327, %v1944, 0.0
  %v1961 = vsel %vm328, %v1945, 0.0
  %v1962 = vsel %vm327, %v1946, 0.0
  %v1963 = vsel %vm328, %v1947, 0.0
  %v1964 = vsel %vm327, %v1948, 0.0
  %v1965 = vsel %vm328, %v1949, 0.0
  %v1966 = vsel %vm327, %v1950, 0.0
  %v1967 = vsel %vm328, %v1951, 0.0
  %1968 = vst [vmem:[#allocation5 + $0x190] sm:$0xff] %v1960
  %1969 = vst [vmem:[#allocation5 + $0x198] sm:$0xff] %v1961
  %1970 = vst [vmem:[#allocation5 + $0x1b0] sm:$0xff] %v1962
  %1971 = vst [vmem:[#allocation5 + $0x1b8] sm:$0xff] %v1963
  %1972 = vst [vmem:[#allocation5 + $0x1d0] sm:$0xff] %v1964
  %1973 = vst [vmem:[#allocation5 + $0x1d8] sm:$0xff] %v1965
  %1974 = vst [vmem:[#allocation5 + $0x1f0] sm:$0xff] %v1966
  %1975 = vst [vmem:[#allocation5 + $0x1f8] sm:$0xff] %v1967
  %v1976 = vld [vmem:[#allocation3 + $0x88] sm:$0xff]
  %v1977 = vld [vmem:[#allocation3 + $0x90] sm:$0xff]
  %v1978 = vld [vmem:[#allocation3 + $0xa8] sm:$0xff]
  %v1979 = vld [vmem:[#allocation3 + $0xb0] sm:$0xff]
  %v1980 = vld [vmem:[#allocation3 + $0xc8] sm:$0xff]
  %v1981 = vld [vmem:[#allocation3 + $0xd0] sm:$0xff]
  %v1982 = vld [vmem:[#allocation3 + $0xe8] sm:$0xff]
  %v1983 = vld [vmem:[#allocation3 + $0xf0] sm:$0xff]
  %1984 = vst [vmem:[#allocation5 + $0x210] sm:$0xff] %v1976
  %1985 = vst [vmem:[#allocation5 + $0x218] sm:$0xff] %v1977
  %1986 = vst [vmem:[#allocation5 + $0x230] sm:$0xff] %v1978
  %1987 = vst [vmem:[#allocation5 + $0x238] sm:$0xff] %v1979
  %1988 = vst [vmem:[#allocation5 + $0x250] sm:$0xff] %v1980
  %1989 = vst [vmem:[#allocation5 + $0x258] sm:$0xff] %v1981
  %1990 = vst [vmem:[#allocation5 + $0x270] sm:$0xff] %v1982
  %1991 = vst [vmem:[#allocation5 + $0x278] sm:$0xff] %v1983
  %v1992 = vld [vmem:[#allocation3 + $0x88] sm:$0xff]
  %v1993 = vld [vmem:[#allocation3 + $0x90] sm:$0xff]
  %v1994 = vld [vmem:[#allocation3 + $0x98] sm:$0xff]
  %v1995 = vld [vmem:[#allocation3 + $0xa8] sm:$0xff]
  %v1996 = vld [vmem:[#allocation3 + $0xb0] sm:$0xff]
  %v1997 = vld [vmem:[#allocation3 + $0xb8] sm:$0xff]
  %v1998 = vld [vmem:[#allocation3 + $0xc8] sm:$0xff]
  %v1999 = vld [vmem:[#allocation3 + $0xd0] sm:$0xff]
  %v2000 = vld [vmem:[#allocation3 + $0xd8] sm:$0xff]
  %v2001 = vld [vmem:[#allocation3 + $0xe8] sm:$0xff]
  %v2002 = vld [vmem:[#allocation3 + $0xf0] sm:$0xff]
  %v2003 = vld [vmem:[#allocation3 + $0xf8] sm:$0xff]
  %2016 = vrot.lane.b32.xlu0 %v1992, 127
  %v2017 = vpop.permute.xlu0 %2016
  %2018 = vrot.lane.b32.xlu0 %v1993, 127
  %v2019 = vpop.permute.xlu0 %2018
  %2020 = vrot.lane.b32.xlu0 %v1994, 127
  %v2021 = vpop.permute.xlu0 %2020
  %2022 = vrot.lane.b32.xlu0 %v1995, 127
  %v2023 = vpop.permute.xlu0 %2022
  %2024 = vrot.lane.b32.xlu0 %v1996, 127
  %v2025 = vpop.permute.xlu0 %2024
  %2026 = vrot.lane.b32.xlu0 %v1997, 127
  %v2027 = vpop.permute.xlu0 %2026
  %2028 = vrot.lane.b32.xlu0 %v1998, 127
  %v2029 = vpop.permute.xlu0 %2028
  %2030 = vrot.lane.b32.xlu0 %v1999, 127
  %v2031 = vpop.permute.xlu0 %2030
  %2032 = vrot.lane.b32.xlu0 %v2000, 127
  %v2033 = vpop.permute.xlu0 %2032
  %2034 = vrot.lane.b32.xlu0 %v2001, 127
  %v2035 = vpop.permute.xlu0 %2034
  %2036 = vrot.lane.b32.xlu0 %v2002, 127
  %v2037 = vpop.permute.xlu0 %2036
  %2038 = vrot.lane.b32.xlu0 %v2003, 127
  %v2039 = vpop.permute.xlu0 %2038
  %v2040 = vsel %vm437, %v2017, %v2019
  %v2041 = vsel %vm437, %v2019, %v2021
  %v2042 = vsel %vm437, %v2023, %v2025
  %v2043 = vsel %vm437, %v2025, %v2027
  %v2044 = vsel %vm437, %v2029, %v2031
  %v2045 = vsel %vm437, %v2031, %v2033
  %v2046 = vsel %vm437, %v2035, %v2037
  %v2047 = vsel %vm437, %v2037, %v2039
  %v2056 = vsel %vm374, %v2040, 0.0
  %v2057 = vsel %vm375, %v2041, 0.0
  %v2058 = vsel %vm374, %v2042, 0.0
  %v2059 = vsel %vm375, %v2043, 0.0
  %v2060 = vsel %vm374, %v2044, 0.0
  %v2061 = vsel %vm375, %v2045, 0.0
  %v2062 = vsel %vm374, %v2046, 0.0
  %v2063 = vsel %vm375, %v2047, 0.0
  %2064 = vst [vmem:[#allocation5 + $0x290] sm:$0xff] %v2056
  %2065 = vst [vmem:[#allocation5 + $0x298] sm:$0xff] %v2057
  %2066 = vst [vmem:[#allocation5 + $0x2b0] sm:$0xff] %v2058
  %2067 = vst [vmem:[#allocation5 + $0x2b8] sm:$0xff] %v2059
  %2068 = vst [vmem:[#allocation5 + $0x2d0] sm:$0xff] %v2060
  %2069 = vst [vmem:[#allocation5 + $0x2d8] sm:$0xff] %v2061
  %2070 = vst [vmem:[#allocation5 + $0x2f0] sm:$0xff] %v2062
  %2071 = vst [vmem:[#allocation5 + $0x2f8] sm:$0xff] %v2063
  %v2072 = vld [vmem:[#allocation3 + $0x88] sm:$0xff]
  %v2073 = vld [vmem:[#allocation3 + $0x90] sm:$0xff]
  %v2074 = vld [vmem:[#allocation3 + $0x98] sm:$0xff]
  %v2075 = vld [vmem:[#allocation3 + $0xa8] sm:$0xff]
  %v2076 = vld [vmem:[#allocation3 + $0xb0] sm:$0xff]
  %v2077 = vld [vmem:[#allocation3 + $0xb8] sm:$0xff]
  %v2078 = vld [vmem:[#allocation3 + $0xc8] sm:$0xff]
  %v2079 = vld [vmem:[#allocation3 + $0xd0] sm:$0xff]
  %v2080 = vld [vmem:[#allocation3 + $0xd8] sm:$0xff]
  %v2081 = vld [vmem:[#allocation3 + $0xe8] sm:$0xff]
  %v2082 = vld [vmem:[#allocation3 + $0xf0] sm:$0xff]
  %v2083 = vld [vmem:[#allocation3 + $0xf8] sm:$0xff]
  %2096 = vrot.lane.b32.xlu0 %v2072, 113
  %v2097 = vpop.permute.xlu0 %2096
  %2098 = vrot.lane.b32.xlu0 %v2073, 113
  %v2099 = vpop.permute.xlu0 %2098
  %2100 = vrot.lane.b32.xlu0 %v2074, 113
  %v2101 = vpop.permute.xlu0 %2100
  %2102 = vrot.lane.b32.xlu0 %v2075, 113
  %v2103 = vpop.permute.xlu0 %2102
  %2104 = vrot.lane.b32.xlu0 %v2076, 113
  %v2105 = vpop.permute.xlu0 %2104
  %2106 = vrot.lane.b32.xlu0 %v2077, 113
  %v2107 = vpop.permute.xlu0 %2106
  %2108 = vrot.lane.b32.xlu0 %v2078, 113
  %v2109 = vpop.permute.xlu0 %2108
  %2110 = vrot.lane.b32.xlu0 %v2079, 113
  %v2111 = vpop.permute.xlu0 %2110
  %2112 = vrot.lane.b32.xlu0 %v2080, 113
  %v2113 = vpop.permute.xlu0 %2112
  %2114 = vrot.lane.b32.xlu0 %v2081, 113
  %v2115 = vpop.permute.xlu0 %2114
  %2116 = vrot.lane.b32.xlu0 %v2082, 113
  %v2117 = vpop.permute.xlu0 %2116
  %2118 = vrot.lane.b32.xlu0 %v2083, 113
  %v2119 = vpop.permute.xlu0 %2118
  %v2120 = vsel %vm464, %v2097, %v2099
  %v2121 = vsel %vm464, %v2099, %v2101
  %v2122 = vsel %vm464, %v2103, %v2105
  %v2123 = vsel %vm464, %v2105, %v2107
  %v2124 = vsel %vm464, %v2109, %v2111
  %v2125 = vsel %vm464, %v2111, %v2113
  %v2126 = vsel %vm464, %v2115, %v2117
  %v2127 = vsel %vm464, %v2117, %v2119
  %v2136 = vsel %vm327, %v2120, 0.0
  %v2137 = vsel %vm328, %v2121, 0.0
  %v2138 = vsel %vm327, %v2122, 0.0
  %v2139 = vsel %vm328, %v2123, 0.0
  %v2140 = vsel %vm327, %v2124, 0.0
  %v2141 = vsel %vm328, %v2125, 0.0
  %v2142 = vsel %vm327, %v2126, 0.0
  %v2143 = vsel %vm328, %v2127, 0.0
  %2144 = vst [vmem:[#allocation5 + $0x310] sm:$0xff] %v2136
  %2145 = vst [vmem:[#allocation5 + $0x318] sm:$0xff] %v2137
  %2146 = vst [vmem:[#allocation5 + $0x330] sm:$0xff] %v2138
  %2147 = vst [vmem:[#allocation5 + $0x338] sm:$0xff] %v2139
  %2148 = vst [vmem:[#allocation5 + $0x350] sm:$0xff] %v2140
  %2149 = vst [vmem:[#allocation5 + $0x358] sm:$0xff] %v2141
  %2150 = vst [vmem:[#allocation5 + $0x370] sm:$0xff] %v2142
  %2151 = vst [vmem:[#allocation5 + $0x378] sm:$0xff] %v2143
  %v2152 = vld [vmem:[#allocation3 + $0x88] sm:$0xff]
  %v2153 = vld [vmem:[#allocation3 + $0x90] sm:$0xff]
  %v2154 = vld [vmem:[#allocation3 + $0x98] sm:$0xff]
  %v2155 = vld [vmem:[#allocation3 + $0xa8] sm:$0xff]
  %v2156 = vld [vmem:[#allocation3 + $0xb0] sm:$0xff]
  %v2157 = vld [vmem:[#allocation3 + $0xb8] sm:$0xff]
  %v2158 = vld [vmem:[#allocation3 + $0xc8] sm:$0xff]
  %v2159 = vld [vmem:[#allocation3 + $0xd0] sm:$0xff]
  %v2160 = vld [vmem:[#allocation3 + $0xd8] sm:$0xff]
  %v2161 = vld [vmem:[#allocation3 + $0xe8] sm:$0xff]
  %v2162 = vld [vmem:[#allocation3 + $0xf0] sm:$0xff]
  %v2163 = vld [vmem:[#allocation3 + $0xf8] sm:$0xff]
  %2176 = vrot.lane.b32.xlu0 %v2152, 112
  %v2177 = vpop.permute.xlu0 %2176
  %2178 = vrot.lane.b32.xlu0 %v2153, 112
  %v2179 = vpop.permute.xlu0 %2178
  %2180 = vrot.lane.b32.xlu0 %v2154, 112
  %v2181 = vpop.permute.xlu0 %2180
  %2182 = vrot.lane.b32.xlu0 %v2155, 112
  %v2183 = vpop.permute.xlu0 %2182
  %2184 = vrot.lane.b32.xlu0 %v2156, 112
  %v2185 = vpop.permute.xlu0 %2184
  %2186 = vrot.lane.b32.xlu0 %v2157, 112
  %v2187 = vpop.permute.xlu0 %2186
  %2188 = vrot.lane.b32.xlu0 %v2158, 112
  %v2189 = vpop.permute.xlu0 %2188
  %2190 = vrot.lane.b32.xlu0 %v2159, 112
  %v2191 = vpop.permute.xlu0 %2190
  %2192 = vrot.lane.b32.xlu0 %v2160, 112
  %v2193 = vpop.permute.xlu0 %2192
  %2194 = vrot.lane.b32.xlu0 %v2161, 112
  %v2195 = vpop.permute.xlu0 %2194
  %2196 = vrot.lane.b32.xlu0 %v2162, 112
  %v2197 = vpop.permute.xlu0 %2196
  %2198 = vrot.lane.b32.xlu0 %v2163, 112
  %v2199 = vpop.permute.xlu0 %2198
  %v2200 = vsel %vm488, %v2177, %v2179
  %v2201 = vsel %vm488, %v2179, %v2181
  %v2202 = vsel %vm488, %v2183, %v2185
  %v2203 = vsel %vm488, %v2185, %v2187
  %v2204 = vsel %vm488, %v2189, %v2191
  %v2205 = vsel %vm488, %v2191, %v2193
  %v2206 = vsel %vm488, %v2195, %v2197
  %v2207 = vsel %vm488, %v2197, %v2199
  %2216 = vst [vmem:[#allocation5 + $0x390] sm:$0xff] %v2200
  %2217 = vst [vmem:[#allocation5 + $0x398] sm:$0xff] %v2201
  %2218 = vst [vmem:[#allocation5 + $0x3b0] sm:$0xff] %v2202
  %2219 = vst [vmem:[#allocation5 + $0x3b8] sm:$0xff] %v2203
  %2220 = vst [vmem:[#allocation5 + $0x3d0] sm:$0xff] %v2204
  %2221 = vst [vmem:[#allocation5 + $0x3d8] sm:$0xff] %v2205
  %2222 = vst [vmem:[#allocation5 + $0x3f0] sm:$0xff] %v2206
  %2223 = vst [vmem:[#allocation5 + $0x3f8] sm:$0xff] %v2207
  %v2224 = vld [vmem:[#allocation3 + $0x88] sm:$0xff]
  %v2225 = vld [vmem:[#allocation3 + $0x90] sm:$0xff]
  %v2226 = vld [vmem:[#allocation3 + $0x98] sm:$0xff]
  %v2227 = vld [vmem:[#allocation3 + $0xa8] sm:$0xff]
  %v2228 = vld [vmem:[#allocation3 + $0xb0] sm:$0xff]
  %v2229 = vld [vmem:[#allocation3 + $0xb8] sm:$0xff]
  %v2230 = vld [vmem:[#allocation3 + $0xc8] sm:$0xff]
  %v2231 = vld [vmem:[#allocation3 + $0xd0] sm:$0xff]
  %v2232 = vld [vmem:[#allocation3 + $0xd8] sm:$0xff]
  %v2233 = vld [vmem:[#allocation3 + $0xe8] sm:$0xff]
  %v2234 = vld [vmem:[#allocation3 + $0xf0] sm:$0xff]
  %v2235 = vld [vmem:[#allocation3 + $0xf8] sm:$0xff]
  %2248 = vrot.lane.b32.xlu0 %v2224, 111
  %v2249 = vpop.permute.xlu0 %2248
  %2250 = vrot.lane.b32.xlu0 %v2225, 111
  %v2251 = vpop.permute.xlu0 %2250
  %2252 = vrot.lane.b32.xlu0 %v2226, 111
  %v2253 = vpop.permute.xlu0 %2252
  %2254 = vrot.lane.b32.xlu0 %v2227, 111
  %v2255 = vpop.permute.xlu0 %2254
  %2256 = vrot.lane.b32.xlu0 %v2228, 111
  %v2257 = vpop.permute.xlu0 %2256
  %2258 = vrot.lane.b32.xlu0 %v2229, 111
  %v2259 = vpop.permute.xlu0 %2258
  %2260 = vrot.lane.b32.xlu0 %v2230, 111
  %v2261 = vpop.permute.xlu0 %2260
  %2262 = vrot.lane.b32.xlu0 %v2231, 111
  %v2263 = vpop.permute.xlu0 %2262
  %2264 = vrot.lane.b32.xlu0 %v2232, 111
  %v2265 = vpop.permute.xlu0 %2264
  %2266 = vrot.lane.b32.xlu0 %v2233, 111
  %v2267 = vpop.permute.xlu0 %2266
  %2268 = vrot.lane.b32.xlu0 %v2234, 111
  %v2269 = vpop.permute.xlu0 %2268
  %2270 = vrot.lane.b32.xlu0 %v2235, 111
  %v2271 = vpop.permute.xlu0 %2270
  %v2272 = vsel %vm507, %v2249, %v2251
  %v2273 = vsel %vm507, %v2251, %v2253
  %v2274 = vsel %vm507, %v2255, %v2257
  %v2275 = vsel %vm507, %v2257, %v2259
  %v2276 = vsel %vm507, %v2261, %v2263
  %v2277 = vsel %vm507, %v2263, %v2265
  %v2278 = vsel %vm507, %v2267, %v2269
  %v2279 = vsel %vm507, %v2269, %v2271
  %v2288 = vsel %vm374, %v2272, 0.0
  %v2289 = vsel %vm375, %v2273, 0.0
  %v2290 = vsel %vm374, %v2274, 0.0
  %v2291 = vsel %vm375, %v2275, 0.0
  %v2292 = vsel %vm374, %v2276, 0.0
  %v2293 = vsel %vm375, %v2277, 0.0
  %v2294 = vsel %vm374, %v2278, 0.0
  %v2295 = vsel %vm375, %v2279, 0.0
  %2296 = vst [vmem:[#allocation5 + $0x410] sm:$0xff] %v2288
  %2297 = vst [vmem:[#allocation5 + $0x418] sm:$0xff] %v2289
  %2298 = vst [vmem:[#allocation5 + $0x430] sm:$0xff] %v2290
  %2299 = vst [vmem:[#allocation5 + $0x438] sm:$0xff] %v2291
  %2300 = vst [vmem:[#allocation5 + $0x450] sm:$0xff] %v2292
  %2301 = vst [vmem:[#allocation5 + $0x458] sm:$0xff] %v2293
  %2302 = vst [vmem:[#allocation5 + $0x470] sm:$0xff] %v2294
  %2303 = vst [vmem:[#allocation5 + $0x478] sm:$0xff] %v2295
  %v2304 = vld [vmem:[%s6] sm:$0xff]
  %v2305 = vld [vmem:[%s6 + $0x8] sm:$0xf]
  %v2306 = vld [vmem:[#allocation5] sm:$0xff]
  %v2307 = vld [vmem:[#allocation5 + $0x8] sm:$0xff]
  %v2308 = vld [vmem:[#allocation5 + $0x10] sm:$0xff]
  %v2309 = vld [vmem:[#allocation5 + $0x18] sm:$0xff]
  %v2310 = vld [vmem:[#allocation5 + $0x20] sm:$0xff]
  %v2311 = vld [vmem:[#allocation5 + $0x28] sm:$0xff]
  %v2312 = vld [vmem:[#allocation5 + $0x30] sm:$0xff]
  %v2313 = vld [vmem:[#allocation5 + $0x38] sm:$0xff]
  %v2314 = vld [vmem:[#allocation5 + $0x40] sm:$0xff]
  %v2315 = vld [vmem:[#allocation5 + $0x48] sm:$0xff]
  %v2316 = vld [vmem:[#allocation5 + $0x50] sm:$0xff]
  %v2317 = vld [vmem:[#allocation5 + $0x58] sm:$0xff]
  %v2318 = vld [vmem:[#allocation5 + $0x60] sm:$0xff]
  %v2319 = vld [vmem:[#allocation5 + $0x68] sm:$0xff]
  %v2320 = vld [vmem:[#allocation5 + $0x70] sm:$0xff]
  %v2321 = vld [vmem:[#allocation5 + $0x78] sm:$0xff]
  %v2322 = vld [vmem:[#allocation5 + $0x80] sm:$0xff]
  %v2323 = vld [vmem:[#allocation5 + $0x88] sm:$0xff]
  %v2324 = vld [vmem:[#allocation5 + $0x90] sm:$0xff]
  %v2325 = vld [vmem:[#allocation5 + $0x98] sm:$0xff]
  %v2326 = vld [vmem:[#allocation5 + $0xa0] sm:$0xff]
  %v2327 = vld [vmem:[#allocation5 + $0xa8] sm:$0xff]
  %v2328 = vld [vmem:[#allocation5 + $0xb0] sm:$0xff]
  %v2329 = vld [vmem:[#allocation5 + $0xb8] sm:$0xff]
  %v2330 = vld [vmem:[#allocation5 + $0xc0] sm:$0xff]
  %v2331 = vld [vmem:[#allocation5 + $0xc8] sm:$0xff]
  %v2332 = vld [vmem:[#allocation5 + $0xd0] sm:$0xff]
  %v2333 = vld [vmem:[#allocation5 + $0xd8] sm:$0xff]
  %v2334 = vld [vmem:[#allocation5 + $0xe0] sm:$0xff]
  %v2335 = vld [vmem:[#allocation5 + $0xe8] sm:$0xff]
  %v2336 = vld [vmem:[#allocation5 + $0xf0] sm:$0xff]
  %v2337 = vld [vmem:[#allocation5 + $0xf8] sm:$0xff]
  %v2338 = vld [vmem:[#allocation5 + $0x100] sm:$0xff]
  %v2339 = vld [vmem:[#allocation5 + $0x108] sm:$0xff]
  %v2340 = vld [vmem:[#allocation5 + $0x110] sm:$0xff]
  %v2341 = vld [vmem:[#allocation5 + $0x118] sm:$0xff]
  %v2342 = vld [vmem:[#allocation5 + $0x120] sm:$0xff]
  %v2343 = vld [vmem:[#allocation5 + $0x128] sm:$0xff]
  %v2344 = vld [vmem:[#allocation5 + $0x130] sm:$0xff]
  %v2345 = vld [vmem:[#allocation5 + $0x138] sm:$0xff]
  %v2346 = vld [vmem:[#allocation5 + $0x140] sm:$0xff]
  %v2347 = vld [vmem:[#allocation5 + $0x148] sm:$0xff]
  %v2348 = vld [vmem:[#allocation5 + $0x150] sm:$0xff]
  %v2349 = vld [vmem:[#allocation5 + $0x158] sm:$0xff]
  %v2350 = vld [vmem:[#allocation5 + $0x160] sm:$0xff]
  %v2351 = vld [vmem:[#allocation5 + $0x168] sm:$0xff]
  %v2352 = vld [vmem:[#allocation5 + $0x170] sm:$0xff]
  %v2353 = vld [vmem:[#allocation5 + $0x178] sm:$0xff]
  %v2354 = vld [vmem:[#allocation5 + $0x180] sm:$0xff]
  %v2355 = vld [vmem:[#allocation5 + $0x188] sm:$0xff]
  %v2356 = vld [vmem:[#allocation5 + $0x190] sm:$0xff]
  %v2357 = vld [vmem:[#allocation5 + $0x198] sm:$0xff]
  %v2358 = vld [vmem:[#allocation5 + $0x1a0] sm:$0xff]
  %v2359 = vld [vmem:[#allocation5 + $0x1a8] sm:$0xff]
  %v2360 = vld [vmem:[#allocation5 + $0x1b0] sm:$0xff]
  %v2361 = vld [vmem:[#allocation5 + $0x1b8] sm:$0xff]
  %v2362 = vld [vmem:[#allocation5 + $0x1c0] sm:$0xff]
  %v2363 = vld [vmem:[#allocation5 + $0x1c8] sm:$0xff]
  %v2364 = vld [vmem:[#allocation5 + $0x1d0] sm:$0xff]
  %v2365 = vld [vmem:[#allocation5 + $0x1d8] sm:$0xff]
  %v2366 = vld [vmem:[#allocation5 + $0x1e0] sm:$0xff]
  %v2367 = vld [vmem:[#allocation5 + $0x1e8] sm:$0xff]
  %v2368 = vld [vmem:[#allocation5 + $0x1f0] sm:$0xff]
  %v2369 = vld [vmem:[#allocation5 + $0x1f8] sm:$0xff]
  %v2370 = vld [vmem:[#allocation5 + $0x200] sm:$0xff]
  %v2371 = vld [vmem:[#allocation5 + $0x208] sm:$0xff]
  %v2372 = vld [vmem:[#allocation5 + $0x210] sm:$0xff]
  %v2373 = vld [vmem:[#allocation5 + $0x218] sm:$0xff]
  %v2374 = vld [vmem:[#allocation5 + $0x220] sm:$0xff]
  %v2375 = vld [vmem:[#allocation5 + $0x228] sm:$0xff]
  %v2376 = vld [vmem:[#allocation5 + $0x230] sm:$0xff]
  %v2377 = vld [vmem:[#allocation5 + $0x238] sm:$0xff]
  %v2378 = vld [vmem:[#allocation5 + $0x240] sm:$0xff]
  %v2379 = vld [vmem:[#allocation5 + $0x248] sm:$0xff]
  %v2380 = vld [vmem:[#allocation5 + $0x250] sm:$0xff]
  %v2381 = vld [vmem:[#allocation5 + $0x258] sm:$0xff]
  %v2382 = vld [vmem:[#allocation5 + $0x260] sm:$0xff]
  %v2383 = vld [vmem:[#allocation5 + $0x268] sm:$0xff]
  %v2384 = vld [vmem:[#allocation5 + $0x270] sm:$0xff]
  %v2385 = vld [vmem:[#allocation5 + $0x278] sm:$0xff]
  %v2386 = vld [vmem:[#allocation5 + $0x280] sm:$0xff]
  %v2387 = vld [vmem:[#allocation5 + $0x288] sm:$0xff]
  %v2388 = vld [vmem:[#allocation5 + $0x290] sm:$0xff]
  %v2389 = vld [vmem:[#allocation5 + $0x298] sm:$0xff]
  %v2390 = vld [vmem:[#allocation5 + $0x2a0] sm:$0xff]
  %v2391 = vld [vmem:[#allocation5 + $0x2a8] sm:$0xff]
  %v2392 = vld [vmem:[#allocation5 + $0x2b0] sm:$0xff]
  %v2393 = vld [vmem:[#allocation5 + $0x2b8] sm:$0xff]
  %v2394 = vld [vmem:[#allocation5 + $0x2c0] sm:$0xff]
  %v2395 = vld [vmem:[#allocation5 + $0x2c8] sm:$0xff]
  %v2396 = vld [vmem:[#allocation5 + $0x2d0] sm:$0xff]
  %v2397 = vld [vmem:[#allocation5 + $0x2d8] sm:$0xff]
  %v2398 = vld [vmem:[#allocation5 + $0x2e0] sm:$0xff]
  %v2399 = vld [vmem:[#allocation5 + $0x2e8] sm:$0xff]
  %v2400 = vld [vmem:[#allocation5 + $0x2f0] sm:$0xff]
  %v2401 = vld [vmem:[#allocation5 + $0x2f8] sm:$0xff]
  %v2402 = vld [vmem:[#allocation5 + $0x300] sm:$0xff]
  %v2403 = vld [vmem:[#allocation5 + $0x308] sm:$0xff]
  %v2404 = vld [vmem:[#allocation5 + $0x310] sm:$0xff]
  %v2405 = vld [vmem:[#allocation5 + $0x318] sm:$0xff]
  %v2406 = vld [vmem:[#allocation5 + $0x320] sm:$0xff]
  %v2407 = vld [vmem:[#allocation5 + $0x328] sm:$0xff]
  %v2408 = vld [vmem:[#allocation5 + $0x330] sm:$0xff]
  %v2409 = vld [vmem:[#allocation5 + $0x338] sm:$0xff]
  %v2410 = vld [vmem:[#allocation5 + $0x340] sm:$0xff]
  %v2411 = vld [vmem:[#allocation5 + $0x348] sm:$0xff]
  %v2412 = vld [vmem:[#allocation5 + $0x350] sm:$0xff]
  %v2413 = vld [vmem:[#allocation5 + $0x358] sm:$0xff]
  %v2414 = vld [vmem:[#allocation5 + $0x360] sm:$0xff]
  %v2415 = vld [vmem:[#allocation5 + $0x368] sm:$0xff]
  %v2416 = vld [vmem:[#allocation5 + $0x370] sm:$0xff]
  %v2417 = vld [vmem:[#allocation5 + $0x378] sm:$0xff]
  %v2418 = vld [vmem:[#allocation5 + $0x380] sm:$0xff]
  %v2419 = vld [vmem:[#allocation5 + $0x388] sm:$0xff]
  %v2420 = vld [vmem:[#allocation5 + $0x390] sm:$0xff]
  %v2421 = vld [vmem:[#allocation5 + $0x398] sm:$0xff]
  %v2422 = vld [vmem:[#allocation5 + $0x3a0] sm:$0xff]
  %v2423 = vld [vmem:[#allocation5 + $0x3a8] sm:$0xff]
  %v2424 = vld [vmem:[#allocation5 + $0x3b0] sm:$0xff]
  %v2425 = vld [vmem:[#allocation5 + $0x3b8] sm:$0xff]
  %v2426 = vld [vmem:[#allocation5 + $0x3c0] sm:$0xff]
  %v2427 = vld [vmem:[#allocation5 + $0x3c8] sm:$0xff]
  %v2428 = vld [vmem:[#allocation5 + $0x3d0] sm:$0xff]
  %v2429 = vld [vmem:[#allocation5 + $0x3d8] sm:$0xff]
  %v2430 = vld [vmem:[#allocation5 + $0x3e0] sm:$0xff]
  %v2431 = vld [vmem:[#allocation5 + $0x3e8] sm:$0xff]
  %v2432 = vld [vmem:[#allocation5 + $0x3f0] sm:$0xff]
  %v2433 = vld [vmem:[#allocation5 + $0x3f8] sm:$0xff]
  %v2434 = vld [vmem:[#allocation5 + $0x400] sm:$0xff]
  %v2435 = vld [vmem:[#allocation5 + $0x408] sm:$0xff]
  %v2436 = vld [vmem:[#allocation5 + $0x410] sm:$0xff]
  %v2437 = vld [vmem:[#allocation5 + $0x418] sm:$0xff]
  %v2438 = vld [vmem:[#allocation5 + $0x420] sm:$0xff]
  %v2439 = vld [vmem:[#allocation5 + $0x428] sm:$0xff]
  %v2440 = vld [vmem:[#allocation5 + $0x430] sm:$0xff]
  %v2441 = vld [vmem:[#allocation5 + $0x438] sm:$0xff]
  %v2442 = vld [vmem:[#allocation5 + $0x440] sm:$0xff]
  %v2443 = vld [vmem:[#allocation5 + $0x448] sm:$0xff]
  %v2444 = vld [vmem:[#allocation5 + $0x450] sm:$0xff]
  %v2445 = vld [vmem:[#allocation5 + $0x458] sm:$0xff]
  %v2446 = vld [vmem:[#allocation5 + $0x460] sm:$0xff]
  %v2447 = vld [vmem:[#allocation5 + $0x468] sm:$0xff]
  %v2448 = vld [vmem:[#allocation5 + $0x470] sm:$0xff]
  %v2449 = vld [vmem:[#allocation5 + $0x478] sm:$0xff]
  %v2450 = vld [vmem:[%s7] sm:$0xf]
  %2452 = vset.pattern.permute.xlu0 0
  %2453 = vperm.xlu0 %2452, %v2450
  %v2454 = vpop.permute.xlu0 %2453
  %v2458 = vcombine.high %v2304, %v2304
  %v2460 = vsel %vm64, %v2305, 0
  %2462 = vmatprep.subr.mxu0 %v2307
  %2463 = vmatpush1.msra.mxu0 %v2306
  %2464 = vmatprep.subr.mxu0 %v2311
  %2465 = vmatpush1.msra.mxu0 %v2310
  %2466 = vmatprep.subr.mxu0 %v2315
  %2467 = vmatpush1.msra.mxu0 %v2314
  %2468 = vmatprep.subr.mxu0 %v2319
  %2469 = vmatpush1.msra.mxu0 %v2318
  %2470 = vmatprep.subr.mxu0 %v2323
  %2471 = vmatpush1.msra.mxu0 %v2322
  %2472 = vmatprep.subr.mxu0 %v2327
  %2473 = vmatpush1.msra.mxu0 %v2326
  %2474 = vmatprep.subr.mxu0 %v2331
  %2475 = vmatpush1.msra.mxu0 %v2330
  %2476 = vmatprep.subr.mxu0 %v2335
  %2477 = vmatpush1.msra.mxu0 %v2334
  %2478 = vmatprep.subr.mxu0 %v2339
  %2479 = vmatpush1.msra.mxu0 %v2338
  %2480 = vmatprep.subr.mxu0 %v2343
  %2481 = vmatpush1.msra.mxu0 %v2342
  %2482 = vmatprep.subr.mxu0 %v2347
  %2483 = vmatpush1.msra.mxu0 %v2346
  %2484 = vmatprep.subr.mxu0 %v2351
  %2485 = vmatpush1.msra.mxu0 %v2350
  %2486 = vmatprep.subr.mxu0 %v2355
  %2487 = vmatpush1.msra.mxu0 %v2354
  %2488 = vmatprep.subr.mxu0 %v2359
  %2489 = vmatpush1.msra.mxu0 %v2358
  %2490 = vmatprep.subr.mxu0 %v2363
  %2491 = vmatpush1.msra.mxu0 %v2362
  %2492 = vmatprep.subr.mxu0 %v2367
  %2493 = vmatpush1.msra.mxu0 %v2366
  %2494 = vmatprep.subr.mxu0 %v2371
  %2495 = vmatpush1.msra.mxu0 %v2370
  %2496 = vmatprep.subr.mxu0 %v2375
  %2497 = vmatpush1.msra.mxu0 %v2374
  %2498 = vmatprep.subr.mxu0 %v2379
  %2499 = vmatpush1.msra.mxu0 %v2378
  %2500 = vmatprep.subr.mxu0 %v2383
  %2501 = vmatpush1.msra.mxu0 %v2382
  %2502 = vmatprep.subr.mxu0 %v2387
  %2503 = vmatpush1.msra.mxu0 %v2386
  %2504 = vmatprep.subr.mxu0 %v2391
  %2505 = vmatpush1.msra.mxu0 %v2390
  %2506 = vmatprep.subr.mxu0 %v2395
  %2507 = vmatpush1.msra.mxu0 %v2394
  %2508 = vmatprep.subr.mxu0 %v2399
  %2509 = vmatpush1.msra.mxu0 %v2398
  %2510 = vmatprep.subr.mxu0 %v2403
  %2511 = vmatpush1.msra.mxu0 %v2402
  %2512 = vmatprep.subr.mxu0 %v2407
  %2513 = vmatpush1.msra.mxu0 %v2406
  %2514 = vmatprep.subr.mxu0 %v2411
  %2515 = vmatpush1.msra.mxu0 %v2410
  %2516 = vmatprep.subr.mxu0 %v2415
  %2517 = vmatpush1.msra.mxu0 %v2414
  %2518 = vmatprep.subr.mxu0 %v2419
  %2519 = vmatpush1.msra.mxu0 %v2418
  %2520 = vmatprep.subr.mxu0 %v2423
  %2521 = vmatpush1.msra.mxu0 %v2422
  %2522 = vmatprep.subr.mxu0 %v2427
  %2523 = vmatpush1.msra.mxu0 %v2426
  %2524 = vmatprep.subr.mxu0 %v2431
  %2525 = vmatpush1.msra.mxu0 %v2430
  %2526 = vmatprep.mubr.f32.mxu0 %v2458
  %2527 = vmatmul.mubr.f32.gmra.mrb[0].mxu0 %v2304
  %v2528 = vpop.f32.mrb[0].mxu0
  %v2529 = vadd.f32 %v2454, %v2528
  %v2530 = vpop.f32.mrb[0].mxu0
  %v2531 = vadd.f32 %v2454, %v2530
  %2532 = vdwg.mxu0
  %2533 = vmatprep.subr.mxu0 %v2435
  %2534 = vmatpush1.msra.mxu0 %v2434
  %2535 = vmatprep.subr.mxu0 %v2439
  %2536 = vmatpush1.msra.mxu0 %v2438
  %2537 = vmatprep.subr.mxu0 %v2443
  %2538 = vmatpush1.msra.mxu0 %v2442
  %2539 = vmatprep.subr.mxu0 %v2447
  %2540 = vmatpush1.msra.mxu0 %v2446
  %2541 = vmatprep.subr.mxu0 0.0
  %2542 = vmatpush1.msra.mxu0 0.0
  %2543 = vmatprep.subr.mxu0 0.0
  %2544 = vmatpush1.msra.mxu0 0.0
  %2545 = vmatprep.subr.mxu0 0.0
  %2546 = vmatpush1.msra.mxu0 0.0
  %2547 = vmatprep.subr.mxu0 0.0
  %2548 = vmatpush1.msra.mxu0 0.0
  %2549 = vmatprep.subr.mxu0 0.0
  %2550 = vmatpush1.msra.mxu0 0.0
  %2551 = vmatprep.subr.mxu0 0.0
  %2552 = vmatpush1.msra.mxu0 0.0
  %2553 = vmatprep.subr.mxu0 0.0
  %2554 = vmatpush1.msra.mxu0 0.0
  %2555 = vmatprep.subr.mxu0 0.0
  %2556 = vmatpush1.msra.mxu0 0.0
  %2557 = vmatprep.subr.mxu0 0.0
  %2558 = vmatpush1.msra.mxu0 0.0
  %2559 = vmatprep.subr.mxu0 0.0
  %2560 = vmatpush1.msra.mxu0 0.0
  %2561 = vmatprep.subr.mxu0 0.0
  %2562 = vmatpush1.msra.mxu0 0.0
  %2563 = vmatprep.subr.mxu0 0.0
  %2564 = vmatpush1.msra.mxu0 0.0
  %2565 = vmatprep.subr.mxu0 0.0
  %2566 = vmatpush1.msra.mxu0 0.0
  %2567 = vmatprep.subr.mxu0 0.0
  %2568 = vmatpush1.msra.mxu0 0.0
  %2569 = vmatprep.subr.mxu0 0.0
  %2570 = vmatpush1.msra.mxu0 0.0
  %2571 = vmatprep.subr.mxu0 0.0
  %2572 = vmatpush1.msra.mxu0 0.0
  %2573 = vmatprep.subr.mxu0 0.0
  %2574 = vmatpush1.msra.mxu0 0.0
  %2575 = vmatprep.subr.mxu0 0.0
  %2576 = vmatpush1.msra.mxu0 0.0
  %2577 = vmatprep.subr.mxu0 0.0
  %2578 = vmatpush1.msra.mxu0 0.0
  %2579 = vmatprep.subr.mxu0 0.0
  %2580 = vmatpush1.msra.mxu0 0.0
  %2581 = vmatprep.subr.mxu0 0.0
  %2582 = vmatpush1.msra.mxu0 0.0
  %2583 = vmatprep.subr.mxu0 0.0
  %2584 = vmatpush1.msra.mxu0 0.0
  %2585 = vmatprep.subr.mxu0 0.0
  %2586 = vmatpush1.msra.mxu0 0.0
  %2587 = vmatprep.subr.mxu0 0.0
  %2588 = vmatpush1.msra.mxu0 0.0
  %2589 = vmatprep.subr.mxu0 0.0
  %2590 = vmatpush1.msra.mxu0 0.0
  %2591 = vmatprep.subr.mxu0 0.0
  %2592 = vmatpush1.msra.mxu0 0.0
  %2593 = vmatprep.subr.mxu0 0.0
  %2594 = vmatpush1.msra.mxu0 0.0
  %2595 = vmatprep.subr.mxu0 0.0
  %2596 = vmatpush1.msra.mxu0 0.0
  %2597 = vmatprep.mubr.f32.mxu0 0.0
  %2598 = vmatmul.mubr.f32.gmra.mrb[0].mxu0 %v2460
  %v2599 = vpop.f32.mrb[0].mxu0
  %v2600 = vadd.f32 %v2529, %v2599
  %v2601 = vpop.f32.mrb[0].mxu0
  %v2602 = vadd.f32 %v2531, %v2601
  %2603 = vdwg.mxu0
  %2604 = vmatprep.subr.mxu0 %v2309
  %2605 = vmatpush1.msra.mxu0 %v2308
  %2606 = vmatprep.subr.mxu0 %v2313
  %2607 = vmatpush1.msra.mxu0 %v2312
  %2608 = vmatprep.subr.mxu0 %v2317
  %2609 = vmatpush1.msra.mxu0 %v2316
  %2610 = vmatprep.subr.mxu0 %v2321
  %2611 = vmatpush1.msra.mxu0 %v2320
  %2612 = vmatprep.subr.mxu0 %v2325
  %2613 = vmatpush1.msra.mxu0 %v2324
  %2614 = vmatprep.subr.mxu0 %v2329
  %2615 = vmatpush1.msra.mxu0 %v2328
  %2616 = vmatprep.subr.mxu0 %v2333
  %2617 = vmatpush1.msra.mxu0 %v2332
  %2618 = vmatprep.subr.mxu0 %v2337
  %2619 = vmatpush1.msra.mxu0 %v2336
  %2620 = vmatprep.subr.mxu0 %v2341
  %2621 = vmatpush1.msra.mxu0 %v2340
  %2622 = vmatprep.subr.mxu0 %v2345
  %2623 = vmatpush1.msra.mxu0 %v2344
  %2624 = vmatprep.subr.mxu0 %v2349
  %2625 = vmatpush1.msra.mxu0 %v2348
  %2626 = vmatprep.subr.mxu0 %v2353
  %2627 = vmatpush1.msra.mxu0 %v2352
  %2628 = vmatprep.subr.mxu0 %v2357
  %2629 = vmatpush1.msra.mxu0 %v2356
  %2630 = vmatprep.subr.mxu0 %v2361
  %2631 = vmatpush1.msra.mxu0 %v2360
  %2632 = vmatprep.subr.mxu0 %v2365
  %2633 = vmatpush1.msra.mxu0 %v2364
  %2634 = vmatprep.subr.mxu0 %v2369
  %2635 = vmatpush1.msra.mxu0 %v2368
  %2636 = vmatprep.subr.mxu0 %v2373
  %2637 = vmatpush1.msra.mxu0 %v2372
  %2638 = vmatprep.subr.mxu0 %v2377
  %2639 = vmatpush1.msra.mxu0 %v2376
  %2640 = vmatprep.subr.mxu0 %v2381
  %2641 = vmatpush1.msra.mxu0 %v2380
  %2642 = vmatprep.subr.mxu0 %v2385
  %2643 = vmatpush1.msra.mxu0 %v2384
  %2644 = vmatprep.subr.mxu0 %v2389
  %2645 = vmatpush1.msra.mxu0 %v2388
  %2646 = vmatprep.subr.mxu0 %v2393
  %2647 = vmatpush1.msra.mxu0 %v2392
  %2648 = vmatprep.subr.mxu0 %v2397
  %2649 = vmatpush1.msra.mxu0 %v2396
  %2650 = vmatprep.subr.mxu0 %v2401
  %2651 = vmatpush1.msra.mxu0 %v2400
  %2652 = vmatprep.subr.mxu0 %v2405
  %2653 = vmatpush1.msra.mxu0 %v2404
  %2654 = vmatprep.subr.mxu0 %v2409
  %2655 = vmatpush1.msra.mxu0 %v2408
  %2656 = vmatprep.subr.mxu0 %v2413
  %2657 = vmatpush1.msra.mxu0 %v2412
  %2658 = vmatprep.subr.mxu0 %v2417
  %2659 = vmatpush1.msra.mxu0 %v2416
  %2660 = vmatprep.subr.mxu0 %v2421
  %2661 = vmatpush1.msra.mxu0 %v2420
  %2662 = vmatprep.subr.mxu0 %v2425
  %2663 = vmatpush1.msra.mxu0 %v2424
  %2664 = vmatprep.subr.mxu0 %v2429
  %2665 = vmatpush1.msra.mxu0 %v2428
  %2666 = vmatprep.subr.mxu0 %v2433
  %2667 = vmatpush1.msra.mxu0 %v2432
  %2668 = vmatprep.mubr.f32.mxu0 %v2458
  %2669 = vmatmul.mubr.f32.gmra.mrb[0].mxu0 %v2304
  %v2670 = vpop.f32.mrb[0].mxu0
  %v2671 = vadd.f32 %v2454, %v2670
  %v2672 = vpop.f32.mrb[0].mxu0
  %v2673 = vadd.f32 %v2454, %v2672
  %2674 = vdwg.mxu0
  %2675 = vmatprep.subr.mxu0 %v2437
  %2676 = vmatpush1.msra.mxu0 %v2436
  %2677 = vmatprep.subr.mxu0 %v2441
  %2678 = vmatpush1.msra.mxu0 %v2440
  %2679 = vmatprep.subr.mxu0 %v2445
  %2680 = vmatpush1.msra.mxu0 %v2444
  %2681 = vmatprep.subr.mxu0 %v2449
  %2682 = vmatpush1.msra.mxu0 %v2448
  %2683 = vmatprep.subr.mxu0 0.0
  %2684 = vmatpush1.msra.mxu0 0.0
  %2685 = vmatprep.subr.mxu0 0.0
  %2686 = vmatpush1.msra.mxu0 0.0
  %2687 = vmatprep.subr.mxu0 0.0
  %2688 = vmatpush1.msra.mxu0 0.0
  %2689 = vmatprep.subr.mxu0 0.0
  %2690 = vmatpush1.msra.mxu0 0.0
  %2691 = vmatprep.subr.mxu0 0.0
  %2692 = vmatpush1.msra.mxu0 0.0
  %2693 = vmatprep.subr.mxu0 0.0
  %2694 = vmatpush1.msra.mxu0 0.0
  %2695 = vmatprep.subr.mxu0 0.0
  %2696 = vmatpush1.msra.mxu0 0.0
  %2697 = vmatprep.subr.mxu0 0.0
  %2698 = vmatpush1.msra.mxu0 0.0
  %2699 = vmatprep.subr.mxu0 0.0
  %2700 = vmatpush1.msra.mxu0 0.0
  %2701 = vmatprep.subr.mxu0 0.0
  %2702 = vmatpush1.msra.mxu0 0.0
  %2703 = vmatprep.subr.mxu0 0.0
  %2704 = vmatpush1.msra.mxu0 0.0
  %2705 = vmatprep.subr.mxu0 0.0
  %2706 = vmatpush1.msra.mxu0 0.0
  %2707 = vmatprep.subr.mxu0 0.0
  %2708 = vmatpush1.msra.mxu0 0.0
  %2709 = vmatprep.subr.mxu0 0.0
  %2710 = vmatpush1.msra.mxu0 0.0
  %2711 = vmatprep.subr.mxu0 0.0
  %2712 = vmatpush1.msra.mxu0 0.0
  %2713 = vmatprep.subr.mxu0 0.0
  %2714 = vmatpush1.msra.mxu0 0.0
  %2715 = vmatprep.subr.mxu0 0.0
  %2716 = vmatpush1.msra.mxu0 0.0
  %2717 = vmatprep.subr.mxu0 0.0
  %2718 = vmatpush1.msra.mxu0 0.0
  %2719 = vmatprep.subr.mxu0 0.0
  %2720 = vmatpush1.msra.mxu0 0.0
  %2721 = vmatprep.subr.mxu0 0.0
  %2722 = vmatpush1.msra.mxu0 0.0
  %2723 = vmatprep.subr.mxu0 0.0
  %2724 = vmatpush1.msra.mxu0 0.0
  %2725 = vmatprep.subr.mxu0 0.0
  %2726 = vmatpush1.msra.mxu0 0.0
  %2727 = vmatprep.subr.mxu0 0.0
  %2728 = vmatpush1.msra.mxu0 0.0
  %2729 = vmatprep.subr.mxu0 0.0
  %2730 = vmatpush1.msra.mxu0 0.0
  %2731 = vmatprep.subr.mxu0 0.0
  %2732 = vmatpush1.msra.mxu0 0.0
  %2733 = vmatprep.subr.mxu0 0.0
  %2734 = vmatpush1.msra.mxu0 0.0
  %2735 = vmatprep.subr.mxu0 0.0
  %2736 = vmatpush1.msra.mxu0 0.0
  %2737 = vmatprep.subr.mxu0 0.0
  %2738 = vmatpush1.msra.mxu0 0.0
  %2739 = vmatprep.mubr.f32.mxu0 0.0
  %2740 = vmatmul.mubr.f32.gmra.mrb[0].mxu0 %v2460
  %v2741 = vpop.f32.mrb[0].mxu0
  %v2742 = vadd.f32 %v2671, %v2741
  %v2743 = vpop.f32.mrb[0].mxu0
  %v2744 = vadd.f32 %v2673, %v2743
  %2745 = vdwg.mxu0
  %2746 = vst [vmem:[%s9] sm:$0xf] %v2600
  %2747 = vst [vmem:[%s9 + $0x8] sm:$0xf] %v2602
  %v2750 = vrot.slane %v2742, 4
  %v2751 = vrot.slane %v2744, 4
  %2754 = vst [vmem:[%s9] sm:$0xf0] %v2750
  %2755 = vst [vmem:[%s9 + $0x8] sm:$0xf0] %v2751
  // Predicated region
  $region38: #{ncsn_forward.1} parent=0 // pred_check
    _
  $region39: #{ncsn_forward.1} parent=0 // pred_check_branch
    %2757 = sbr.rel (0) target = $region41
  $region40: #{ncsn_forward.1} parent=0 // pred_region
    _
  $region41: #{ncsn_forward.1} parent=0 // pred_fallthru
    _
  // Predicated region
  $region42: #{ncsn_forward.1} parent=0 // pred_check
    _
  $region43: #{ncsn_forward.1} parent=0 // pred_check_branch
    %2759 = sbr.rel (0) target = $region45
  $region44: #{ncsn_forward.1} parent=0 // pred_region
    _
  $region45: #{ncsn_forward.1} parent=0 // pred_fallthru
    _

</llo_original>
